<compile_context>
chip_gen: v5e
topology: v5e:2x2
jax: 0.10.0
libtpu: 0.0.40
codegen_flags: <defaults>
</compile_context>

<pallas_src>
import functools

import jax
import jax.numpy as jnp
from jax import lax
from jax.experimental import pallas as pl
from jax.experimental.pallas import tpu as pltpu

INPUT_SIZE = 128   # LSTM input_size (fixed by the module)
HIDDEN = 64        # LSTM hidden_size (fixed by the module)
ATT = 64           # attention_size (fixed by the module)
H4 = 4 * HIDDEN    # per-direction gate width (256)
GATES = 2 * H4     # packed fwd|bwd gate width (512)


def _tree_reduce(fn, xs):
    """Balanced binary reduction (shortens serial VPU dependency chains)."""
    xs = list(xs)
    while len(xs) > 1:
        nxt = [fn(xs[i], xs[i + 1]) for i in range(0, len(xs) - 1, 2)]
        if len(xs) % 2:
            nxt.append(xs[-1])
        xs = nxt
    return xs[0]


# ----------------------------- Pallas kernel --------------------------------


def _night_encoder_kernel(T, TB,
                          x_ref,                     # (T, TB, 128) f32, time-major
                          wih_ref,                   # (128, 512) bf16 [fwd i,f,o,g | bwd i,f,o,g]
                          whh_ref,                   # (128, 512) bf16 block-diagonal
                          bg_ref,                    # (1, 512) f32 folded b_ih + b_hh
                          wattf_ref, wattb_ref,      # (64, 64) bf16 each
                          batt_ref, uatt_ref,        # (1, 64) f32 each
                          wclff_ref, wclfb_ref,      # (64, C) f32 each
                          bclf_ref,                  # (1, C) f32 (frozen at 40)
                          o_ref,                     # (TB, C) f32
                          gxf_scr, gxb_scr,          # (T*TB, 256) f32 hoisted input gates
                          hsf_scr, hsb_scr):         # (T*TB, 64) f32 hidden states
    f32 = jnp.float32
    bf16 = jnp.bfloat16
    H = HIDDEN

    # ---- Phase 1: hoisted input projection (one big MXU matmul, biases folded).
    x2 = x_ref[...].reshape(T * TB, INPUT_SIZE).astype(bf16)      # layout-trivial (TB % 8 == 0)
    gx = jnp.dot(x2, wih_ref[...], preferred_element_type=f32) + bg_ref[...]   # (T*TB, 512)
    gxf_scr[...] = gx[:, 0:H4]
    gxb_scr[...] = gx[:, H4:GATES]

    # ---- Phase 2: packed bidirectional recurrence (1 matmul + 1 sigmoid/tanh slab
    #      per direction per step; fwd walks t = 0..T-1, bwd walks T-1..0).
    whh = whh_ref[...]
    h_f = jnp.zeros((TB, H), f32)
    h_b = jnp.zeros((TB, H), f32)
    c_f = jnp.zeros((TB, H), f32)
    c_b = jnp.zeros((TB, H), f32)
    for s in range(T):                               # static unroll (T compile-time)
        rt = T - 1 - s
        h_cat = jnp.concatenate([h_f, h_b], axis=-1).astype(bf16)          # (TB, 128)
        g_hh = jnp.dot(h_cat, whh, preferred_element_type=f32)             # (TB, 512)
        gf = g_hh[:, 0:H4] + gxf_scr[pl.ds(s * TB, TB), :]                 # fwd gates @ t = s
        gb = g_hh[:, H4:GATES] + gxb_scr[pl.ds(rt * TB, TB), :]            # bwd gates @ t = rt
        # per-direction gate layout [i, f, o, g]
        sf = jax.nn.sigmoid(gf[:, 0:3 * H])
        gtf = jnp.tanh(gf[:, 3 * H:4 * H])
        sb = jax.nn.sigmoid(gb[:, 0:3 * H])
        gtb = jnp.tanh(gb[:, 3 * H:4 * H])
        c_f = sf[:, H:2 * H] * c_f + sf[:, 0:H] * gtf
        c_b = sb[:, H:2 * H] * c_b + sb[:, 0:H] * gtb
        h_f = sf[:, 2 * H:3 * H] * jnp.tanh(c_f)
        h_b = sb[:, 2 * H:3 * H] * jnp.tanh(c_b)
        hsf_scr[pl.ds(s * TB, TB), :] = h_f
        hsb_scr[pl.ds(rt * TB, TB), :] = h_b

    # ---- Phase 3: batched attention over all (t, b) rows at once.
    hsf = hsf_scr[...]                                                     # (T*TB, 64)
    hsb = hsb_scr[...]
    v = jnp.tanh(jnp.dot(hsf.astype(bf16), wattf_ref[...], preferred_element_type=f32)
                 + jnp.dot(hsb.astype(bf16), wattb_ref[...], preferred_element_type=f32)
                 + batt_ref[...])                                          # (T*TB, 64)
    scores = jnp.sum(v * uatt_ref[...], axis=-1, keepdims=True)            # (T*TB, 1)

    # softmax over time (numerically stable), per batch row.
    s_t = [scores[t * TB:(t + 1) * TB, :] for t in range(T)]               # T x (TB, 1)
    m = _tree_reduce(jnp.maximum, s_t)
    e_t = [jnp.exp(s - m) for s in s_t]
    denom = _tree_reduce(lambda a, b: a + b, e_t)
    inv = pl.reciprocal(denom, approx=True)                                # (TB, 1)

    ctx_f = _tree_reduce(lambda a, b: a + b,
                         [e_t[t] * hsf[t * TB:(t + 1) * TB, :] for t in range(T)]) * inv
    ctx_b = _tree_reduce(lambda a, b: a + b,
                         [e_t[t] * hsb[t * TB:(t + 1) * TB, :] for t in range(T)]) * inv

    # ---- Phase 4: classifier (bias frozen at 40).
    o_ref[...] = (jnp.dot(ctx_f, wclff_ref[...], preferred_element_type=f32)
                  + jnp.dot(ctx_b, wclfb_ref[...], preferred_element_type=f32)
                  + bclf_ref[...])


# ------------------------------ JAX wrapper ----------------------------------


def night_encoder_forward(x, params, *, batch_tile=128):
    """Pallas implementation of NightEncoder.forward.  x: (B, T, 128) -> (B, C)."""
    B, T, I = x.shape
    assert I == INPUT_SIZE
    H = HIDDEN
    f32, bf16 = jnp.float32, jnp.bfloat16

    # Batch tile: multiple of 8 so in-kernel reshapes / scratch stores are
    # sublane-aligned; capped so the VMEM footprint stays small.
    TB = batch_tile if B >= batch_tile else (-(-B // 8)) * 8
    Bp = (-(-B // TB)) * TB

    # TODO(synk): x is transposed to time-major host-side (one extra pass over x);
    # folding this into the kernel would need an in-kernel major-dim relayout.
    xt = jnp.transpose(x.astype(f32), (1, 0, 2))                            # (T, B, 128)
    if Bp != B:
        xt = jnp.pad(xt, ((0, 0), (0, Bp - B), (0, 0)))

    def reorder_gates(w):   # PyTorch rows [i, f, g, o] -> [i, f, o, g]
        return jnp.concatenate([w[0:2 * H], w[3 * H:4 * H], w[2 * H:3 * H]], axis=0)

    # Packed input-projection weights: columns = [fwd i,f,o,g | bwd i,f,o,g].
    wih_f = reorder_gates(params["w_ih_f"]).T                               # (128, 256)
    wih_b = reorder_gates(params["w_ih_b"]).T
    wih_cat = jnp.concatenate([wih_f, wih_b], axis=1).astype(bf16)          # (128, 512)

    # Block-diagonal recurrent weights: rows = [h_f | h_b], same column order.
    whh_f = reorder_gates(params["w_hh_f"]).T                               # (64, 256)
    whh_b = reorder_gates(params["w_hh_b"]).T
    z = jnp.zeros((H, H4), f32)
    whh_cat = jnp.concatenate(
        [jnp.concatenate([whh_f, z], axis=1),
         jnp.concatenate([z, whh_b], axis=1)], axis=0).astype(bf16)         # (128, 512)

    # Folded LSTM biases (b_ih + b_hh), same packed column order.
    b_f = reorder_gates(params["b_ih_f"] + params["b_hh_f"])
    b_b = reorder_gates(params["b_ih_b"] + params["b_hh_b"])
    bg = jnp.concatenate([b_f, b_b]).reshape(1, GATES).astype(f32)          # (1, 512)

    # Attention / classifier weights split per LSTM direction (concat avoided).
    watt_f = params["w_omega"][:H].astype(bf16)                             # (64, 64)
    watt_b = params["w_omega"][H:].astype(bf16)
    batt = params["b_omega"].reshape(1, ATT).astype(f32)
    uatt = params["u_omega"].reshape(1, ATT).astype(f32)
    wclf = params["w_clf"].T.astype(f32)                                    # (128, C)
    wclf_f, wclf_b = wclf[:H], wclf[H:]
    bclf = params["b_clf"].reshape(1, -1).astype(f32)
    C = bclf.shape[1]

    kernel = functools.partial(_night_encoder_kernel, T, TB)

    def full_spec(a):
        return pl.BlockSpec(a.shape, lambda i: (0,) * a.ndim)

    in_specs = [pl.BlockSpec((T, TB, INPUT_SIZE), lambda i: (0, i, 0)),
                full_spec(wih_cat), full_spec(whh_cat), full_spec(bg),
                full_spec(watt_f), full_spec(watt_b), full_spec(batt), full_spec(uatt),
                full_spec(wclf_f), full_spec(wclf_b), full_spec(bclf)]
    out_specs = pl.BlockSpec((TB, C), lambda i: (i, 0))

    inputs = (xt, wih_cat, whh_cat, bg, watt_f, watt_b, batt, uatt,
              wclf_f, wclf_b, bclf)

    flops = (2 * T * Bp * INPUT_SIZE * GATES       # hoisted input projection
             + 2 * T * Bp * 2 * H * GATES          # packed recurrence
             + 2 * T * Bp * 2 * H * ATT            # attention projection
             + 2 * Bp * 2 * H * C)                 # classifier
    transcendentals = T * Bp * (2 * 5 * H + ATT + 1)
    bytes_accessed = sum(int(a.size) * a.dtype.itemsize for a in inputs) + Bp * C * 4

    out = pl.pallas_call(
        kernel,
        out_shape=jax.ShapeDtypeStruct((Bp, C), f32),
        grid_spec=pltpu.PrefetchScalarGridSpec(
            num_scalar_prefetch=0,
            grid=(Bp // TB,),
            in_specs=in_specs,
            out_specs=out_specs,
            scratch_shapes=[pltpu.VMEM((T * TB, H4), f32),   # gxf
                            pltpu.VMEM((T * TB, H4), f32),   # gxb
                            pltpu.VMEM((T * TB, H), f32),    # hs fwd
                            pltpu.VMEM((T * TB, H), f32)]),  # hs bwd
        compiler_params=pltpu.CompilerParams(
            dimension_semantics=("parallel",),
            vmem_limit_bytes=48 * 1024 * 1024),
        cost_estimate=pl.CostEstimate(flops=flops,
                                      transcendentals=transcendentals,
                                      bytes_accessed=bytes_accessed),
    )(*inputs)
    return out[:B] if Bp != B else out


# -------------------------- params & pure-JAX reference ----------------------


def init_params(key, n_classes):
    """Deterministic synthetic params mimicking the PyTorch module's init."""
    H, I, A = HIDDEN, INPUT_SIZE, ATT
    ks = jax.random.split(key, 12)
    lstm_bound = 1.0 / (H ** 0.5)
    clf_bound = 1.0 / ((2 * H) ** 0.5)

    def uni(k, shape, bound):
        return jax.random.uniform(k, shape, jnp.float32, -bound, bound)

    return {
        "w_ih_f": uni(ks[0], (4 * H, I), lstm_bound),
        "w_hh_f": uni(ks[1], (4 * H, H), lstm_bound),
        "b_ih_f": uni(ks[2], (4 * H,), lstm_bound),
        "b_hh_f": uni(ks[3], (4 * H,), lstm_bound),
        "w_ih_b": uni(ks[4], (4 * H, I), lstm_bound),
        "w_hh_b": uni(ks[5], (4 * H, H), lstm_bound),
        "b_ih_b": uni(ks[6], (4 * H,), lstm_bound),
        "b_hh_b": uni(ks[7], (4 * H,), lstm_bound),
        "w_omega": 0.1 * jax.random.normal(ks[8], (2 * H, A), jnp.float32),
        "b_omega": 0.1 * jax.random.normal(ks[9], (A,), jnp.float32),
        "u_omega": 0.1 * jax.random.normal(ks[10], (A,), jnp.float32),
        "w_clf": uni(ks[11], (n_classes, 2 * H), clf_bound),
        "b_clf": jnp.full((n_classes,), 40.0, jnp.float32),
    }


def reference_forward(x, params):
    """Pure-JAX f32 reference replicating the PyTorch forward exactly."""
    B, T, _ = x.shape
    H = HIDDEN
    xs = jnp.transpose(x, (1, 0, 2)).astype(jnp.float32)

    def run_dir(w_ih, w_hh, b_ih, b_hh, seq):
        def step(carry, x_t):
            h, c = carry
            gates = x_t @ w_ih.T + b_ih + h @ w_hh.T + b_hh
            i = jax.nn.sigmoid(gates[:, 0 * H:1 * H])
            f = jax.nn.sigmoid(gates[:, 1 * H:2 * H])
            g = jnp.tanh(gates[:, 2 * H:3 * H])
            o = jax.nn.sigmoid(gates[:, 3 * H:4 * H])
            c = f * c + i * g
            h = o * jnp.tanh(c)
            return (h, c), h
        init = (jnp.zeros((B, H), jnp.float32), jnp.zeros((B, H), jnp.float32))
        _, hs = lax.scan(step, init, seq)
        return hs

    hs_f = run_dir(params["w_ih_f"], params["w_hh_f"],
                   params["b_ih_f"], params["b_hh_f"], xs)
    hs_b = run_dir(params["w_ih_b"], params["w_hh_b"],
                   params["b_ih_b"], params["b_hh_b"], xs[::-1])[::-1]
    lstm_out = jnp.concatenate([hs_f, hs_b], axis=-1)
    lstm_out = jnp.transpose(lstm_out, (1, 0, 2))

    v = jnp.tanh(lstm_out @ params["w_omega"] + params["b_omega"])
    vu = v @ params["u_omega"]
    alphas = jax.nn.softmax(vu, axis=1)
    ctx = jnp.sum(lstm_out * alphas[:, :, None], axis=1)
    return ctx @ params["w_clf"].T + params["b_clf"]


if __name__ == "__main__":
    key = jax.random.PRNGKey(0)
    kx, kp = jax.random.split(key)

    B, T, n_classes = 2, 8, 5
    x = jax.random.normal(kx, (B, T, INPUT_SIZE), jnp.float32)
    params = init_params(kp, n_classes)

    out = night_encoder_forward(x, params)
    out = jax.block_until_ready(out)

    ref = reference_forward(x, params)
    assert out.shape == (B, n_classes), out.shape
    max_err = float(jnp.max(jnp.abs(out - ref)))
    assert jnp.allclose(out, ref, atol=1e-2, rtol=1e-2), max_err

    print("KERNEL_OK")
</pallas_src>

<mosaic_0001>
module attributes {stable_mosaic.version = 11 : i64} {
  func.func @_night_encoder_kernel(%arg0: i32, %arg1: memref<8x8x128xf32, #tpu.memory_space<vmem>>, %arg2: memref<128x512xbf16, #tpu.memory_space<vmem>>, %arg3: memref<128x512xbf16, #tpu.memory_space<vmem>>, %arg4: memref<1x512xf32, #tpu.memory_space<vmem>>, %arg5: memref<64x64xbf16, #tpu.memory_space<vmem>>, %arg6: memref<64x64xbf16, #tpu.memory_space<vmem>>, %arg7: memref<1x64xf32, #tpu.memory_space<vmem>>, %arg8: memref<1x64xf32, #tpu.memory_space<vmem>>, %arg9: memref<64x5xf32, #tpu.memory_space<vmem>>, %arg10: memref<64x5xf32, #tpu.memory_space<vmem>>, %arg11: memref<1x5xf32, #tpu.memory_space<vmem>>, %arg12: memref<8x5xf32, #tpu.memory_space<vmem>>, %arg13: memref<64x256xf32, #tpu.memory_space<vmem>>, %arg14: memref<64x256xf32, #tpu.memory_space<vmem>>, %arg15: memref<64x64xf32, #tpu.memory_space<vmem>>, %arg16: memref<64x64xf32, #tpu.memory_space<vmem>>) attributes {dimension_semantics = [#tpu.dimension_semantics<parallel>], iteration_bounds = array<i64: 1>, scalar_prefetch = 0 : i64, scratch_operands = 4 : i64, tpu.core_type = #tpu.core_type<tc>, window_params = [{transform_indices = @transform_0, window_bounds = array<i64: 8, 8, 128>}, {pipeline_mode = #tpu.pipeline_mode<synchronous>, transform_indices = @transform_1, window_bounds = array<i64: 128, 512>}, {pipeline_mode = #tpu.pipeline_mode<synchronous>, transform_indices = @transform_2, window_bounds = array<i64: 128, 512>}, {pipeline_mode = #tpu.pipeline_mode<synchronous>, transform_indices = @transform_3, window_bounds = array<i64: 1, 512>}, {pipeline_mode = #tpu.pipeline_mode<synchronous>, transform_indices = @transform_4, window_bounds = array<i64: 64, 64>}, {pipeline_mode = #tpu.pipeline_mode<synchronous>, transform_indices = @transform_5, window_bounds = array<i64: 64, 64>}, {pipeline_mode = #tpu.pipeline_mode<synchronous>, transform_indices = @transform_6, window_bounds = array<i64: 1, 64>}, {pipeline_mode = #tpu.pipeline_mode<synchronous>, transform_indices = @transform_7, window_bounds = array<i64: 1, 64>}, {pipeline_mode = #tpu.pipeline_mode<synchronous>, transform_indices = @transform_8, window_bounds = array<i64: 64, 5>}, {pipeline_mode = #tpu.pipeline_mode<synchronous>, transform_indices = @transform_9, window_bounds = array<i64: 64, 5>}, {pipeline_mode = #tpu.pipeline_mode<synchronous>, transform_indices = @transform_10, window_bounds = array<i64: 1, 5>}, {transform_indices = @transform_11, window_bounds = array<i64: 8, 5>}]} {
    %c0 = arith.constant 0 : index
    %c0_0 = arith.constant 0 : index
    %c0_1 = arith.constant 0 : index
    %0 = vector.load %arg1[%c0, %c0_0, %c0_1] : memref<8x8x128xf32, #tpu.memory_space<vmem>>, vector<8x8x128xf32>
    %1 = vector.shape_cast %0 : vector<8x8x128xf32> to vector<64x128xf32>
    %2 = arith.truncf %1 : vector<64x128xf32> to vector<64x128xbf16>
    %c0_2 = arith.constant 0 : index
    %c0_3 = arith.constant 0 : index
    %3 = vector.load %arg2[%c0_2, %c0_3] : memref<128x512xbf16, #tpu.memory_space<vmem>>, vector<128x512xbf16>
    %cst = arith.constant dense<0.000000e+00> : vector<64x512xf32>
    %4 = tpu.matmul %2, %3, %cst {dimension_numbers = #tpu.dot_dimension_numbers<[1], [0], [0], [1], [0, 0, 1, 1], [], []>} : vector<64x128xbf16>, vector<128x512xbf16>, vector<64x512xf32> -> vector<64x512xf32>
    %c0_4 = arith.constant 0 : index
    %c0_5 = arith.constant 0 : index
    %5 = vector.load %arg4[%c0_4, %c0_5] : memref<1x512xf32, #tpu.memory_space<vmem>>, vector<1x512xf32>
    %6 = vector.broadcast %5 : vector<1x512xf32> to vector<64x512xf32>
    %7 = arith.addf %4, %6 : vector<64x512xf32>
    %8 = vector.extract_strided_slice %7 {offsets = [0, 0], sizes = [64, 256], strides = [1, 1]} : vector<64x512xf32> to vector<64x256xf32>
    %c0_6 = arith.constant 0 : index
    %c0_7 = arith.constant 0 : index
    %9 = vector.load %arg13[%c0_6, %c0_7] : memref<64x256xf32, #tpu.memory_space<vmem>>, vector<64x256xf32>
    tpu.vector_store %arg13[%c0_6, %c0_7], %8 {strides = array<i32>} : memref<64x256xf32, #tpu.memory_space<vmem>>, vector<64x256xf32>,
    %10 = vector.extract_strided_slice %7 {offsets = [0, 256], sizes = [64, 256], strides = [1, 1]} : vector<64x512xf32> to vector<64x256xf32>
    %c0_8 = arith.constant 0 : index
    %c0_9 = arith.constant 0 : index
    %11 = vector.load %arg14[%c0_8, %c0_9] : memref<64x256xf32, #tpu.memory_space<vmem>>, vector<64x256xf32>
    tpu.vector_store %arg14[%c0_8, %c0_9], %10 {strides = array<i32>} : memref<64x256xf32, #tpu.memory_space<vmem>>, vector<64x256xf32>,
    %c0_10 = arith.constant 0 : index
    %c0_11 = arith.constant 0 : index
    %12 = vector.load %arg3[%c0_10, %c0_11] : memref<128x512xbf16, #tpu.memory_space<vmem>>, vector<128x512xbf16>
    %cst_12 = arith.constant 0.000000e+00 : f32
    %13 = vector.broadcast %cst_12 : f32 to vector<8x64xf32>
    %cst_13 = arith.constant 0.000000e+00 : f32
    %14 = vector.broadcast %cst_13 : f32 to vector<8x64xf32>
    %cst_14 = arith.constant 0.000000e+00 : f32
    %15 = vector.broadcast %cst_14 : f32 to vector<8x64xf32>
    %cst_15 = arith.constant 0.000000e+00 : f32
    %16 = vector.broadcast %cst_15 : f32 to vector<8x64xf32>
    %17 = tpu.concatenate %13, %14 in 1 : vector<8x64xf32>, vector<8x64xf32> -> vector<8x128xf32>
    %18 = arith.truncf %17 : vector<8x128xf32> to vector<8x128xbf16>
    %cst_16 = arith.constant dense<0.000000e+00> : vector<8x512xf32>
    %19 = tpu.matmul %18, %12, %cst_16 {dimension_numbers = #tpu.dot_dimension_numbers<[1], [0], [0], [1], [0, 0, 1, 1], [], []>} : vector<8x128xbf16>, vector<128x512xbf16>, vector<8x512xf32> -> vector<8x512xf32>
    %20 = vector.extract_strided_slice %19 {offsets = [0, 0], sizes = [8, 256], strides = [1, 1]} : vector<8x512xf32> to vector<8x256xf32>
    %c0_17 = arith.constant 0 : index
    %c0_18 = arith.constant 0 : index
    %21 = vector.load %arg13[%c0_17, %c0_18] : memref<64x256xf32, #tpu.memory_space<vmem>>, vector<8x256xf32>
    %22 = arith.addf %20, %21 : vector<8x256xf32>
    %23 = vector.extract_strided_slice %19 {offsets = [0, 256], sizes = [8, 256], strides = [1, 1]} : vector<8x512xf32> to vector<8x256xf32>
    %c56 = arith.constant 56 : index
    %c0_19 = arith.constant 0 : index
    %24 = vector.load %arg14[%c56, %c0_19] : memref<64x256xf32, #tpu.memory_space<vmem>>, vector<8x256xf32>
    %25 = arith.addf %23, %24 : vector<8x256xf32>
    %26 = vector.extract_strided_slice %22 {offsets = [0, 0], sizes = [8, 192], strides = [1, 1]} : vector<8x256xf32> to vector<8x192xf32>
    %27 = arith.negf %26 : vector<8x192xf32>
    %28 = math.exp %27 : vector<8x192xf32>
    %cst_20 = arith.constant 1.000000e+00 : f32
    %29 = vector.broadcast %cst_20 : f32 to vector<8x192xf32>
    %30 = arith.addf %29, %28 : vector<8x192xf32>
    %31 = arith.divf %29, %30 : vector<8x192xf32>
    %32 = vector.extract_strided_slice %22 {offsets = [0, 192], sizes = [8, 64], strides = [1, 1]} : vector<8x256xf32> to vector<8x64xf32>
    %33 = math.tanh %32 : vector<8x64xf32>
    %34 = vector.extract_strided_slice %25 {offsets = [0, 0], sizes = [8, 192], strides = [1, 1]} : vector<8x256xf32> to vector<8x192xf32>
    %35 = arith.negf %34 : vector<8x192xf32>
    %36 = math.exp %35 : vector<8x192xf32>
    %cst_21 = arith.constant 1.000000e+00 : f32
    %37 = vector.broadcast %cst_21 : f32 to vector<8x192xf32>
    %38 = arith.addf %37, %36 : vector<8x192xf32>
    %39 = arith.divf %37, %38 : vector<8x192xf32>
    %40 = vector.extract_strided_slice %25 {offsets = [0, 192], sizes = [8, 64], strides = [1, 1]} : vector<8x256xf32> to vector<8x64xf32>
    %41 = math.tanh %40 : vector<8x64xf32>
    %42 = vector.extract_strided_slice %31 {offsets = [0, 64], sizes = [8, 64], strides = [1, 1]} : vector<8x192xf32> to vector<8x64xf32>
    %43 = arith.mulf %42, %15 : vector<8x64xf32>
    %44 = vector.extract_strided_slice %31 {offsets = [0, 0], sizes = [8, 64], strides = [1, 1]} : vector<8x192xf32> to vector<8x64xf32>
    %45 = arith.mulf %44, %33 : vector<8x64xf32>
    %46 = arith.addf %43, %45 : vector<8x64xf32>
    %47 = vector.extract_strided_slice %39 {offsets = [0, 64], sizes = [8, 64], strides = [1, 1]} : vector<8x192xf32> to vector<8x64xf32>
    %48 = arith.mulf %47, %16 : vector<8x64xf32>
    %49 = vector.extract_strided_slice %39 {offsets = [0, 0], sizes = [8, 64], strides = [1, 1]} : vector<8x192xf32> to vector<8x64xf32>
    %50 = arith.mulf %49, %41 : vector<8x64xf32>
    %51 = arith.addf %48, %50 : vector<8x64xf32>
    %52 = vector.extract_strided_slice %31 {offsets = [0, 128], sizes = [8, 64], strides = [1, 1]} : vector<8x192xf32> to vector<8x64xf32>
    %53 = math.tanh %46 : vector<8x64xf32>
    %54 = arith.mulf %52, %53 : vector<8x64xf32>
    %55 = vector.extract_strided_slice %39 {offsets = [0, 128], sizes = [8, 64], strides = [1, 1]} : vector<8x192xf32> to vector<8x64xf32>
    %56 = math.tanh %51 : vector<8x64xf32>
    %57 = arith.mulf %55, %56 : vector<8x64xf32>
    %c0_22 = arith.constant 0 : index
    %c0_23 = arith.constant 0 : index
    %58 = vector.load %arg15[%c0_22, %c0_23] : memref<64x64xf32, #tpu.memory_space<vmem>>, vector<8x64xf32>
    tpu.vector_store %arg15[%c0_22, %c0_23], %54 {strides = array<i32>} : memref<64x64xf32, #tpu.memory_space<vmem>>, vector<8x64xf32>,
    %c56_24 = arith.constant 56 : index
    %c0_25 = arith.constant 0 : index
    %59 = vector.load %arg16[%c56_24, %c0_25] : memref<64x64xf32, #tpu.memory_space<vmem>>, vector<8x64xf32>
    tpu.vector_store %arg16[%c56_24, %c0_25], %57 {strides = array<i32>} : memref<64x64xf32, #tpu.memory_space<vmem>>, vector<8x64xf32>,
    %60 = tpu.concatenate %54, %57 in 1 : vector<8x64xf32>, vector<8x64xf32> -> vector<8x128xf32>
    %61 = arith.truncf %60 : vector<8x128xf32> to vector<8x128xbf16>
    %cst_26 = arith.constant dense<0.000000e+00> : vector<8x512xf32>
    %62 = tpu.matmul %61, %12, %cst_26 {dimension_numbers = #tpu.dot_dimension_numbers<[1], [0], [0], [1], [0, 0, 1, 1], [], []>} : vector<8x128xbf16>, vector<128x512xbf16>, vector<8x512xf32> -> vector<8x512xf32>
    %63 = vector.extract_strided_slice %62 {offsets = [0, 0], sizes = [8, 256], strides = [1, 1]} : vector<8x512xf32> to vector<8x256xf32>
    %c8 = arith.constant 8 : index
    %c0_27 = arith.constant 0 : index
    %64 = vector.load %arg13[%c8, %c0_27] : memref<64x256xf32, #tpu.memory_space<vmem>>, vector<8x256xf32>
    %65 = arith.addf %63, %64 : vector<8x256xf32>
    %66 = vector.extract_strided_slice %62 {offsets = [0, 256], sizes = [8, 256], strides = [1, 1]} : vector<8x512xf32> to vector<8x256xf32>
    %c48 = arith.constant 48 : index
    %c0_28 = arith.constant 0 : index
    %67 = vector.load %arg14[%c48, %c0_28] : memref<64x256xf32, #tpu.memory_space<vmem>>, vector<8x256xf32>
    %68 = arith.addf %66, %67 : vector<8x256xf32>
    %69 = vector.extract_strided_slice %65 {offsets = [0, 0], sizes = [8, 192], strides = [1, 1]} : vector<8x256xf32> to vector<8x192xf32>
    %70 = arith.negf %69 : vector<8x192xf32>
    %71 = math.exp %70 : vector<8x192xf32>
    %cst_29 = arith.constant 1.000000e+00 : f32
    %72 = vector.broadcast %cst_29 : f32 to vector<8x192xf32>
    %73 = arith.addf %72, %71 : vector<8x192xf32>
    %74 = arith.divf %72, %73 : vector<8x192xf32>
    %75 = vector.extract_strided_slice %65 {offsets = [0, 192], sizes = [8, 64], strides = [1, 1]} : vector<8x256xf32> to vector<8x64xf32>
    %76 = math.tanh %75 : vector<8x64xf32>
    %77 = vector.extract_strided_slice %68 {offsets = [0, 0], sizes = [8, 192], strides = [1, 1]} : vector<8x256xf32> to vector<8x192xf32>
    %78 = arith.negf %77 : vector<8x192xf32>
    %79 = math.exp %78 : vector<8x192xf32>
    %cst_30 = arith.constant 1.000000e+00 : f32
    %80 = vector.broadcast %cst_30 : f32 to vector<8x192xf32>
    %81 = arith.addf %80, %79 : vector<8x192xf32>
    %82 = arith.divf %80, %81 : vector<8x192xf32>
    %83 = vector.extract_strided_slice %68 {offsets = [0, 192], sizes = [8, 64], strides = [1, 1]} : vector<8x256xf32> to vector<8x64xf32>
    %84 = math.tanh %83 : vector<8x64xf32>
    %85 = vector.extract_strided_slice %74 {offsets = [0, 64], sizes = [8, 64], strides = [1, 1]} : vector<8x192xf32> to vector<8x64xf32>
    %86 = arith.mulf %85, %46 : vector<8x64xf32>
    %87 = vector.extract_strided_slice %74 {offsets = [0, 0], sizes = [8, 64], strides = [1, 1]} : vector<8x192xf32> to vector<8x64xf32>
    %88 = arith.mulf %87, %76 : vector<8x64xf32>
    %89 = arith.addf %86, %88 : vector<8x64xf32>
    %90 = vector.extract_strided_slice %82 {offsets = [0, 64], sizes = [8, 64], strides = [1, 1]} : vector<8x192xf32> to vector<8x64xf32>
    %91 = arith.mulf %90, %51 : vector<8x64xf32>
    %92 = vector.extract_strided_slice %82 {offsets = [0, 0], sizes = [8, 64], strides = [1, 1]} : vector<8x192xf32> to vector<8x64xf32>
    %93 = arith.mulf %92, %84 : vector<8x64xf32>
    %94 = arith.addf %91, %93 : vector<8x64xf32>
    %95 = vector.extract_strided_slice %74 {offsets = [0, 128], sizes = [8, 64], strides = [1, 1]} : vector<8x192xf32> to vector<8x64xf32>
    %96 = math.tanh %89 : vector<8x64xf32>
    %97 = arith.mulf %95, %96 : vector<8x64xf32>
    %98 = vector.extract_strided_slice %82 {offsets = [0, 128], sizes = [8, 64], strides = [1, 1]} : vector<8x192xf32> to vector<8x64xf32>
    %99 = math.tanh %94 : vector<8x64xf32>
    %100 = arith.mulf %98, %99 : vector<8x64xf32>
    %c8_31 = arith.constant 8 : index
    %c0_32 = arith.constant 0 : index
    %101 = vector.load %arg15[%c8_31, %c0_32] : memref<64x64xf32, #tpu.memory_space<vmem>>, vector<8x64xf32>
    tpu.vector_store %arg15[%c8_31, %c0_32], %97 {strides = array<i32>} : memref<64x64xf32, #tpu.memory_space<vmem>>, vector<8x64xf32>,
    %c48_33 = arith.constant 48 : index
    %c0_34 = arith.constant 0 : index
    %102 = vector.load %arg16[%c48_33, %c0_34] : memref<64x64xf32, #tpu.memory_space<vmem>>, vector<8x64xf32>
    tpu.vector_store %arg16[%c48_33, %c0_34], %100 {strides = array<i32>} : memref<64x64xf32, #tpu.memory_space<vmem>>, vector<8x64xf32>,
    %103 = tpu.concatenate %97, %100 in 1 : vector<8x64xf32>, vector<8x64xf32> -> vector<8x128xf32>
    %104 = arith.truncf %103 : vector<8x128xf32> to vector<8x128xbf16>
    %cst_35 = arith.constant dense<0.000000e+00> : vector<8x512xf32>
    %105 = tpu.matmul %104, %12, %cst_35 {dimension_numbers = #tpu.dot_dimension_numbers<[1], [0], [0], [1], [0, 0, 1, 1], [], []>} : vector<8x128xbf16>, vector<128x512xbf16>, vector<8x512xf32> -> vector<8x512xf32>
    %106 = vector.extract_strided_slice %105 {offsets = [0, 0], sizes = [8, 256], strides = [1, 1]} : vector<8x512xf32> to vector<8x256xf32>
    %c16 = arith.constant 16 : index
    %c0_36 = arith.constant 0 : index
    %107 = vector.load %arg13[%c16, %c0_36] : memref<64x256xf32, #tpu.memory_space<vmem>>, vector<8x256xf32>
    %108 = arith.addf %106, %107 : vector<8x256xf32>
    %109 = vector.extract_strided_slice %105 {offsets = [0, 256], sizes = [8, 256], strides = [1, 1]} : vector<8x512xf32> to vector<8x256xf32>
    %c40 = arith.constant 40 : index
    %c0_37 = arith.constant 0 : index
    %110 = vector.load %arg14[%c40, %c0_37] : memref<64x256xf32, #tpu.memory_space<vmem>>, vector<8x256xf32>
    %111 = arith.addf %109, %110 : vector<8x256xf32>
    %112 = vector.extract_strided_slice %108 {offsets = [0, 0], sizes = [8, 192], strides = [1, 1]} : vector<8x256xf32> to vector<8x192xf32>
    %113 = arith.negf %112 : vector<8x192xf32>
    %114 = math.exp %113 : vector<8x192xf32>
    %cst_38 = arith.constant 1.000000e+00 : f32
    %115 = vector.broadcast %cst_38 : f32 to vector<8x192xf32>
    %116 = arith.addf %115, %114 : vector<8x192xf32>
    %117 = arith.divf %115, %116 : vector<8x192xf32>
    %118 = vector.extract_strided_slice %108 {offsets = [0, 192], sizes = [8, 64], strides = [1, 1]} : vector<8x256xf32> to vector<8x64xf32>
    %119 = math.tanh %118 : vector<8x64xf32>
    %120 = vector.extract_strided_slice %111 {offsets = [0, 0], sizes = [8, 192], strides = [1, 1]} : vector<8x256xf32> to vector<8x192xf32>
    %121 = arith.negf %120 : vector<8x192xf32>
    %122 = math.exp %121 : vector<8x192xf32>
    %cst_39 = arith.constant 1.000000e+00 : f32
    %123 = vector.broadcast %cst_39 : f32 to vector<8x192xf32>
    %124 = arith.addf %123, %122 : vector<8x192xf32>
    %125 = arith.divf %123, %124 : vector<8x192xf32>
    %126 = vector.extract_strided_slice %111 {offsets = [0, 192], sizes = [8, 64], strides = [1, 1]} : vector<8x256xf32> to vector<8x64xf32>
    %127 = math.tanh %126 : vector<8x64xf32>
    %128 = vector.extract_strided_slice %117 {offsets = [0, 64], sizes = [8, 64], strides = [1, 1]} : vector<8x192xf32> to vector<8x64xf32>
    %129 = arith.mulf %128, %89 : vector<8x64xf32>
    %130 = vector.extract_strided_slice %117 {offsets = [0, 0], sizes = [8, 64], strides = [1, 1]} : vector<8x192xf32> to vector<8x64xf32>
    %131 = arith.mulf %130, %119 : vector<8x64xf32>
    %132 = arith.addf %129, %131 : vector<8x64xf32>
    %133 = vector.extract_strided_slice %125 {offsets = [0, 64], sizes = [8, 64], strides = [1, 1]} : vector<8x192xf32> to vector<8x64xf32>
    %134 = arith.mulf %133, %94 : vector<8x64xf32>
    %135 = vector.extract_strided_slice %125 {offsets = [0, 0], sizes = [8, 64], strides = [1, 1]} : vector<8x192xf32> to vector<8x64xf32>
    %136 = arith.mulf %135, %127 : vector<8x64xf32>
    %137 = arith.addf %134, %136 : vector<8x64xf32>
    %138 = vector.extract_strided_slice %117 {offsets = [0, 128], sizes = [8, 64], strides = [1, 1]} : vector<8x192xf32> to vector<8x64xf32>
    %139 = math.tanh %132 : vector<8x64xf32>
    %140 = arith.mulf %138, %139 : vector<8x64xf32>
    %141 = vector.extract_strided_slice %125 {offsets = [0, 128], sizes = [8, 64], strides = [1, 1]} : vector<8x192xf32> to vector<8x64xf32>
    %142 = math.tanh %137 : vector<8x64xf32>
    %143 = arith.mulf %141, %142 : vector<8x64xf32>
    %c16_40 = arith.constant 16 : index
    %c0_41 = arith.constant 0 : index
    %144 = vector.load %arg15[%c16_40, %c0_41] : memref<64x64xf32, #tpu.memory_space<vmem>>, vector<8x64xf32>
    tpu.vector_store %arg15[%c16_40, %c0_41], %140 {strides = array<i32>} : memref<64x64xf32, #tpu.memory_space<vmem>>, vector<8x64xf32>,
    %c40_42 = arith.constant 40 : index
    %c0_43 = arith.constant 0 : index
    %145 = vector.load %arg16[%c40_42, %c0_43] : memref<64x64xf32, #tpu.memory_space<vmem>>, vector<8x64xf32>
    tpu.vector_store %arg16[%c40_42, %c0_43], %143 {strides = array<i32>} : memref<64x64xf32, #tpu.memory_space<vmem>>, vector<8x64xf32>,
    %146 = tpu.concatenate %140, %143 in 1 : vector<8x64xf32>, vector<8x64xf32> -> vector<8x128xf32>
    %147 = arith.truncf %146 : vector<8x128xf32> to vector<8x128xbf16>
    %cst_44 = arith.constant dense<0.000000e+00> : vector<8x512xf32>
    %148 = tpu.matmul %147, %12, %cst_44 {dimension_numbers = #tpu.dot_dimension_numbers<[1], [0], [0], [1], [0, 0, 1, 1], [], []>} : vector<8x128xbf16>, vector<128x512xbf16>, vector<8x512xf32> -> vector<8x512xf32>
    %149 = vector.extract_strided_slice %148 {offsets = [0, 0], sizes = [8, 256], strides = [1, 1]} : vector<8x512xf32> to vector<8x256xf32>
    %c24 = arith.constant 24 : index
    %c0_45 = arith.constant 0 : index
    %150 = vector.load %arg13[%c24, %c0_45] : memref<64x256xf32, #tpu.memory_space<vmem>>, vector<8x256xf32>
    %151 = arith.addf %149, %150 : vector<8x256xf32>
    %152 = vector.extract_strided_slice %148 {offsets = [0, 256], sizes = [8, 256], strides = [1, 1]} : vector<8x512xf32> to vector<8x256xf32>
    %c32 = arith.constant 32 : index
    %c0_46 = arith.constant 0 : index
    %153 = vector.load %arg14[%c32, %c0_46] : memref<64x256xf32, #tpu.memory_space<vmem>>, vector<8x256xf32>
    %154 = arith.addf %152, %153 : vector<8x256xf32>
    %155 = vector.extract_strided_slice %151 {offsets = [0, 0], sizes = [8, 192], strides = [1, 1]} : vector<8x256xf32> to vector<8x192xf32>
    %156 = arith.negf %155 : vector<8x192xf32>
    %157 = math.exp %156 : vector<8x192xf32>
    %cst_47 = arith.constant 1.000000e+00 : f32
    %158 = vector.broadcast %cst_47 : f32 to vector<8x192xf32>
    %159 = arith.addf %158, %157 : vector<8x192xf32>
    %160 = arith.divf %158, %159 : vector<8x192xf32>
    %161 = vector.extract_strided_slice %151 {offsets = [0, 192], sizes = [8, 64], strides = [1, 1]} : vector<8x256xf32> to vector<8x64xf32>
    %162 = math.tanh %161 : vector<8x64xf32>
    %163 = vector.extract_strided_slice %154 {offsets = [0, 0], sizes = [8, 192], strides = [1, 1]} : vector<8x256xf32> to vector<8x192xf32>
    %164 = arith.negf %163 : vector<8x192xf32>
    %165 = math.exp %164 : vector<8x192xf32>
    %cst_48 = arith.constant 1.000000e+00 : f32
    %166 = vector.broadcast %cst_48 : f32 to vector<8x192xf32>
    %167 = arith.addf %166, %165 : vector<8x192xf32>
    %168 = arith.divf %166, %167 : vector<8x192xf32>
    %169 = vector.extract_strided_slice %154 {offsets = [0, 192], sizes = [8, 64], strides = [1, 1]} : vector<8x256xf32> to vector<8x64xf32>
    %170 = math.tanh %169 : vector<8x64xf32>
    %171 = vector.extract_strided_slice %160 {offsets = [0, 64], sizes = [8, 64], strides = [1, 1]} : vector<8x192xf32> to vector<8x64xf32>
    %172 = arith.mulf %171, %132 : vector<8x64xf32>
    %173 = vector.extract_strided_slice %160 {offsets = [0, 0], sizes = [8, 64], strides = [1, 1]} : vector<8x192xf32> to vector<8x64xf32>
    %174 = arith.mulf %173, %162 : vector<8x64xf32>
    %175 = arith.addf %172, %174 : vector<8x64xf32>
    %176 = vector.extract_strided_slice %168 {offsets = [0, 64], sizes = [8, 64], strides = [1, 1]} : vector<8x192xf32> to vector<8x64xf32>
    %177 = arith.mulf %176, %137 : vector<8x64xf32>
    %178 = vector.extract_strided_slice %168 {offsets = [0, 0], sizes = [8, 64], strides = [1, 1]} : vector<8x192xf32> to vector<8x64xf32>
    %179 = arith.mulf %178, %170 : vector<8x64xf32>
    %180 = arith.addf %177, %179 : vector<8x64xf32>
    %181 = vector.extract_strided_slice %160 {offsets = [0, 128], sizes = [8, 64], strides = [1, 1]} : vector<8x192xf32> to vector<8x64xf32>
    %182 = math.tanh %175 : vector<8x64xf32>
    %183 = arith.mulf %181, %182 : vector<8x64xf32>
    %184 = vector.extract_strided_slice %168 {offsets = [0, 128], sizes = [8, 64], strides = [1, 1]} : vector<8x192xf32> to vector<8x64xf32>
    %185 = math.tanh %180 : vector<8x64xf32>
    %186 = arith.mulf %184, %185 : vector<8x64xf32>
    %c24_49 = arith.constant 24 : index
    %c0_50 = arith.constant 0 : index
    %187 = vector.load %arg15[%c24_49, %c0_50] : memref<64x64xf32, #tpu.memory_space<vmem>>, vector<8x64xf32>
    tpu.vector_store %arg15[%c24_49, %c0_50], %183 {strides = array<i32>} : memref<64x64xf32, #tpu.memory_space<vmem>>, vector<8x64xf32>,
    %c32_51 = arith.constant 32 : index
    %c0_52 = arith.constant 0 : index
    %188 = vector.load %arg16[%c32_51, %c0_52] : memref<64x64xf32, #tpu.memory_space<vmem>>, vector<8x64xf32>
    tpu.vector_store %arg16[%c32_51, %c0_52], %186 {strides = array<i32>} : memref<64x64xf32, #tpu.memory_space<vmem>>, vector<8x64xf32>,
    %189 = tpu.concatenate %183, %186 in 1 : vector<8x64xf32>, vector<8x64xf32> -> vector<8x128xf32>
    %190 = arith.truncf %189 : vector<8x128xf32> to vector<8x128xbf16>
    %cst_53 = arith.constant dense<0.000000e+00> : vector<8x512xf32>
    %191 = tpu.matmul %190, %12, %cst_53 {dimension_numbers = #tpu.dot_dimension_numbers<[1], [0], [0], [1], [0, 0, 1, 1], [], []>} : vector<8x128xbf16>, vector<128x512xbf16>, vector<8x512xf32> -> vector<8x512xf32>
    %192 = vector.extract_strided_slice %191 {offsets = [0, 0], sizes = [8, 256], strides = [1, 1]} : vector<8x512xf32> to vector<8x256xf32>
    %c32_54 = arith.constant 32 : index
    %c0_55 = arith.constant 0 : index
    %193 = vector.load %arg13[%c32_54, %c0_55] : memref<64x256xf32, #tpu.memory_space<vmem>>, vector<8x256xf32>
    %194 = arith.addf %192, %193 : vector<8x256xf32>
    %195 = vector.extract_strided_slice %191 {offsets = [0, 256], sizes = [8, 256], strides = [1, 1]} : vector<8x512xf32> to vector<8x256xf32>
    %c24_56 = arith.constant 24 : index
    %c0_57 = arith.constant 0 : index
    %196 = vector.load %arg14[%c24_56, %c0_57] : memref<64x256xf32, #tpu.memory_space<vmem>>, vector<8x256xf32>
    %197 = arith.addf %195, %196 : vector<8x256xf32>
    %198 = vector.extract_strided_slice %194 {offsets = [0, 0], sizes = [8, 192], strides = [1, 1]} : vector<8x256xf32> to vector<8x192xf32>
    %199 = arith.negf %198 : vector<8x192xf32>
    %200 = math.exp %199 : vector<8x192xf32>
    %cst_58 = arith.constant 1.000000e+00 : f32
    %201 = vector.broadcast %cst_58 : f32 to vector<8x192xf32>
    %202 = arith.addf %201, %200 : vector<8x192xf32>
    %203 = arith.divf %201, %202 : vector<8x192xf32>
    %204 = vector.extract_strided_slice %194 {offsets = [0, 192], sizes = [8, 64], strides = [1, 1]} : vector<8x256xf32> to vector<8x64xf32>
    %205 = math.tanh %204 : vector<8x64xf32>
    %206 = vector.extract_strided_slice %197 {offsets = [0, 0], sizes = [8, 192], strides = [1, 1]} : vector<8x256xf32> to vector<8x192xf32>
    %207 = arith.negf %206 : vector<8x192xf32>
    %208 = math.exp %207 : vector<8x192xf32>
    %cst_59 = arith.constant 1.000000e+00 : f32
    %209 = vector.broadcast %cst_59 : f32 to vector<8x192xf32>
    %210 = arith.addf %209, %208 : vector<8x192xf32>
    %211 = arith.divf %209, %210 : vector<8x192xf32>
    %212 = vector.extract_strided_slice %197 {offsets = [0, 192], sizes = [8, 64], strides = [1, 1]} : vector<8x256xf32> to vector<8x64xf32>
    %213 = math.tanh %212 : vector<8x64xf32>
    %214 = vector.extract_strided_slice %203 {offsets = [0, 64], sizes = [8, 64], strides = [1, 1]} : vector<8x192xf32> to vector<8x64xf32>
    %215 = arith.mulf %214, %175 : vector<8x64xf32>
    %216 = vector.extract_strided_slice %203 {offsets = [0, 0], sizes = [8, 64], strides = [1, 1]} : vector<8x192xf32> to vector<8x64xf32>
    %217 = arith.mulf %216, %205 : vector<8x64xf32>
    %218 = arith.addf %215, %217 : vector<8x64xf32>
    %219 = vector.extract_strided_slice %211 {offsets = [0, 64], sizes = [8, 64], strides = [1, 1]} : vector<8x192xf32> to vector<8x64xf32>
    %220 = arith.mulf %219, %180 : vector<8x64xf32>
    %221 = vector.extract_strided_slice %211 {offsets = [0, 0], sizes = [8, 64], strides = [1, 1]} : vector<8x192xf32> to vector<8x64xf32>
    %222 = arith.mulf %221, %213 : vector<8x64xf32>
    %223 = arith.addf %220, %222 : vector<8x64xf32>
    %224 = vector.extract_strided_slice %203 {offsets = [0, 128], sizes = [8, 64], strides = [1, 1]} : vector<8x192xf32> to vector<8x64xf32>
    %225 = math.tanh %218 : vector<8x64xf32>
    %226 = arith.mulf %224, %225 : vector<8x64xf32>
    %227 = vector.extract_strided_slice %211 {offsets = [0, 128], sizes = [8, 64], strides = [1, 1]} : vector<8x192xf32> to vector<8x64xf32>
    %228 = math.tanh %223 : vector<8x64xf32>
    %229 = arith.mulf %227, %228 : vector<8x64xf32>
    %c32_60 = arith.constant 32 : index
    %c0_61 = arith.constant 0 : index
    %230 = vector.load %arg15[%c32_60, %c0_61] : memref<64x64xf32, #tpu.memory_space<vmem>>, vector<8x64xf32>
    tpu.vector_store %arg15[%c32_60, %c0_61], %226 {strides = array<i32>} : memref<64x64xf32, #tpu.memory_space<vmem>>, vector<8x64xf32>,
    %c24_62 = arith.constant 24 : index
    %c0_63 = arith.constant 0 : index
    %231 = vector.load %arg16[%c24_62, %c0_63] : memref<64x64xf32, #tpu.memory_space<vmem>>, vector<8x64xf32>
    tpu.vector_store %arg16[%c24_62, %c0_63], %229 {strides = array<i32>} : memref<64x64xf32, #tpu.memory_space<vmem>>, vector<8x64xf32>,
    %232 = tpu.concatenate %226, %229 in 1 : vector<8x64xf32>, vector<8x64xf32> -> vector<8x128xf32>
    %233 = arith.truncf %232 : vector<8x128xf32> to vector<8x128xbf16>
    %cst_64 = arith.constant dense<0.000000e+00> : vector<8x512xf32>
    %234 = tpu.matmul %233, %12, %cst_64 {dimension_numbers = #tpu.dot_dimension_numbers<[1], [0], [0], [1], [0, 0, 1, 1], [], []>} : vector<8x128xbf16>, vector<128x512xbf16>, vector<8x512xf32> -> vector<8x512xf32>
    %235 = vector.extract_strided_slice %234 {offsets = [0, 0], sizes = [8, 256], strides = [1, 1]} : vector<8x512xf32> to vector<8x256xf32>
    %c40_65 = arith.constant 40 : index
    %c0_66 = arith.constant 0 : index
    %236 = vector.load %arg13[%c40_65, %c0_66] : memref<64x256xf32, #tpu.memory_space<vmem>>, vector<8x256xf32>
    %237 = arith.addf %235, %236 : vector<8x256xf32>
    %238 = vector.extract_strided_slice %234 {offsets = [0, 256], sizes = [8, 256], strides = [1, 1]} : vector<8x512xf32> to vector<8x256xf32>
    %c16_67 = arith.constant 16 : index
    %c0_68 = arith.constant 0 : index
    %239 = vector.load %arg14[%c16_67, %c0_68] : memref<64x256xf32, #tpu.memory_space<vmem>>, vector<8x256xf32>
    %240 = arith.addf %238, %239 : vector<8x256xf32>
    %241 = vector.extract_strided_slice %237 {offsets = [0, 0], sizes = [8, 192], strides = [1, 1]} : vector<8x256xf32> to vector<8x192xf32>
    %242 = arith.negf %241 : vector<8x192xf32>
    %243 = math.exp %242 : vector<8x192xf32>
    %cst_69 = arith.constant 1.000000e+00 : f32
    %244 = vector.broadcast %cst_69 : f32 to vector<8x192xf32>
    %245 = arith.addf %244, %243 : vector<8x192xf32>
    %246 = arith.divf %244, %245 : vector<8x192xf32>
    %247 = vector.extract_strided_slice %237 {offsets = [0, 192], sizes = [8, 64], strides = [1, 1]} : vector<8x256xf32> to vector<8x64xf32>
    %248 = math.tanh %247 : vector<8x64xf32>
    %249 = vector.extract_strided_slice %240 {offsets = [0, 0], sizes = [8, 192], strides = [1, 1]} : vector<8x256xf32> to vector<8x192xf32>
    %250 = arith.negf %249 : vector<8x192xf32>
    %251 = math.exp %250 : vector<8x192xf32>
    %cst_70 = arith.constant 1.000000e+00 : f32
    %252 = vector.broadcast %cst_70 : f32 to vector<8x192xf32>
    %253 = arith.addf %252, %251 : vector<8x192xf32>
    %254 = arith.divf %252, %253 : vector<8x192xf32>
    %255 = vector.extract_strided_slice %240 {offsets = [0, 192], sizes = [8, 64], strides = [1, 1]} : vector<8x256xf32> to vector<8x64xf32>
    %256 = math.tanh %255 : vector<8x64xf32>
    %257 = vector.extract_strided_slice %246 {offsets = [0, 64], sizes = [8, 64], strides = [1, 1]} : vector<8x192xf32> to vector<8x64xf32>
    %258 = arith.mulf %257, %218 : vector<8x64xf32>
    %259 = vector.extract_strided_slice %246 {offsets = [0, 0], sizes = [8, 64], strides = [1, 1]} : vector<8x192xf32> to vector<8x64xf32>
    %260 = arith.mulf %259, %248 : vector<8x64xf32>
    %261 = arith.addf %258, %260 : vector<8x64xf32>
    %262 = vector.extract_strided_slice %254 {offsets = [0, 64], sizes = [8, 64], strides = [1, 1]} : vector<8x192xf32> to vector<8x64xf32>
    %263 = arith.mulf %262, %223 : vector<8x64xf32>
    %264 = vector.extract_strided_slice %254 {offsets = [0, 0], sizes = [8, 64], strides = [1, 1]} : vector<8x192xf32> to vector<8x64xf32>
    %265 = arith.mulf %264, %256 : vector<8x64xf32>
    %266 = arith.addf %263, %265 : vector<8x64xf32>
    %267 = vector.extract_strided_slice %246 {offsets = [0, 128], sizes = [8, 64], strides = [1, 1]} : vector<8x192xf32> to vector<8x64xf32>
    %268 = math.tanh %261 : vector<8x64xf32>
    %269 = arith.mulf %267, %268 : vector<8x64xf32>
    %270 = vector.extract_strided_slice %254 {offsets = [0, 128], sizes = [8, 64], strides = [1, 1]} : vector<8x192xf32> to vector<8x64xf32>
    %271 = math.tanh %266 : vector<8x64xf32>
    %272 = arith.mulf %270, %271 : vector<8x64xf32>
    %c40_71 = arith.constant 40 : index
    %c0_72 = arith.constant 0 : index
    %273 = vector.load %arg15[%c40_71, %c0_72] : memref<64x64xf32, #tpu.memory_space<vmem>>, vector<8x64xf32>
    tpu.vector_store %arg15[%c40_71, %c0_72], %269 {strides = array<i32>} : memref<64x64xf32, #tpu.memory_space<vmem>>, vector<8x64xf32>,
    %c16_73 = arith.constant 16 : index
    %c0_74 = arith.constant 0 : index
    %274 = vector.load %arg16[%c16_73, %c0_74] : memref<64x64xf32, #tpu.memory_space<vmem>>, vector<8x64xf32>
    tpu.vector_store %arg16[%c16_73, %c0_74], %272 {strides = array<i32>} : memref<64x64xf32, #tpu.memory_space<vmem>>, vector<8x64xf32>,
    %275 = tpu.concatenate %269, %272 in 1 : vector<8x64xf32>, vector<8x64xf32> -> vector<8x128xf32>
    %276 = arith.truncf %275 : vector<8x128xf32> to vector<8x128xbf16>
    %cst_75 = arith.constant dense<0.000000e+00> : vector<8x512xf32>
    %277 = tpu.matmul %276, %12, %cst_75 {dimension_numbers = #tpu.dot_dimension_numbers<[1], [0], [0], [1], [0, 0, 1, 1], [], []>} : vector<8x128xbf16>, vector<128x512xbf16>, vector<8x512xf32> -> vector<8x512xf32>
    %278 = vector.extract_strided_slice %277 {offsets = [0, 0], sizes = [8, 256], strides = [1, 1]} : vector<8x512xf32> to vector<8x256xf32>
    %c48_76 = arith.constant 48 : index
    %c0_77 = arith.constant 0 : index
    %279 = vector.load %arg13[%c48_76, %c0_77] : memref<64x256xf32, #tpu.memory_space<vmem>>, vector<8x256xf32>
    %280 = arith.addf %278, %279 : vector<8x256xf32>
    %281 = vector.extract_strided_slice %277 {offsets = [0, 256], sizes = [8, 256], strides = [1, 1]} : vector<8x512xf32> to vector<8x256xf32>
    %c8_78 = arith.constant 8 : index
    %c0_79 = arith.constant 0 : index
    %282 = vector.load %arg14[%c8_78, %c0_79] : memref<64x256xf32, #tpu.memory_space<vmem>>, vector<8x256xf32>
    %283 = arith.addf %281, %282 : vector<8x256xf32>
    %284 = vector.extract_strided_slice %280 {offsets = [0, 0], sizes = [8, 192], strides = [1, 1]} : vector<8x256xf32> to vector<8x192xf32>
    %285 = arith.negf %284 : vector<8x192xf32>
    %286 = math.exp %285 : vector<8x192xf32>
    %cst_80 = arith.constant 1.000000e+00 : f32
    %287 = vector.broadcast %cst_80 : f32 to vector<8x192xf32>
    %288 = arith.addf %287, %286 : vector<8x192xf32>
    %289 = arith.divf %287, %288 : vector<8x192xf32>
    %290 = vector.extract_strided_slice %280 {offsets = [0, 192], sizes = [8, 64], strides = [1, 1]} : vector<8x256xf32> to vector<8x64xf32>
    %291 = math.tanh %290 : vector<8x64xf32>
    %292 = vector.extract_strided_slice %283 {offsets = [0, 0], sizes = [8, 192], strides = [1, 1]} : vector<8x256xf32> to vector<8x192xf32>
    %293 = arith.negf %292 : vector<8x192xf32>
    %294 = math.exp %293 : vector<8x192xf32>
    %cst_81 = arith.constant 1.000000e+00 : f32
    %295 = vector.broadcast %cst_81 : f32 to vector<8x192xf32>
    %296 = arith.addf %295, %294 : vector<8x192xf32>
    %297 = arith.divf %295, %296 : vector<8x192xf32>
    %298 = vector.extract_strided_slice %283 {offsets = [0, 192], sizes = [8, 64], strides = [1, 1]} : vector<8x256xf32> to vector<8x64xf32>
    %299 = math.tanh %298 : vector<8x64xf32>
    %300 = vector.extract_strided_slice %289 {offsets = [0, 64], sizes = [8, 64], strides = [1, 1]} : vector<8x192xf32> to vector<8x64xf32>
    %301 = arith.mulf %300, %261 : vector<8x64xf32>
    %302 = vector.extract_strided_slice %289 {offsets = [0, 0], sizes = [8, 64], strides = [1, 1]} : vector<8x192xf32> to vector<8x64xf32>
    %303 = arith.mulf %302, %291 : vector<8x64xf32>
    %304 = arith.addf %301, %303 : vector<8x64xf32>
    %305 = vector.extract_strided_slice %297 {offsets = [0, 64], sizes = [8, 64], strides = [1, 1]} : vector<8x192xf32> to vector<8x64xf32>
    %306 = arith.mulf %305, %266 : vector<8x64xf32>
    %307 = vector.extract_strided_slice %297 {offsets = [0, 0], sizes = [8, 64], strides = [1, 1]} : vector<8x192xf32> to vector<8x64xf32>
    %308 = arith.mulf %307, %299 : vector<8x64xf32>
    %309 = arith.addf %306, %308 : vector<8x64xf32>
    %310 = vector.extract_strided_slice %289 {offsets = [0, 128], sizes = [8, 64], strides = [1, 1]} : vector<8x192xf32> to vector<8x64xf32>
    %311 = math.tanh %304 : vector<8x64xf32>
    %312 = arith.mulf %310, %311 : vector<8x64xf32>
    %313 = vector.extract_strided_slice %297 {offsets = [0, 128], sizes = [8, 64], strides = [1, 1]} : vector<8x192xf32> to vector<8x64xf32>
    %314 = math.tanh %309 : vector<8x64xf32>
    %315 = arith.mulf %313, %314 : vector<8x64xf32>
    %c48_82 = arith.constant 48 : index
    %c0_83 = arith.constant 0 : index
    %316 = vector.load %arg15[%c48_82, %c0_83] : memref<64x64xf32, #tpu.memory_space<vmem>>, vector<8x64xf32>
    tpu.vector_store %arg15[%c48_82, %c0_83], %312 {strides = array<i32>} : memref<64x64xf32, #tpu.memory_space<vmem>>, vector<8x64xf32>,
    %c8_84 = arith.constant 8 : index
    %c0_85 = arith.constant 0 : index
    %317 = vector.load %arg16[%c8_84, %c0_85] : memref<64x64xf32, #tpu.memory_space<vmem>>, vector<8x64xf32>
    tpu.vector_store %arg16[%c8_84, %c0_85], %315 {strides = array<i32>} : memref<64x64xf32, #tpu.memory_space<vmem>>, vector<8x64xf32>,
    %318 = tpu.concatenate %312, %315 in 1 : vector<8x64xf32>, vector<8x64xf32> -> vector<8x128xf32>
    %319 = arith.truncf %318 : vector<8x128xf32> to vector<8x128xbf16>
    %cst_86 = arith.constant dense<0.000000e+00> : vector<8x512xf32>
    %320 = tpu.matmul %319, %12, %cst_86 {dimension_numbers = #tpu.dot_dimension_numbers<[1], [0], [0], [1], [0, 0, 1, 1], [], []>} : vector<8x128xbf16>, vector<128x512xbf16>, vector<8x512xf32> -> vector<8x512xf32>
    %321 = vector.extract_strided_slice %320 {offsets = [0, 0], sizes = [8, 256], strides = [1, 1]} : vector<8x512xf32> to vector<8x256xf32>
    %c56_87 = arith.constant 56 : index
    %c0_88 = arith.constant 0 : index
    %322 = vector.load %arg13[%c56_87, %c0_88] : memref<64x256xf32, #tpu.memory_space<vmem>>, vector<8x256xf32>
    %323 = arith.addf %321, %322 : vector<8x256xf32>
    %324 = vector.extract_strided_slice %320 {offsets = [0, 256], sizes = [8, 256], strides = [1, 1]} : vector<8x512xf32> to vector<8x256xf32>
    %c0_89 = arith.constant 0 : index
    %c0_90 = arith.constant 0 : index
    %325 = vector.load %arg14[%c0_89, %c0_90] : memref<64x256xf32, #tpu.memory_space<vmem>>, vector<8x256xf32>
    %326 = arith.addf %324, %325 : vector<8x256xf32>
    %327 = vector.extract_strided_slice %323 {offsets = [0, 0], sizes = [8, 192], strides = [1, 1]} : vector<8x256xf32> to vector<8x192xf32>
    %328 = arith.negf %327 : vector<8x192xf32>
    %329 = math.exp %328 : vector<8x192xf32>
    %cst_91 = arith.constant 1.000000e+00 : f32
    %330 = vector.broadcast %cst_91 : f32 to vector<8x192xf32>
    %331 = arith.addf %330, %329 : vector<8x192xf32>
    %332 = arith.divf %330, %331 : vector<8x192xf32>
    %333 = vector.extract_strided_slice %323 {offsets = [0, 192], sizes = [8, 64], strides = [1, 1]} : vector<8x256xf32> to vector<8x64xf32>
    %334 = math.tanh %333 : vector<8x64xf32>
    %335 = vector.extract_strided_slice %326 {offsets = [0, 0], sizes = [8, 192], strides = [1, 1]} : vector<8x256xf32> to vector<8x192xf32>
    %336 = arith.negf %335 : vector<8x192xf32>
    %337 = math.exp %336 : vector<8x192xf32>
    %cst_92 = arith.constant 1.000000e+00 : f32
    %338 = vector.broadcast %cst_92 : f32 to vector<8x192xf32>
    %339 = arith.addf %338, %337 : vector<8x192xf32>
    %340 = arith.divf %338, %339 : vector<8x192xf32>
    %341 = vector.extract_strided_slice %326 {offsets = [0, 192], sizes = [8, 64], strides = [1, 1]} : vector<8x256xf32> to vector<8x64xf32>
    %342 = math.tanh %341 : vector<8x64xf32>
    %343 = vector.extract_strided_slice %332 {offsets = [0, 64], sizes = [8, 64], strides = [1, 1]} : vector<8x192xf32> to vector<8x64xf32>
    %344 = arith.mulf %343, %304 : vector<8x64xf32>
    %345 = vector.extract_strided_slice %332 {offsets = [0, 0], sizes = [8, 64], strides = [1, 1]} : vector<8x192xf32> to vector<8x64xf32>
    %346 = arith.mulf %345, %334 : vector<8x64xf32>
    %347 = arith.addf %344, %346 : vector<8x64xf32>
    %348 = vector.extract_strided_slice %340 {offsets = [0, 64], sizes = [8, 64], strides = [1, 1]} : vector<8x192xf32> to vector<8x64xf32>
    %349 = arith.mulf %348, %309 : vector<8x64xf32>
    %350 = vector.extract_strided_slice %340 {offsets = [0, 0], sizes = [8, 64], strides = [1, 1]} : vector<8x192xf32> to vector<8x64xf32>
    %351 = arith.mulf %350, %342 : vector<8x64xf32>
    %352 = arith.addf %349, %351 : vector<8x64xf32>
    %353 = vector.extract_strided_slice %332 {offsets = [0, 128], sizes = [8, 64], strides = [1, 1]} : vector<8x192xf32> to vector<8x64xf32>
    %354 = math.tanh %347 : vector<8x64xf32>
    %355 = arith.mulf %353, %354 : vector<8x64xf32>
    %356 = vector.extract_strided_slice %340 {offsets = [0, 128], sizes = [8, 64], strides = [1, 1]} : vector<8x192xf32> to vector<8x64xf32>
    %357 = math.tanh %352 : vector<8x64xf32>
    %358 = arith.mulf %356, %357 : vector<8x64xf32>
    %c56_93 = arith.constant 56 : index
    %c0_94 = arith.constant 0 : index
    %359 = vector.load %arg15[%c56_93, %c0_94] : memref<64x64xf32, #tpu.memory_space<vmem>>, vector<8x64xf32>
    tpu.vector_store %arg15[%c56_93, %c0_94], %355 {strides = array<i32>} : memref<64x64xf32, #tpu.memory_space<vmem>>, vector<8x64xf32>,
    %c0_95 = arith.constant 0 : index
    %c0_96 = arith.constant 0 : index
    %360 = vector.load %arg16[%c0_95, %c0_96] : memref<64x64xf32, #tpu.memory_space<vmem>>, vector<8x64xf32>
    tpu.vector_store %arg16[%c0_95, %c0_96], %358 {strides = array<i32>} : memref<64x64xf32, #tpu.memory_space<vmem>>, vector<8x64xf32>,
    %c0_97 = arith.constant 0 : index
    %c0_98 = arith.constant 0 : index
    %361 = vector.load %arg15[%c0_97, %c0_98] : memref<64x64xf32, #tpu.memory_space<vmem>>, vector<64x64xf32>
    %c0_99 = arith.constant 0 : index
    %c0_100 = arith.constant 0 : index
    %362 = vector.load %arg16[%c0_99, %c0_100] : memref<64x64xf32, #tpu.memory_space<vmem>>, vector<64x64xf32>
    %363 = arith.truncf %361 : vector<64x64xf32> to vector<64x64xbf16>
    %c0_101 = arith.constant 0 : index
    %c0_102 = arith.constant 0 : index
    %364 = vector.load %arg5[%c0_101, %c0_102] : memref<64x64xbf16, #tpu.memory_space<vmem>>, vector<64x64xbf16>
    %cst_103 = arith.constant dense<0.000000e+00> : vector<64x64xf32>
    %365 = tpu.matmul %363, %364, %cst_103 {dimension_numbers = #tpu.dot_dimension_numbers<[1], [0], [0], [1], [0, 0, 1, 1], [], []>} : vector<64x64xbf16>, vector<64x64xbf16>, vector<64x64xf32> -> vector<64x64xf32>
    %366 = arith.truncf %362 : vector<64x64xf32> to vector<64x64xbf16>
    %c0_104 = arith.constant 0 : index
    %c0_105 = arith.constant 0 : index
    %367 = vector.load %arg6[%c0_104, %c0_105] : memref<64x64xbf16, #tpu.memory_space<vmem>>, vector<64x64xbf16>
    %cst_106 = arith.constant dense<0.000000e+00> : vector<64x64xf32>
    %368 = tpu.matmul %366, %367, %cst_106 {dimension_numbers = #tpu.dot_dimension_numbers<[1], [0], [0], [1], [0, 0, 1, 1], [], []>} : vector<64x64xbf16>, vector<64x64xbf16>, vector<64x64xf32> -> vector<64x64xf32>
    %369 = arith.addf %365, %368 : vector<64x64xf32>
    %c0_107 = arith.constant 0 : index
    %c0_108 = arith.constant 0 : index
    %370 = vector.load %arg7[%c0_107, %c0_108] : memref<1x64xf32, #tpu.memory_space<vmem>>, vector<1x64xf32>
    %371 = vector.broadcast %370 : vector<1x64xf32> to vector<64x64xf32>
    %372 = arith.addf %369, %371 : vector<64x64xf32>
    %373 = math.tanh %372 : vector<64x64xf32>
    %c0_109 = arith.constant 0 : index
    %c0_110 = arith.constant 0 : index
    %374 = vector.load %arg8[%c0_109, %c0_110] : memref<1x64xf32, #tpu.memory_space<vmem>>, vector<1x64xf32>
    %375 = vector.broadcast %374 : vector<1x64xf32> to vector<64x64xf32>
    %376 = arith.mulf %373, %375 : vector<64x64xf32>
    %cst_111 = arith.constant dense<0.000000e+00> : vector<64xf32>
    %377 = vector.multi_reduction <add>, %376, %cst_111 [1] : vector<64x64xf32> to vector<64xf32>
    %378 = vector.shape_cast %377 : vector<64xf32> to vector<64x1xf32>
    %379 = vector.extract_strided_slice %378 {offsets = [0, 0], sizes = [8, 1], strides = [1, 1]} : vector<64x1xf32> to vector<8x1xf32>
    %380 = vector.extract_strided_slice %378 {offsets = [8, 0], sizes = [8, 1], strides = [1, 1]} : vector<64x1xf32> to vector<8x1xf32>
    %381 = vector.extract_strided_slice %378 {offsets = [16, 0], sizes = [8, 1], strides = [1, 1]} : vector<64x1xf32> to vector<8x1xf32>
    %382 = vector.extract_strided_slice %378 {offsets = [24, 0], sizes = [8, 1], strides = [1, 1]} : vector<64x1xf32> to vector<8x1xf32>
    %383 = vector.extract_strided_slice %378 {offsets = [32, 0], sizes = [8, 1], strides = [1, 1]} : vector<64x1xf32> to vector<8x1xf32>
    %384 = vector.extract_strided_slice %378 {offsets = [40, 0], sizes = [8, 1], strides = [1, 1]} : vector<64x1xf32> to vector<8x1xf32>
    %385 = vector.extract_strided_slice %378 {offsets = [48, 0], sizes = [8, 1], strides = [1, 1]} : vector<64x1xf32> to vector<8x1xf32>
    %386 = vector.extract_strided_slice %378 {offsets = [56, 0], sizes = [8, 1], strides = [1, 1]} : vector<64x1xf32> to vector<8x1xf32>
    %387 = arith.maximumf %379, %380 : vector<8x1xf32>
    %388 = arith.maximumf %381, %382 : vector<8x1xf32>
    %389 = arith.maximumf %383, %384 : vector<8x1xf32>
    %390 = arith.maximumf %385, %386 : vector<8x1xf32>
    %391 = arith.maximumf %387, %388 : vector<8x1xf32>
    %392 = arith.maximumf %389, %390 : vector<8x1xf32>
    %393 = arith.maximumf %391, %392 : vector<8x1xf32>
    %394 = arith.subf %379, %393 : vector<8x1xf32>
    %395 = math.exp %394 : vector<8x1xf32>
    %396 = arith.subf %380, %393 : vector<8x1xf32>
    %397 = math.exp %396 : vector<8x1xf32>
    %398 = arith.subf %381, %393 : vector<8x1xf32>
    %399 = math.exp %398 : vector<8x1xf32>
    %400 = arith.subf %382, %393 : vector<8x1xf32>
    %401 = math.exp %400 : vector<8x1xf32>
    %402 = arith.subf %383, %393 : vector<8x1xf32>
    %403 = math.exp %402 : vector<8x1xf32>
    %404 = arith.subf %384, %393 : vector<8x1xf32>
    %405 = math.exp %404 : vector<8x1xf32>
    %406 = arith.subf %385, %393 : vector<8x1xf32>
    %407 = math.exp %406 : vector<8x1xf32>
    %408 = arith.subf %386, %393 : vector<8x1xf32>
    %409 = math.exp %408 : vector<8x1xf32>
    %410 = arith.addf %395, %397 : vector<8x1xf32>
    %411 = arith.addf %399, %401 : vector<8x1xf32>
    %412 = arith.addf %403, %405 : vector<8x1xf32>
    %413 = arith.addf %407, %409 : vector<8x1xf32>
    %414 = arith.addf %410, %411 : vector<8x1xf32>
    %415 = arith.addf %412, %413 : vector<8x1xf32>
    %416 = arith.addf %414, %415 : vector<8x1xf32>
    %417 = tpu.reciprocal %416 {approx = true} : vector<8x1xf32> -> vector<8x1xf32>
    %418 = vector.extract_strided_slice %361 {offsets = [0, 0], sizes = [8, 64], strides = [1, 1]} : vector<64x64xf32> to vector<8x64xf32>
    %419 = vector.broadcast %395 : vector<8x1xf32> to vector<8x64xf32>
    %420 = arith.mulf %419, %418 : vector<8x64xf32>
    %421 = vector.extract_strided_slice %361 {offsets = [8, 0], sizes = [8, 64], strides = [1, 1]} : vector<64x64xf32> to vector<8x64xf32>
    %422 = vector.broadcast %397 : vector<8x1xf32> to vector<8x64xf32>
    %423 = arith.mulf %422, %421 : vector<8x64xf32>
    %424 = vector.extract_strided_slice %361 {offsets = [16, 0], sizes = [8, 64], strides = [1, 1]} : vector<64x64xf32> to vector<8x64xf32>
    %425 = vector.broadcast %399 : vector<8x1xf32> to vector<8x64xf32>
    %426 = arith.mulf %425, %424 : vector<8x64xf32>
    %427 = vector.extract_strided_slice %361 {offsets = [24, 0], sizes = [8, 64], strides = [1, 1]} : vector<64x64xf32> to vector<8x64xf32>
    %428 = vector.broadcast %401 : vector<8x1xf32> to vector<8x64xf32>
    %429 = arith.mulf %428, %427 : vector<8x64xf32>
    %430 = vector.extract_strided_slice %361 {offsets = [32, 0], sizes = [8, 64], strides = [1, 1]} : vector<64x64xf32> to vector<8x64xf32>
    %431 = vector.broadcast %403 : vector<8x1xf32> to vector<8x64xf32>
    %432 = arith.mulf %431, %430 : vector<8x64xf32>
    %433 = vector.extract_strided_slice %361 {offsets = [40, 0], sizes = [8, 64], strides = [1, 1]} : vector<64x64xf32> to vector<8x64xf32>
    %434 = vector.broadcast %405 : vector<8x1xf32> to vector<8x64xf32>
    %435 = arith.mulf %434, %433 : vector<8x64xf32>
    %436 = vector.extract_strided_slice %361 {offsets = [48, 0], sizes = [8, 64], strides = [1, 1]} : vector<64x64xf32> to vector<8x64xf32>
    %437 = vector.broadcast %407 : vector<8x1xf32> to vector<8x64xf32>
    %438 = arith.mulf %437, %436 : vector<8x64xf32>
    %439 = vector.extract_strided_slice %361 {offsets = [56, 0], sizes = [8, 64], strides = [1, 1]} : vector<64x64xf32> to vector<8x64xf32>
    %440 = vector.broadcast %409 : vector<8x1xf32> to vector<8x64xf32>
    %441 = arith.mulf %440, %439 : vector<8x64xf32>
    %442 = arith.addf %420, %423 : vector<8x64xf32>
    %443 = arith.addf %426, %429 : vector<8x64xf32>
    %444 = arith.addf %432, %435 : vector<8x64xf32>
    %445 = arith.addf %438, %441 : vector<8x64xf32>
    %446 = arith.addf %442, %443 : vector<8x64xf32>
    %447 = arith.addf %444, %445 : vector<8x64xf32>
    %448 = arith.addf %446, %447 : vector<8x64xf32>
    %449 = vector.broadcast %417 : vector<8x1xf32> to vector<8x64xf32>
    %450 = arith.mulf %448, %449 : vector<8x64xf32>
    %451 = vector.extract_strided_slice %362 {offsets = [0, 0], sizes = [8, 64], strides = [1, 1]} : vector<64x64xf32> to vector<8x64xf32>
    %452 = vector.broadcast %395 : vector<8x1xf32> to vector<8x64xf32>
    %453 = arith.mulf %452, %451 : vector<8x64xf32>
    %454 = vector.extract_strided_slice %362 {offsets = [8, 0], sizes = [8, 64], strides = [1, 1]} : vector<64x64xf32> to vector<8x64xf32>
    %455 = vector.broadcast %397 : vector<8x1xf32> to vector<8x64xf32>
    %456 = arith.mulf %455, %454 : vector<8x64xf32>
    %457 = vector.extract_strided_slice %362 {offsets = [16, 0], sizes = [8, 64], strides = [1, 1]} : vector<64x64xf32> to vector<8x64xf32>
    %458 = vector.broadcast %399 : vector<8x1xf32> to vector<8x64xf32>
    %459 = arith.mulf %458, %457 : vector<8x64xf32>
    %460 = vector.extract_strided_slice %362 {offsets = [24, 0], sizes = [8, 64], strides = [1, 1]} : vector<64x64xf32> to vector<8x64xf32>
    %461 = vector.broadcast %401 : vector<8x1xf32> to vector<8x64xf32>
    %462 = arith.mulf %461, %460 : vector<8x64xf32>
    %463 = vector.extract_strided_slice %362 {offsets = [32, 0], sizes = [8, 64], strides = [1, 1]} : vector<64x64xf32> to vector<8x64xf32>
    %464 = vector.broadcast %403 : vector<8x1xf32> to vector<8x64xf32>
    %465 = arith.mulf %464, %463 : vector<8x64xf32>
    %466 = vector.extract_strided_slice %362 {offsets = [40, 0], sizes = [8, 64], strides = [1, 1]} : vector<64x64xf32> to vector<8x64xf32>
    %467 = vector.broadcast %405 : vector<8x1xf32> to vector<8x64xf32>
    %468 = arith.mulf %467, %466 : vector<8x64xf32>
    %469 = vector.extract_strided_slice %362 {offsets = [48, 0], sizes = [8, 64], strides = [1, 1]} : vector<64x64xf32> to vector<8x64xf32>
    %470 = vector.broadcast %407 : vector<8x1xf32> to vector<8x64xf32>
    %471 = arith.mulf %470, %469 : vector<8x64xf32>
    %472 = vector.extract_strided_slice %362 {offsets = [56, 0], sizes = [8, 64], strides = [1, 1]} : vector<64x64xf32> to vector<8x64xf32>
    %473 = vector.broadcast %409 : vector<8x1xf32> to vector<8x64xf32>
    %474 = arith.mulf %473, %472 : vector<8x64xf32>
    %475 = arith.addf %453, %456 : vector<8x64xf32>
    %476 = arith.addf %459, %462 : vector<8x64xf32>
    %477 = arith.addf %465, %468 : vector<8x64xf32>
    %478 = arith.addf %471, %474 : vector<8x64xf32>
    %479 = arith.addf %475, %476 : vector<8x64xf32>
    %480 = arith.addf %477, %478 : vector<8x64xf32>
    %481 = arith.addf %479, %480 : vector<8x64xf32>
    %482 = vector.broadcast %417 : vector<8x1xf32> to vector<8x64xf32>
    %483 = arith.mulf %481, %482 : vector<8x64xf32>
    %c0_112 = arith.constant 0 : index
    %c0_113 = arith.constant 0 : index
    %484 = vector.load %arg9[%c0_112, %c0_113] : memref<64x5xf32, #tpu.memory_space<vmem>>, vector<64x5xf32>
    %cst_114 = arith.constant dense<0.000000e+00> : vector<8x5xf32>
    %485 = tpu.matmul %450, %484, %cst_114 {dimension_numbers = #tpu.dot_dimension_numbers<[1], [0], [0], [1], [0, 0, 1, 1], [], []>} : vector<8x64xf32>, vector<64x5xf32>, vector<8x5xf32> -> vector<8x5xf32>
    %c0_115 = arith.constant 0 : index
    %c0_116 = arith.constant 0 : index
    %486 = vector.load %arg10[%c0_115, %c0_116] : memref<64x5xf32, #tpu.memory_space<vmem>>, vector<64x5xf32>
    %cst_117 = arith.constant dense<0.000000e+00> : vector<8x5xf32>
    %487 = tpu.matmul %483, %486, %cst_117 {dimension_numbers = #tpu.dot_dimension_numbers<[1], [0], [0], [1], [0, 0, 1, 1], [], []>} : vector<8x64xf32>, vector<64x5xf32>, vector<8x5xf32> -> vector<8x5xf32>
    %488 = arith.addf %485, %487 : vector<8x5xf32>
    %c0_118 = arith.constant 0 : index
    %c0_119 = arith.constant 0 : index
    %489 = vector.load %arg11[%c0_118, %c0_119] : memref<1x5xf32, #tpu.memory_space<vmem>>, vector<1x5xf32>
    %490 = vector.broadcast %489 : vector<1x5xf32> to vector<8x5xf32>
    %491 = arith.addf %488, %490 : vector<8x5xf32>
    %c0_120 = arith.constant 0 : index
    %c0_121 = arith.constant 0 : index
    %492 = vector.load %arg12[%c0_120, %c0_121] : memref<8x5xf32, #tpu.memory_space<vmem>>, vector<8x5xf32>
    tpu.vector_store %arg12[%c0_120, %c0_121], %491 {strides = array<i32>} : memref<8x5xf32, #tpu.memory_space<vmem>>, vector<8x5xf32>,
    return
  }
  func.func @transform_0(%arg0: i32) -> (i32, i32, i32) {
    %c0_i32 = arith.constant 0 : i32
    %c0_i32_0 = arith.constant 0 : i32
    %c0_i32_1 = arith.constant 0 : i32
    return %c0_i32, %arg0, %c0_i32_0 : i32, i32, i32
  }
  func.func @transform_1(%arg0: i32) -> (i32, i32) {
    %c0_i32 = arith.constant 0 : i32
    %c0_i32_0 = arith.constant 0 : i32
    %c0_i32_1 = arith.constant 0 : i32
    return %c0_i32, %c0_i32_0 : i32, i32
  }
  func.func @transform_2(%arg0: i32) -> (i32, i32) {
    %c0_i32 = arith.constant 0 : i32
    %c0_i32_0 = arith.constant 0 : i32
    %c0_i32_1 = arith.constant 0 : i32
    return %c0_i32, %c0_i32_0 : i32, i32
  }
  func.func @transform_3(%arg0: i32) -> (i32, i32) {
    %c0_i32 = arith.constant 0 : i32
    %c0_i32_0 = arith.constant 0 : i32
    %c0_i32_1 = arith.constant 0 : i32
    return %c0_i32, %c0_i32_0 : i32, i32
  }
  func.func @transform_4(%arg0: i32) -> (i32, i32) {
    %c0_i32 = arith.constant 0 : i32
    %c0_i32_0 = arith.constant 0 : i32
    %c0_i32_1 = arith.constant 0 : i32
    return %c0_i32, %c0_i32_0 : i32, i32
  }
  func.func @transform_5(%arg0: i32) -> (i32, i32) {
    %c0_i32 = arith.constant 0 : i32
    %c0_i32_0 = arith.constant 0 : i32
    %c0_i32_1 = arith.constant 0 : i32
    return %c0_i32, %c0_i32_0 : i32, i32
  }
  func.func @transform_6(%arg0: i32) -> (i32, i32) {
    %c0_i32 = arith.constant 0 : i32
    %c0_i32_0 = arith.constant 0 : i32
    %c0_i32_1 = arith.constant 0 : i32
    return %c0_i32, %c0_i32_0 : i32, i32
  }
  func.func @transform_7(%arg0: i32) -> (i32, i32) {
    %c0_i32 = arith.constant 0 : i32
    %c0_i32_0 = arith.constant 0 : i32
    %c0_i32_1 = arith.constant 0 : i32
    return %c0_i32, %c0_i32_0 : i32, i32
  }
  func.func @transform_8(%arg0: i32) -> (i32, i32) {
    %c0_i32 = arith.constant 0 : i32
    %c0_i32_0 = arith.constant 0 : i32
    %c0_i32_1 = arith.constant 0 : i32
    return %c0_i32, %c0_i32_0 : i32, i32
  }
  func.func @transform_9(%arg0: i32) -> (i32, i32) {
    %c0_i32 = arith.constant 0 : i32
    %c0_i32_0 = arith.constant 0 : i32
    %c0_i32_1 = arith.constant 0 : i32
    return %c0_i32, %c0_i32_0 : i32, i32
  }
  func.func @transform_10(%arg0: i32) -> (i32, i32) {
    %c0_i32 = arith.constant 0 : i32
    %c0_i32_0 = arith.constant 0 : i32
    %c0_i32_1 = arith.constant 0 : i32
    return %c0_i32, %c0_i32_0 : i32, i32
  }
  func.func @transform_11(%arg0: i32) -> (i32, i32) {
    %c0_i32 = arith.constant 0 : i32
    %c0_i32_0 = arith.constant 0 : i32
    return %arg0, %c0_i32 : i32, i32
  }
}

</mosaic_0001>

<llo_original>
// kernel: tpu_custom_call.1
$region0: #{tpu_custom_call.1}
  #allocation0 [shape = 'u32[]', space=smem, size = 0x4, offset = 0x4, fixed_abs, tag = 'smem constant byte address 0x4 - core index']
  #allocation1 [shape = 'u32[72,128]{1,0:T(1,128)}', space=vmem, size = 0x9000, scoped, tag = 'internal scratch']
  #allocation2 [shape = 'f32[64,256]{1,0:T(8,128)}', space=vmem, size = 0x10000, scoped, tag = 'scratch operand']
  #allocation3 [shape = 'f32[64,256]{1,0:T(8,128)}', space=vmem, size = 0x10000, scoped, tag = 'scratch operand']
  #allocation4 [shape = 'f32[64,64]{1,0:T(8,128)}', space=vmem, size = 0x8000, scoped, tag = 'scratch operand']
  #allocation5 [shape = 'f32[64,64]{1,0:T(8,128)}', space=vmem, size = 0x8000, scoped, tag = 'scratch operand']
  %s0 = inlined_call_operand.vmem [shape: f32[8,8,128], index: 0, kind: input, shape index: {}]
  %s1 = inlined_call_operand.hbm [shape: bf16[128,512], index: 1, kind: input, shape index: {}]
  %s2 = inlined_call_operand.hbm [shape: bf16[128,512], index: 2, kind: input, shape index: {}]
  %s3 = inlined_call_operand.vmem [shape: f32[1,512], index: 3, kind: input, shape index: {}]
  %s4 = inlined_call_operand.vmem [shape: bf16[64,64], index: 4, kind: input, shape index: {}]
  %s5 = inlined_call_operand.vmem [shape: bf16[64,64], index: 5, kind: input, shape index: {}]
  %s6 = inlined_call_operand.vmem [shape: f32[1,64], index: 6, kind: input, shape index: {}]
  %s7 = inlined_call_operand.vmem [shape: f32[1,64], index: 7, kind: input, shape index: {}]
  %s8 = inlined_call_operand.vmem [shape: f32[64,5], index: 8, kind: input, shape index: {}]
  %s9 = inlined_call_operand.vmem [shape: f32[64,5], index: 9, kind: input, shape index: {}]
  %s10 = inlined_call_operand.vmem [shape: f32[1,5], index: 10, kind: input, shape index: {}]
  %s11 = inlined_call_operand.hbm [shape: f32[8,5], index: 11, kind: output, shape index: {}]
  %s12 = sld [smem:[#allocation0]]
  $region62: #{tpu_custom_call.1} parent=0
    _
  %s14 = ssub.s32 1, %s12
  %s15 = scalar_select 0, %s14, %s12
  $region1: #{tpu_custom_call.1} parent=0
    #allocation6 [shape = 'u8[131072]{0}', space=vmem, size = 0x20000, scoped, tag = 'input window, operand 1, single buffered']
    #allocation7 [shape = 's32[1]{0}', space=sflag, size = 0x4, scoped, tag = 'scoped memory for tpu_custom_call.1']
    #allocation8 [shape = 's32[1]{0}', space=sflag, size = 0x4, scoped, tag = 'scoped memory for tpu_custom_call.1']
    #allocation9 [shape = 'u8[131072]{0}', space=vmem, size = 0x20000, scoped, tag = 'input window, operand 2, single buffered']
    #allocation10 [shape = 's32[1]{0}', space=sflag, size = 0x4, scoped, tag = 'scoped memory for tpu_custom_call.1']
    #allocation11 [shape = 'u8[4096]{0}', space=vmem, size = 0x1000, scoped, tag = 'output window, operand 0, single buffered']
    %16 = vsyncpa [#allocation7], 0
    %17 = vsyncpa [#allocation10], 0
    %18 = vsyncpa [#allocation8], 0
    // Predicated region
    $region2: #{tpu_custom_call.1} parent=1 // pred_check
      _
    $region3: #{tpu_custom_call.1} parent=1 // pred_check_branch
      %20 = sbr.rel (0) target = $region5
    $region4: #{tpu_custom_call.1} parent=1 // pred_region
      _
    $region5: #{tpu_custom_call.1} parent=1 // pred_fallthru
      _
    // Predicated region
    $region6: #{tpu_custom_call.1} parent=1 // pred_check
      _
    $region7: #{tpu_custom_call.1} parent=1 // pred_check_branch
      %22 = sbr.rel (0) target = $region9
    $region8: #{tpu_custom_call.1} parent=1 // pred_region
      %24 = vsyncadd [#allocation7], 0
      %s25 = sshll.u32 %s1, 4
      %s26 = int_to_ptr.hbm [resolvable:$true] %s25
      %s27 = sshll.u32 [#allocation6], 4
      %s28 = int_to_ptr.vmem [resolvable:$true] %s27
      %33 = dma.hbm_to_vmem [thread:$0]  %s26, 4096, %s28, [#allocation7], 256, 256, 16
    $region9: #{tpu_custom_call.1} parent=1 // pred_fallthru
      _
    // Predicated region
    $region10: #{tpu_custom_call.1} parent=1 // pred_check
      _
    $region11: #{tpu_custom_call.1} parent=1 // pred_check_branch
      %35 = sbr.rel (0) target = $region13
    $region12: #{tpu_custom_call.1} parent=1 // pred_region
      %37 = vsyncadd [#allocation10], 0
      %s38 = sshll.u32 %s2, 4
      %s39 = int_to_ptr.hbm [resolvable:$true] %s38
      %s40 = sshll.u32 [#allocation9], 4
      %s41 = int_to_ptr.vmem [resolvable:$true] %s40
      %46 = dma.hbm_to_vmem [thread:$0]  %s39, 4096, %s41, [#allocation10], 256, 256, 16
    $region13: #{tpu_custom_call.1} parent=1 // pred_fallthru
      _
    // Predicated region
    $region14: #{tpu_custom_call.1} parent=1 // pred_check
      _
    $region15: #{tpu_custom_call.1} parent=1 // pred_check_branch
      %48 = sbr.rel (0) target = $region17
    $region16: #{tpu_custom_call.1} parent=1 // pred_region
      _
    $region17: #{tpu_custom_call.1} parent=1 // pred_fallthru
      _
    // Predicated region
    $region18: #{tpu_custom_call.1} parent=1 // pred_check
      _
    $region19: #{tpu_custom_call.1} parent=1 // pred_check_branch
      %50 = sbr.rel (0) target = $region21
    $region20: #{tpu_custom_call.1} parent=1 // pred_region
      _
    $region21: #{tpu_custom_call.1} parent=1 // pred_fallthru
      _
    // Predicated region
    $region22: #{tpu_custom_call.1} parent=1 // pred_check
      _
    $region23: #{tpu_custom_call.1} parent=1 // pred_check_branch
      %52 = sbr.rel (0) target = $region25
    $region24: #{tpu_custom_call.1} parent=1 // pred_region
      _
    $region25: #{tpu_custom_call.1} parent=1 // pred_fallthru
      _
    // Predicated region
    $region26: #{tpu_custom_call.1} parent=1 // pred_check
      _
    $region27: #{tpu_custom_call.1} parent=1 // pred_check_branch
      %54 = sbr.rel (0) target = $region29
    $region28: #{tpu_custom_call.1} parent=1 // pred_region
      _
    $region29: #{tpu_custom_call.1} parent=1 // pred_fallthru
      _
    // Predicated region
    $region30: #{tpu_custom_call.1} parent=1 // pred_check
      _
    $region31: #{tpu_custom_call.1} parent=1 // pred_check_branch
      %56 = sbr.rel (0) target = $region33
    $region32: #{tpu_custom_call.1} parent=1 // pred_region
      _
    $region33: #{tpu_custom_call.1} parent=1 // pred_fallthru
      _
    // Predicated region
    $region34: #{tpu_custom_call.1} parent=1 // pred_check
      _
    $region35: #{tpu_custom_call.1} parent=1 // pred_check_branch
      %58 = sbr.rel (0) target = $region37
    $region36: #{tpu_custom_call.1} parent=1 // pred_region
      _
    $region37: #{tpu_custom_call.1} parent=1 // pred_fallthru
      _
    // Predicated region
    $region38: #{tpu_custom_call.1} parent=1 // pred_check
      _
    $region39: #{tpu_custom_call.1} parent=1 // pred_check_branch
      %60 = sbr.rel (0) target = $region41
    $region40: #{tpu_custom_call.1} parent=1 // pred_region
      _
    $region41: #{tpu_custom_call.1} parent=1 // pred_fallthru
      _
    // Predicated region
    $region42: #{tpu_custom_call.1} parent=1 // pred_check
      _
    $region43: #{tpu_custom_call.1} parent=1 // pred_check_branch
      %62 = sbr.rel (0) target = $region45
    $region44: #{tpu_custom_call.1} parent=1 // pred_region
      _
    $region45: #{tpu_custom_call.1} parent=1 // pred_fallthru
      _
    // Predicated region
    $region46: #{tpu_custom_call.1} parent=1 // pred_check
      _
    $region47: #{tpu_custom_call.1} parent=1 // pred_check_branch
      %64 = sbr.rel (0) target = $region49
    $region48: #{tpu_custom_call.1} parent=1 // pred_region
      %66 = dma.done [#allocation7], 4096
    $region49: #{tpu_custom_call.1} parent=1 // pred_fallthru
      _
    // Predicated region
    $region50: #{tpu_custom_call.1} parent=1 // pred_check
      _
    $region51: #{tpu_custom_call.1} parent=1 // pred_check_branch
      %68 = sbr.rel (0) target = $region53
    $region52: #{tpu_custom_call.1} parent=1 // pred_region
      %70 = dma.done [#allocation10], 4096
    $region53: #{tpu_custom_call.1} parent=1 // pred_fallthru
      _
    %v72 = vld [vmem:[%s0] sm:$0xff]
    %v73 = vld [vmem:[%s0 + $0x8] sm:$0xff]
    %v74 = vld [vmem:[%s0 + $0x10] sm:$0xff]
    %v75 = vld [vmem:[%s0 + $0x18] sm:$0xff]
    %v76 = vld [vmem:[%s0 + $0x20] sm:$0xff]
    %v77 = vld [vmem:[%s0 + $0x28] sm:$0xff]
    %v78 = vld [vmem:[%s0 + $0x30] sm:$0xff]
    %v79 = vld [vmem:[%s0 + $0x38] sm:$0xff]
    %v80 = vpack.c.bf16 %v73, %v72
    %v81 = vpack.c.bf16 %v75, %v74
    %v82 = vpack.c.bf16 %v77, %v76
    %v83 = vpack.c.bf16 %v79, %v78
    %v84 = vld [vmem:[#allocation6] sm:$0xff]
    %v85 = vld [vmem:[#allocation6 + $0x8] sm:$0xff]
    %v86 = vld [vmem:[#allocation6 + $0x10] sm:$0xff]
    %v87 = vld [vmem:[#allocation6 + $0x18] sm:$0xff]
    %v88 = vld [vmem:[#allocation6 + $0x20] sm:$0xff]
    %v89 = vld [vmem:[#allocation6 + $0x28] sm:$0xff]
    %v90 = vld [vmem:[#allocation6 + $0x30] sm:$0xff]
    %v91 = vld [vmem:[#allocation6 + $0x38] sm:$0xff]
    %v92 = vld [vmem:[#allocation6 + $0x40] sm:$0xff]
    %v93 = vld [vmem:[#allocation6 + $0x48] sm:$0xff]
    %v94 = vld [vmem:[#allocation6 + $0x50] sm:$0xff]
    %v95 = vld [vmem:[#allocation6 + $0x58] sm:$0xff]
    %v96 = vld [vmem:[#allocation6 + $0x60] sm:$0xff]
    %v97 = vld [vmem:[#allocation6 + $0x68] sm:$0xff]
    %v98 = vld [vmem:[#allocation6 + $0x70] sm:$0xff]
    %v99 = vld [vmem:[#allocation6 + $0x78] sm:$0xff]
    %v100 = vld [vmem:[#allocation6 + $0x80] sm:$0xff]
    %v101 = vld [vmem:[#allocation6 + $0x88] sm:$0xff]
    %v102 = vld [vmem:[#allocation6 + $0x90] sm:$0xff]
    %v103 = vld [vmem:[#allocation6 + $0x98] sm:$0xff]
    %v104 = vld [vmem:[#allocation6 + $0xa0] sm:$0xff]
    %v105 = vld [vmem:[#allocation6 + $0xa8] sm:$0xff]
    %v106 = vld [vmem:[#allocation6 + $0xb0] sm:$0xff]
    %v107 = vld [vmem:[#allocation6 + $0xb8] sm:$0xff]
    %v108 = vld [vmem:[#allocation6 + $0xc0] sm:$0xff]
    %v109 = vld [vmem:[#allocation6 + $0xc8] sm:$0xff]
    %v110 = vld [vmem:[#allocation6 + $0xd0] sm:$0xff]
    %v111 = vld [vmem:[#allocation6 + $0xd8] sm:$0xff]
    %v112 = vld [vmem:[#allocation6 + $0xe0] sm:$0xff]
    %v113 = vld [vmem:[#allocation6 + $0xe8] sm:$0xff]
    %v114 = vld [vmem:[#allocation6 + $0xf0] sm:$0xff]
    %v115 = vld [vmem:[#allocation6 + $0xf8] sm:$0xff]
    %v116 = vld [vmem:[%s3] sm:$0xf]
    %v118 = vperm.slane %v116, 0
    %v119 = vperm.slane %v116, 1
    %v120 = vperm.slane %v116, 2
    %v121 = vperm.slane %v116, 3
    %v158 = vunpack.c.l.b16 %v84
    %v159 = vunpack.c.h.b16 %v84
    %v160 = vunpack.c.l.b16 %v85
    %v161 = vunpack.c.h.b16 %v85
    %v162 = vunpack.c.l.b16 %v86
    %v163 = vunpack.c.h.b16 %v86
    %v164 = vunpack.c.l.b16 %v87
    %v165 = vunpack.c.h.b16 %v87
    %v166 = vunpack.c.l.b16 %v88
    %v167 = vunpack.c.h.b16 %v88
    %v168 = vunpack.c.l.b16 %v89
    %v169 = vunpack.c.h.b16 %v89
    %v170 = vunpack.c.l.b16 %v90
    %v171 = vunpack.c.h.b16 %v90
    %v172 = vunpack.c.l.b16 %v91
    %v173 = vunpack.c.h.b16 %v91
    %v174 = vunpack.c.l.b16 %v92
    %v175 = vunpack.c.h.b16 %v92
    %v176 = vunpack.c.l.b16 %v93
    %v177 = vunpack.c.h.b16 %v93
    %v178 = vunpack.c.l.b16 %v94
    %v179 = vunpack.c.h.b16 %v94
    %v180 = vunpack.c.l.b16 %v95
    %v181 = vunpack.c.h.b16 %v95
    %v182 = vunpack.c.l.b16 %v96
    %v183 = vunpack.c.h.b16 %v96
    %v184 = vunpack.c.l.b16 %v97
    %v185 = vunpack.c.h.b16 %v97
    %v186 = vunpack.c.l.b16 %v98
    %v187 = vunpack.c.h.b16 %v98
    %v188 = vunpack.c.l.b16 %v99
    %v189 = vunpack.c.h.b16 %v99
    %v190 = vunpack.c.l.b16 %v100
    %v191 = vunpack.c.h.b16 %v100
    %v192 = vunpack.c.l.b16 %v101
    %v193 = vunpack.c.h.b16 %v101
    %v194 = vunpack.c.l.b16 %v102
    %v195 = vunpack.c.h.b16 %v102
    %v196 = vunpack.c.l.b16 %v103
    %v197 = vunpack.c.h.b16 %v103
    %v198 = vunpack.c.l.b16 %v104
    %v199 = vunpack.c.h.b16 %v104
    %v200 = vunpack.c.l.b16 %v105
    %v201 = vunpack.c.h.b16 %v105
    %v202 = vunpack.c.l.b16 %v106
    %v203 = vunpack.c.h.b16 %v106
    %v204 = vunpack.c.l.b16 %v107
    %v205 = vunpack.c.h.b16 %v107
    %v206 = vunpack.c.l.b16 %v108
    %v207 = vunpack.c.h.b16 %v108
    %v208 = vunpack.c.l.b16 %v109
    %v209 = vunpack.c.h.b16 %v109
    %v210 = vunpack.c.l.b16 %v110
    %v211 = vunpack.c.h.b16 %v110
    %v212 = vunpack.c.l.b16 %v111
    %v213 = vunpack.c.h.b16 %v111
    %v214 = vunpack.c.l.b16 %v112
    %v215 = vunpack.c.h.b16 %v112
    %v216 = vunpack.c.l.b16 %v113
    %v217 = vunpack.c.h.b16 %v113
    %v218 = vunpack.c.l.b16 %v114
    %v219 = vunpack.c.h.b16 %v114
    %v220 = vunpack.c.l.b16 %v115
    %v221 = vunpack.c.h.b16 %v115
    %v222 = vpack.c.b16 %v162, %v158
    %v223 = vpack.c.b16 %v163, %v159
    %v224 = vpack.c.b16 %v164, %v160
    %v225 = vpack.c.b16 %v165, %v161
    %v226 = vpack.c.b16 %v170, %v166
    %v227 = vpack.c.b16 %v171, %v167
    %v228 = vpack.c.b16 %v172, %v168
    %v229 = vpack.c.b16 %v173, %v169
    %v230 = vpack.c.b16 %v178, %v174
    %v231 = vpack.c.b16 %v179, %v175
    %v232 = vpack.c.b16 %v180, %v176
    %v233 = vpack.c.b16 %v181, %v177
    %v234 = vpack.c.b16 %v186, %v182
    %v235 = vpack.c.b16 %v187, %v183
    %v236 = vpack.c.b16 %v188, %v184
    %v237 = vpack.c.b16 %v189, %v185
    %v238 = vpack.c.b16 %v194, %v190
    %v239 = vpack.c.b16 %v195, %v191
    %v240 = vpack.c.b16 %v196, %v192
    %v241 = vpack.c.b16 %v197, %v193
    %v242 = vpack.c.b16 %v202, %v198
    %v243 = vpack.c.b16 %v203, %v199
    %v244 = vpack.c.b16 %v204, %v200
    %v245 = vpack.c.b16 %v205, %v201
    %v246 = vpack.c.b16 %v210, %v206
    %v247 = vpack.c.b16 %v211, %v207
    %v248 = vpack.c.b16 %v212, %v208
    %v249 = vpack.c.b16 %v213, %v209
    %v250 = vpack.c.b16 %v218, %v214
    %v251 = vpack.c.b16 %v219, %v215
    %v252 = vpack.c.b16 %v220, %v216
    %v253 = vpack.c.b16 %v221, %v217
    %286 = vmatpush.bf16.msra.mxu0 %v250
    %287 = vmatpush.bf16.msra.mxu0 %v246
    %288 = vmatpush.bf16.msra.mxu0 %v242
    %289 = vmatpush.bf16.msra.mxu0 %v238
    %290 = vmatpush.bf16.msra.mxu0 %v234
    %291 = vmatpush.bf16.msra.mxu0 %v230
    %292 = vmatpush.bf16.msra.mxu0 %v226
    %293 = vmatpush.bf16.msra.mxu0 %v222
    %294 = vmatmul.bf16.gmra.mxu0 %v80
    %v295 = vpop.f32.mrf.mxu0
    %v296 = vadd.f32 %v118, %v295
    %v297 = vpop.f32.mrf.mxu0
    %v298 = vadd.f32 %v118, %v297
    %299 = vmatmul.bf16.gmra.mxu0 %v81
    %v300 = vpop.f32.mrf.mxu0
    %v301 = vadd.f32 %v118, %v300
    %v302 = vpop.f32.mrf.mxu0
    %v303 = vadd.f32 %v118, %v302
    %304 = vmatmul.bf16.gmra.mxu0 %v82
    %v305 = vpop.f32.mrf.mxu0
    %v306 = vadd.f32 %v118, %v305
    %v307 = vpop.f32.mrf.mxu0
    %v308 = vadd.f32 %v118, %v307
    %309 = vmatmul.bf16.gmra.mxu0 %v83
    %v310 = vpop.f32.mrf.mxu0
    %v311 = vadd.f32 %v118, %v310
    %v312 = vpop.f32.mrf.mxu0
    %v313 = vadd.f32 %v118, %v312
    %314 = vdwg.mxu0
    %315 = vmatpush.bf16.msra.mxu0 %v251
    %316 = vmatpush.bf16.msra.mxu0 %v247
    %317 = vmatpush.bf16.msra.mxu0 %v243
    %318 = vmatpush.bf16.msra.mxu0 %v239
    %319 = vmatpush.bf16.msra.mxu0 %v235
    %320 = vmatpush.bf16.msra.mxu0 %v231
    %321 = vmatpush.bf16.msra.mxu0 %v227
    %322 = vmatpush.bf16.msra.mxu0 %v223
    %323 = vmatmul.bf16.gmra.mxu0 %v80
    %v324 = vpop.f32.mrf.mxu0
    %v325 = vadd.f32 %v119, %v324
    %v326 = vpop.f32.mrf.mxu0
    %v327 = vadd.f32 %v119, %v326
    %328 = vmatmul.bf16.gmra.mxu0 %v81
    %v329 = vpop.f32.mrf.mxu0
    %v330 = vadd.f32 %v119, %v329
    %v331 = vpop.f32.mrf.mxu0
    %v332 = vadd.f32 %v119, %v331
    %333 = vmatmul.bf16.gmra.mxu0 %v82
    %v334 = vpop.f32.mrf.mxu0
    %v335 = vadd.f32 %v119, %v334
    %v336 = vpop.f32.mrf.mxu0
    %v337 = vadd.f32 %v119, %v336
    %338 = vmatmul.bf16.gmra.mxu0 %v83
    %v339 = vpop.f32.mrf.mxu0
    %v340 = vadd.f32 %v119, %v339
    %v341 = vpop.f32.mrf.mxu0
    %v342 = vadd.f32 %v119, %v341
    %343 = vdwg.mxu0
    %344 = vmatpush.bf16.msra.mxu0 %v252
    %345 = vmatpush.bf16.msra.mxu0 %v248
    %346 = vmatpush.bf16.msra.mxu0 %v244
    %347 = vmatpush.bf16.msra.mxu0 %v240
    %348 = vmatpush.bf16.msra.mxu0 %v236
    %349 = vmatpush.bf16.msra.mxu0 %v232
    %350 = vmatpush.bf16.msra.mxu0 %v228
    %351 = vmatpush.bf16.msra.mxu0 %v224
    %352 = vmatmul.bf16.gmra.mxu0 %v80
    %v353 = vpop.f32.mrf.mxu0
    %v354 = vadd.f32 %v120, %v353
    %v355 = vpop.f32.mrf.mxu0
    %v356 = vadd.f32 %v120, %v355
    %357 = vmatmul.bf16.gmra.mxu0 %v81
    %v358 = vpop.f32.mrf.mxu0
    %v359 = vadd.f32 %v120, %v358
    %v360 = vpop.f32.mrf.mxu0
    %v361 = vadd.f32 %v120, %v360
    %362 = vmatmul.bf16.gmra.mxu0 %v82
    %v363 = vpop.f32.mrf.mxu0
    %v364 = vadd.f32 %v120, %v363
    %v365 = vpop.f32.mrf.mxu0
    %v366 = vadd.f32 %v120, %v365
    %367 = vmatmul.bf16.gmra.mxu0 %v83
    %v368 = vpop.f32.mrf.mxu0
    %v369 = vadd.f32 %v120, %v368
    %v370 = vpop.f32.mrf.mxu0
    %v371 = vadd.f32 %v120, %v370
    %372 = vdwg.mxu0
    %373 = vmatpush.bf16.msra.mxu0 %v253
    %374 = vmatpush.bf16.msra.mxu0 %v249
    %375 = vmatpush.bf16.msra.mxu0 %v245
    %376 = vmatpush.bf16.msra.mxu0 %v241
    %377 = vmatpush.bf16.msra.mxu0 %v237
    %378 = vmatpush.bf16.msra.mxu0 %v233
    %379 = vmatpush.bf16.msra.mxu0 %v229
    %380 = vmatpush.bf16.msra.mxu0 %v225
    %381 = vmatmul.bf16.gmra.mxu0 %v80
    %v382 = vpop.f32.mrf.mxu0
    %v383 = vadd.f32 %v121, %v382
    %v384 = vpop.f32.mrf.mxu0
    %v385 = vadd.f32 %v121, %v384
    %386 = vmatmul.bf16.gmra.mxu0 %v81
    %v387 = vpop.f32.mrf.mxu0
    %v388 = vadd.f32 %v121, %v387
    %v389 = vpop.f32.mrf.mxu0
    %v390 = vadd.f32 %v121, %v389
    %391 = vmatmul.bf16.gmra.mxu0 %v82
    %v392 = vpop.f32.mrf.mxu0
    %v393 = vadd.f32 %v121, %v392
    %v394 = vpop.f32.mrf.mxu0
    %v395 = vadd.f32 %v121, %v394
    %396 = vmatmul.bf16.gmra.mxu0 %v83
    %v397 = vpop.f32.mrf.mxu0
    %v398 = vadd.f32 %v121, %v397
    %v399 = vpop.f32.mrf.mxu0
    %v400 = vadd.f32 %v121, %v399
    %401 = vdwg.mxu0
    %402 = vst [vmem:[#allocation2] sm:$0xff] %v296
    %403 = vst [vmem:[#allocation2 + $0x8] sm:$0xff] %v325
    %404 = vst [vmem:[#allocation2 + $0x10] sm:$0xff] %v298
    %405 = vst [vmem:[#allocation2 + $0x18] sm:$0xff] %v327
    %406 = vst [vmem:[#allocation2 + $0x20] sm:$0xff] %v301
    %407 = vst [vmem:[#allocation2 + $0x28] sm:$0xff] %v330
    %408 = vst [vmem:[#allocation2 + $0x30] sm:$0xff] %v303
    %409 = vst [vmem:[#allocation2 + $0x38] sm:$0xff] %v332
    %410 = vst [vmem:[#allocation2 + $0x40] sm:$0xff] %v306
    %411 = vst [vmem:[#allocation2 + $0x48] sm:$0xff] %v335
    %412 = vst [vmem:[#allocation2 + $0x50] sm:$0xff] %v308
    %413 = vst [vmem:[#allocation2 + $0x58] sm:$0xff] %v337
    %414 = vst [vmem:[#allocation2 + $0x60] sm:$0xff] %v311
    %415 = vst [vmem:[#allocation2 + $0x68] sm:$0xff] %v340
    %416 = vst [vmem:[#allocation2 + $0x70] sm:$0xff] %v313
    %417 = vst [vmem:[#allocation2 + $0x78] sm:$0xff] %v342
    %418 = vst [vmem:[#allocation3] sm:$0xff] %v354
    %419 = vst [vmem:[#allocation3 + $0x8] sm:$0xff] %v383
    %420 = vst [vmem:[#allocation3 + $0x10] sm:$0xff] %v356
    %421 = vst [vmem:[#allocation3 + $0x18] sm:$0xff] %v385
    %422 = vst [vmem:[#allocation3 + $0x20] sm:$0xff] %v359
    %423 = vst [vmem:[#allocation3 + $0x28] sm:$0xff] %v388
    %424 = vst [vmem:[#allocation3 + $0x30] sm:$0xff] %v361
    %425 = vst [vmem:[#allocation3 + $0x38] sm:$0xff] %v390
    %426 = vst [vmem:[#allocation3 + $0x40] sm:$0xff] %v364
    %427 = vst [vmem:[#allocation3 + $0x48] sm:$0xff] %v393
    %428 = vst [vmem:[#allocation3 + $0x50] sm:$0xff] %v366
    %429 = vst [vmem:[#allocation3 + $0x58] sm:$0xff] %v395
    %430 = vst [vmem:[#allocation3 + $0x60] sm:$0xff] %v369
    %431 = vst [vmem:[#allocation3 + $0x68] sm:$0xff] %v398
    %432 = vst [vmem:[#allocation3 + $0x70] sm:$0xff] %v371
    %433 = vst [vmem:[#allocation3 + $0x78] sm:$0xff] %v400
    %v434 = vld [vmem:[#allocation9] sm:$0xff]
    %v435 = vld [vmem:[#allocation9 + $0x8] sm:$0xff]
    %v436 = vld [vmem:[#allocation9 + $0x10] sm:$0xff]
    %v437 = vld [vmem:[#allocation9 + $0x18] sm:$0xff]
    %v438 = vld [vmem:[#allocation9 + $0x20] sm:$0xff]
    %v439 = vld [vmem:[#allocation9 + $0x28] sm:$0xff]
    %v440 = vld [vmem:[#allocation9 + $0x30] sm:$0xff]
    %v441 = vld [vmem:[#allocation9 + $0x38] sm:$0xff]
    %v442 = vld [vmem:[#allocation9 + $0x40] sm:$0xff]
    %v443 = vld [vmem:[#allocation9 + $0x48] sm:$0xff]
    %v444 = vld [vmem:[#allocation9 + $0x50] sm:$0xff]
    %v445 = vld [vmem:[#allocation9 + $0x58] sm:$0xff]
    %v446 = vld [vmem:[#allocation9 + $0x60] sm:$0xff]
    %v447 = vld [vmem:[#allocation9 + $0x68] sm:$0xff]
    %v448 = vld [vmem:[#allocation9 + $0x70] sm:$0xff]
    %v449 = vld [vmem:[#allocation9 + $0x78] sm:$0xff]
    %v450 = vld [vmem:[#allocation9 + $0x80] sm:$0xff]
    %v451 = vld [vmem:[#allocation9 + $0x88] sm:$0xff]
    %v452 = vld [vmem:[#allocation9 + $0x90] sm:$0xff]
    %v453 = vld [vmem:[#allocation9 + $0x98] sm:$0xff]
    %v454 = vld [vmem:[#allocation9 + $0xa0] sm:$0xff]
    %v455 = vld [vmem:[#allocation9 + $0xa8] sm:$0xff]
    %v456 = vld [vmem:[#allocation9 + $0xb0] sm:$0xff]
    %v457 = vld [vmem:[#allocation9 + $0xb8] sm:$0xff]
    %v458 = vld [vmem:[#allocation9 + $0xc0] sm:$0xff]
    %v459 = vld [vmem:[#allocation9 + $0xc8] sm:$0xff]
    %v460 = vld [vmem:[#allocation9 + $0xd0] sm:$0xff]
    %v461 = vld [vmem:[#allocation9 + $0xd8] sm:$0xff]
    %v462 = vld [vmem:[#allocation9 + $0xe0] sm:$0xff]
    %v463 = vld [vmem:[#allocation9 + $0xe8] sm:$0xff]
    %v464 = vld [vmem:[#allocation9 + $0xf0] sm:$0xff]
    %v465 = vld [vmem:[#allocation9 + $0xf8] sm:$0xff]
    %v466 = vpack.c.bf16 0.0, 0.0
    %v499 = vunpack.c.l.b16 %v434
    %v500 = vunpack.c.h.b16 %v434
    %v501 = vunpack.c.l.b16 %v435
    %v502 = vunpack.c.h.b16 %v435
    %v503 = vunpack.c.l.b16 %v436
    %v504 = vunpack.c.h.b16 %v436
    %v505 = vunpack.c.l.b16 %v437
    %v506 = vunpack.c.h.b16 %v437
    %v507 = vunpack.c.l.b16 %v438
    %v508 = vunpack.c.h.b16 %v438
    %v509 = vunpack.c.l.b16 %v439
    %v510 = vunpack.c.h.b16 %v439
    %v511 = vunpack.c.l.b16 %v440
    %v512 = vunpack.c.h.b16 %v440
    %v513 = vunpack.c.l.b16 %v441
    %v514 = vunpack.c.h.b16 %v441
    %v515 = vunpack.c.l.b16 %v442
    %v516 = vunpack.c.h.b16 %v442
    %v517 = vunpack.c.l.b16 %v443
    %v518 = vunpack.c.h.b16 %v443
    %v519 = vunpack.c.l.b16 %v444
    %v520 = vunpack.c.h.b16 %v444
    %v521 = vunpack.c.l.b16 %v445
    %v522 = vunpack.c.h.b16 %v445
    %v523 = vunpack.c.l.b16 %v446
    %v524 = vunpack.c.h.b16 %v446
    %v525 = vunpack.c.l.b16 %v447
    %v526 = vunpack.c.h.b16 %v447
    %v527 = vunpack.c.l.b16 %v448
    %v528 = vunpack.c.h.b16 %v448
    %v529 = vunpack.c.l.b16 %v449
    %v530 = vunpack.c.h.b16 %v449
    %v531 = vunpack.c.l.b16 %v450
    %v532 = vunpack.c.h.b16 %v450
    %v533 = vunpack.c.l.b16 %v451
    %v534 = vunpack.c.h.b16 %v451
    %v535 = vunpack.c.l.b16 %v452
    %v536 = vunpack.c.h.b16 %v452
    %v537 = vunpack.c.l.b16 %v453
    %v538 = vunpack.c.h.b16 %v453
    %v539 = vunpack.c.l.b16 %v454
    %v540 = vunpack.c.h.b16 %v454
    %v541 = vunpack.c.l.b16 %v455
    %v542 = vunpack.c.h.b16 %v455
    %v543 = vunpack.c.l.b16 %v456
    %v544 = vunpack.c.h.b16 %v456
    %v545 = vunpack.c.l.b16 %v457
    %v546 = vunpack.c.h.b16 %v457
    %v547 = vunpack.c.l.b16 %v458
    %v548 = vunpack.c.h.b16 %v458
    %v549 = vunpack.c.l.b16 %v459
    %v550 = vunpack.c.h.b16 %v459
    %v551 = vunpack.c.l.b16 %v460
    %v552 = vunpack.c.h.b16 %v460
    %v553 = vunpack.c.l.b16 %v461
    %v554 = vunpack.c.h.b16 %v461
    %v555 = vunpack.c.l.b16 %v462
    %v556 = vunpack.c.h.b16 %v462
    %v557 = vunpack.c.l.b16 %v463
    %v558 = vunpack.c.h.b16 %v463
    %v559 = vunpack.c.l.b16 %v464
    %v560 = vunpack.c.h.b16 %v464
    %v561 = vunpack.c.l.b16 %v465
    %v562 = vunpack.c.h.b16 %v465
    %v563 = vpack.c.b16 %v503, %v499
    %v564 = vpack.c.b16 %v504, %v500
    %v565 = vpack.c.b16 %v505, %v501
    %v566 = vpack.c.b16 %v506, %v502
    %v567 = vpack.c.b16 %v511, %v507
    %v568 = vpack.c.b16 %v512, %v508
    %v569 = vpack.c.b16 %v513, %v509
    %v570 = vpack.c.b16 %v514, %v510
    %v571 = vpack.c.b16 %v519, %v515
    %v572 = vpack.c.b16 %v520, %v516
    %v573 = vpack.c.b16 %v521, %v517
    %v574 = vpack.c.b16 %v522, %v518
    %v575 = vpack.c.b16 %v527, %v523
    %v576 = vpack.c.b16 %v528, %v524
    %v577 = vpack.c.b16 %v529, %v525
    %v578 = vpack.c.b16 %v530, %v526
    %v579 = vpack.c.b16 %v535, %v531
    %v580 = vpack.c.b16 %v536, %v532
    %v581 = vpack.c.b16 %v537, %v533
    %v582 = vpack.c.b16 %v538, %v534
    %v583 = vpack.c.b16 %v543, %v539
    %v584 = vpack.c.b16 %v544, %v540
    %v585 = vpack.c.b16 %v545, %v541
    %v586 = vpack.c.b16 %v546, %v542
    %v587 = vpack.c.b16 %v551, %v547
    %v588 = vpack.c.b16 %v552, %v548
    %v589 = vpack.c.b16 %v553, %v549
    %v590 = vpack.c.b16 %v554, %v550
    %v591 = vpack.c.b16 %v559, %v555
    %v592 = vpack.c.b16 %v560, %v556
    %v593 = vpack.c.b16 %v561, %v557
    %v594 = vpack.c.b16 %v562, %v558
    %627 = vmatpush.bf16.msra.mxu0 %v591
    %628 = vmatpush.bf16.msra.mxu0 %v587
    %629 = vmatpush.bf16.msra.mxu0 %v583
    %630 = vmatpush.bf16.msra.mxu0 %v579
    %631 = vmatpush.bf16.msra.mxu0 %v575
    %632 = vmatpush.bf16.msra.mxu0 %v571
    %633 = vmatpush.bf16.msra.mxu0 %v567
    %634 = vmatpush.bf16.msra.mxu0 %v563
    %635 = vmatmul.bf16.gmra.mxu0 %v466
    %v636 = vpop.f32.mrf.mxu0
    %v637 = vadd.f32 0.0, %v636
    %v638 = vpop.f32.mrf.mxu0
    %639 = vdwg.mxu0
    %640 = vmatpush.bf16.msra.mxu0 %v592
    %641 = vmatpush.bf16.msra.mxu0 %v588
    %642 = vmatpush.bf16.msra.mxu0 %v584
    %643 = vmatpush.bf16.msra.mxu0 %v580
    %644 = vmatpush.bf16.msra.mxu0 %v576
    %645 = vmatpush.bf16.msra.mxu0 %v572
    %646 = vmatpush.bf16.msra.mxu0 %v568
    %647 = vmatpush.bf16.msra.mxu0 %v564
    %648 = vmatmul.bf16.gmra.mxu0 %v466
    %v649 = vpop.f32.mrf.mxu0
    %v650 = vadd.f32 0.0, %v649
    %v651 = vpop.f32.mrf.mxu0
    %652 = vdwg.mxu0
    %653 = vmatpush.bf16.msra.mxu0 %v593
    %654 = vmatpush.bf16.msra.mxu0 %v589
    %655 = vmatpush.bf16.msra.mxu0 %v585
    %656 = vmatpush.bf16.msra.mxu0 %v581
    %657 = vmatpush.bf16.msra.mxu0 %v577
    %658 = vmatpush.bf16.msra.mxu0 %v573
    %659 = vmatpush.bf16.msra.mxu0 %v569
    %660 = vmatpush.bf16.msra.mxu0 %v565
    %661 = vmatmul.bf16.gmra.mxu0 %v466
    %v662 = vpop.f32.mrf.mxu0
    %v663 = vadd.f32 0.0, %v662
    %v664 = vpop.f32.mrf.mxu0
    %665 = vdwg.mxu0
    %666 = vmatpush.bf16.msra.mxu0 %v594
    %667 = vmatpush.bf16.msra.mxu0 %v590
    %668 = vmatpush.bf16.msra.mxu0 %v586
    %669 = vmatpush.bf16.msra.mxu0 %v582
    %670 = vmatpush.bf16.msra.mxu0 %v578
    %671 = vmatpush.bf16.msra.mxu0 %v574
    %672 = vmatpush.bf16.msra.mxu0 %v570
    %673 = vmatpush.bf16.msra.mxu0 %v566
    %674 = vmatmul.bf16.gmra.mxu0 %v466
    %v675 = vpop.f32.mrf.mxu0
    %v676 = vadd.f32 0.0, %v675
    %v677 = vpop.f32.mrf.mxu0
    %678 = vdwg.mxu0
    %v679 = vld [vmem:[#allocation2] sm:$0xff]
    %v680 = vld [vmem:[#allocation2 + $0x8] sm:$0xff]
    %v681 = vadd.f32 %v637, %v679
    %v682 = vadd.f32 %v650, %v680
    %v683 = vld [vmem:[#allocation3 + $0x70] sm:$0xff]
    %v684 = vld [vmem:[#allocation3 + $0x78] sm:$0xff]
    %v685 = vadd.f32 %v663, %v683
    %v686 = vadd.f32 %v676, %v684
    %v687 = vxor.u32 %v681, 2147483648
    %v688 = vxor.u32 %v682, 2147483648
    %v689 = vmul.f32 %v687, 1.442695
    %v690 = vpow.pop %v689
    %v691 = vmul.f32 %v688, 1.442695
    %v692 = vpow.pop %v691
    %v693 = vadd.f32 %v690, 1.0
    %v694 = vadd.f32 %v692, 1.0
    %v695 = vrcp.pop %v693
    %v696 = vmul.f32 %v693, %v695
    %v697 = vsub.f32 1.0, %v696
    %v698 = vmul.f32 %v695, %v697
    %v699 = vadd.f32 %v695, %v698
    %vm700 = vweird.f32 %v693
    %vm701 = vweird.f32 %v695
    %vm702 = vmor %vm700, %vm701
    %v703 = vsel %vm702, %v695, %v699
    %v704 = vand.u32 2147483647, %v693
    %vm705 = vcmp.eq.f32.partialorder %v704, 8.507059e+37
    %v706 = vand.u32 %v693, 2147483648
    %v707 = vor.u32 1.1754944e-38, %v706
    %v708 = vsel %vm705, %v707, %v703
    %v709 = vmul.f32 1.0, %v708
    %v710 = vrcp.pop %v694
    %v711 = vmul.f32 %v694, %v710
    %v712 = vsub.f32 1.0, %v711
    %v713 = vmul.f32 %v710, %v712
    %v714 = vadd.f32 %v710, %v713
    %vm715 = vweird.f32 %v694
    %vm716 = vweird.f32 %v710
    %vm717 = vmor %vm715, %vm716
    %v718 = vsel %vm717, %v710, %v714
    %v719 = vand.u32 2147483647, %v694
    %vm720 = vcmp.eq.f32.partialorder %v719, 8.507059e+37
    %v721 = vand.u32 %v694, 2147483648
    %v722 = vor.u32 1.1754944e-38, %v721
    %v723 = vsel %vm720, %v722, %v718
    %v724 = vmul.f32 1.0, %v723
    %v725 = vtanh.pop %v682
    %v726 = vxor.u32 %v685, 2147483648
    %v727 = vxor.u32 %v686, 2147483648
    %v728 = vmul.f32 %v726, 1.442695
    %v729 = vpow.pop %v728
    %v730 = vmul.f32 %v727, 1.442695
    %v731 = vpow.pop %v730
    %v732 = vadd.f32 %v729, 1.0
    %v733 = vadd.f32 %v731, 1.0
    %v734 = vrcp.pop %v732
    %v735 = vmul.f32 %v732, %v734
    %v736 = vsub.f32 1.0, %v735
    %v737 = vmul.f32 %v734, %v736
    %v738 = vadd.f32 %v734, %v737
    %vm739 = vweird.f32 %v732
    %vm740 = vweird.f32 %v734
    %vm741 = vmor %vm739, %vm740
    %v742 = vsel %vm741, %v734, %v738
    %v743 = vand.u32 2147483647, %v732
    %vm744 = vcmp.eq.f32.partialorder %v743, 8.507059e+37
    %v745 = vand.u32 %v732, 2147483648
    %v746 = vor.u32 1.1754944e-38, %v745
    %v747 = vsel %vm744, %v746, %v742
    %v748 = vmul.f32 1.0, %v747
    %v749 = vrcp.pop %v733
    %v750 = vmul.f32 %v733, %v749
    %v751 = vsub.f32 1.0, %v750
    %v752 = vmul.f32 %v749, %v751
    %v753 = vadd.f32 %v749, %v752
    %vm754 = vweird.f32 %v733
    %vm755 = vweird.f32 %v749
    %vm756 = vmor %vm754, %vm755
    %v757 = vsel %vm756, %v749, %v753
    %v758 = vand.u32 2147483647, %v733
    %vm759 = vcmp.eq.f32.partialorder %v758, 8.507059e+37
    %v760 = vand.u32 %v733, 2147483648
    %v761 = vor.u32 1.1754944e-38, %v760
    %v762 = vsel %vm759, %v761, %v757
    %v763 = vmul.f32 1.0, %v762
    %v764 = vtanh.pop %v686
    %v765 = vmul.f32 %v709, 0.0
    %767 = vrot.lane.b32.xlu0 %v725, 64
    %v768 = vpop.permute.xlu0 %767
    %v770 = vmul.f32 %v709, %v768
    %772 = vrot.lane.b32.xlu0 %v770, 64
    %v773 = vpop.permute.xlu0 %772
    %v775 = vadd.f32 %v765, %v773
    %v776 = vmul.f32 %v748, 0.0
    %778 = vrot.lane.b32.xlu0 %v764, 64
    %v779 = vpop.permute.xlu0 %778
    %v781 = vmul.f32 %v748, %v779
    %783 = vrot.lane.b32.xlu0 %v781, 64
    %v784 = vpop.permute.xlu0 %783
    %v786 = vadd.f32 %v776, %v784
    %v787 = vtanh.pop %v775
    %789 = vrot.lane.b32.xlu0 %v787, 64
    %v790 = vpop.permute.xlu0 %789
    %v792 = vmul.f32 %v724, %v790
    %v793 = vtanh.pop %v786
    %795 = vrot.lane.b32.xlu0 %v793, 64
    %v796 = vpop.permute.xlu0 %795
    %v798 = vmul.f32 %v763, %v796
    %vm799 = vcmask 523264
    %800 = vst.msk [vmem:[#allocation4] sm:$0xff] %vm799, %v792
    %801 = vst.msk [vmem:[#allocation5 + $0x38] sm:$0xff] %vm799, %v798
    %803 = vrot.lane.b32.xlu0 %v798, 64
    %v804 = vpop.permute.xlu0 %803
    %v806 = vsel %vm799, %v792, %v804
    %v807 = vpack.c.bf16 %v806, %v806
    %808 = vmatpush.bf16.msra.mxu0 %v591
    %809 = vmatpush.bf16.msra.mxu0 %v587
    %810 = vmatpush.bf16.msra.mxu0 %v583
    %811 = vmatpush.bf16.msra.mxu0 %v579
    %812 = vmatpush.bf16.msra.mxu0 %v575
    %813 = vmatpush.bf16.msra.mxu0 %v571
    %814 = vmatpush.bf16.msra.mxu0 %v567
    %815 = vmatpush.bf16.msra.mxu0 %v563
    %816 = vmatmul.bf16.gmra.mxu0 %v807
    %v817 = vpop.f32.mrf.mxu0
    %v818 = vadd.f32 0.0, %v817
    %v819 = vpop.f32.mrf.mxu0
    %820 = vdwg.mxu0
    %821 = vmatpush.bf16.msra.mxu0 %v592
    %822 = vmatpush.bf16.msra.mxu0 %v588
    %823 = vmatpush.bf16.msra.mxu0 %v584
    %824 = vmatpush.bf16.msra.mxu0 %v580
    %825 = vmatpush.bf16.msra.mxu0 %v576
    %826 = vmatpush.bf16.msra.mxu0 %v572
    %827 = vmatpush.bf16.msra.mxu0 %v568
    %828 = vmatpush.bf16.msra.mxu0 %v564
    %829 = vmatmul.bf16.gmra.mxu0 %v807
    %v830 = vpop.f32.mrf.mxu0
    %v831 = vadd.f32 0.0, %v830
    %v832 = vpop.f32.mrf.mxu0
    %833 = vdwg.mxu0
    %834 = vmatpush.bf16.msra.mxu0 %v593
    %835 = vmatpush.bf16.msra.mxu0 %v589
    %836 = vmatpush.bf16.msra.mxu0 %v585
    %837 = vmatpush.bf16.msra.mxu0 %v581
    %838 = vmatpush.bf16.msra.mxu0 %v577
    %839 = vmatpush.bf16.msra.mxu0 %v573
    %840 = vmatpush.bf16.msra.mxu0 %v569
    %841 = vmatpush.bf16.msra.mxu0 %v565
    %842 = vmatmul.bf16.gmra.mxu0 %v807
    %v843 = vpop.f32.mrf.mxu0
    %v844 = vadd.f32 0.0, %v843
    %v845 = vpop.f32.mrf.mxu0
    %846 = vdwg.mxu0
    %847 = vmatpush.bf16.msra.mxu0 %v594
    %848 = vmatpush.bf16.msra.mxu0 %v590
    %849 = vmatpush.bf16.msra.mxu0 %v586
    %850 = vmatpush.bf16.msra.mxu0 %v582
    %851 = vmatpush.bf16.msra.mxu0 %v578
    %852 = vmatpush.bf16.msra.mxu0 %v574
    %853 = vmatpush.bf16.msra.mxu0 %v570
    %854 = vmatpush.bf16.msra.mxu0 %v566
    %855 = vmatmul.bf16.gmra.mxu0 %v807
    %v856 = vpop.f32.mrf.mxu0
    %v857 = vadd.f32 0.0, %v856
    %v858 = vpop.f32.mrf.mxu0
    %859 = vdwg.mxu0
    %v860 = vld [vmem:[#allocation2 + $0x10] sm:$0xff]
    %v861 = vld [vmem:[#allocation2 + $0x18] sm:$0xff]
    %v862 = vadd.f32 %v818, %v860
    %v863 = vadd.f32 %v831, %v861
    %v864 = vld [vmem:[#allocation3 + $0x60] sm:$0xff]
    %v865 = vld [vmem:[#allocation3 + $0x68] sm:$0xff]
    %v866 = vadd.f32 %v844, %v864
    %v867 = vadd.f32 %v857, %v865
    %v868 = vxor.u32 %v862, 2147483648
    %v869 = vxor.u32 %v863, 2147483648
    %v870 = vmul.f32 %v868, 1.442695
    %v871 = vpow.pop %v870
    %v872 = vmul.f32 %v869, 1.442695
    %v873 = vpow.pop %v872
    %v874 = vadd.f32 %v871, 1.0
    %v875 = vadd.f32 %v873, 1.0
    %v876 = vrcp.pop %v874
    %v877 = vmul.f32 %v874, %v876
    %v878 = vsub.f32 1.0, %v877
    %v879 = vmul.f32 %v876, %v878
    %v880 = vadd.f32 %v876, %v879
    %vm881 = vweird.f32 %v874
    %vm882 = vweird.f32 %v876
    %vm883 = vmor %vm881, %vm882
    %v884 = vsel %vm883, %v876, %v880
    %v885 = vand.u32 2147483647, %v874
    %vm886 = vcmp.eq.f32.partialorder %v885, 8.507059e+37
    %v887 = vand.u32 %v874, 2147483648
    %v888 = vor.u32 1.1754944e-38, %v887
    %v889 = vsel %vm886, %v888, %v884
    %v890 = vmul.f32 1.0, %v889
    %v891 = vrcp.pop %v875
    %v892 = vmul.f32 %v875, %v891
    %v893 = vsub.f32 1.0, %v892
    %v894 = vmul.f32 %v891, %v893
    %v895 = vadd.f32 %v891, %v894
    %vm896 = vweird.f32 %v875
    %vm897 = vweird.f32 %v891
    %vm898 = vmor %vm896, %vm897
    %v899 = vsel %vm898, %v891, %v895
    %v900 = vand.u32 2147483647, %v875
    %vm901 = vcmp.eq.f32.partialorder %v900, 8.507059e+37
    %v902 = vand.u32 %v875, 2147483648
    %v903 = vor.u32 1.1754944e-38, %v902
    %v904 = vsel %vm901, %v903, %v899
    %v905 = vmul.f32 1.0, %v904
    %v906 = vtanh.pop %v863
    %v907 = vxor.u32 %v866, 2147483648
    %v908 = vxor.u32 %v867, 2147483648
    %v909 = vmul.f32 %v907, 1.442695
    %v910 = vpow.pop %v909
    %v911 = vmul.f32 %v908, 1.442695
    %v912 = vpow.pop %v911
    %v913 = vadd.f32 %v910, 1.0
    %v914 = vadd.f32 %v912, 1.0
    %v915 = vrcp.pop %v913
    %v916 = vmul.f32 %v913, %v915
    %v917 = vsub.f32 1.0, %v916
    %v918 = vmul.f32 %v915, %v917
    %v919 = vadd.f32 %v915, %v918
    %vm920 = vweird.f32 %v913
    %vm921 = vweird.f32 %v915
    %vm922 = vmor %vm920, %vm921
    %v923 = vsel %vm922, %v915, %v919
    %v924 = vand.u32 2147483647, %v913
    %vm925 = vcmp.eq.f32.partialorder %v924, 8.507059e+37
    %v926 = vand.u32 %v913, 2147483648
    %v927 = vor.u32 1.1754944e-38, %v926
    %v928 = vsel %vm925, %v927, %v923
    %v929 = vmul.f32 1.0, %v928
    %v930 = vrcp.pop %v914
    %v931 = vmul.f32 %v914, %v930
    %v932 = vsub.f32 1.0, %v931
    %v933 = vmul.f32 %v930, %v932
    %v934 = vadd.f32 %v930, %v933
    %vm935 = vweird.f32 %v914
    %vm936 = vweird.f32 %v930
    %vm937 = vmor %vm935, %vm936
    %v938 = vsel %vm937, %v930, %v934
    %v939 = vand.u32 2147483647, %v914
    %vm940 = vcmp.eq.f32.partialorder %v939, 8.507059e+37
    %v941 = vand.u32 %v914, 2147483648
    %v942 = vor.u32 1.1754944e-38, %v941
    %v943 = vsel %vm940, %v942, %v938
    %v944 = vmul.f32 1.0, %v943
    %v945 = vtanh.pop %v867
    %v946 = vmul.f32 %v890, %v775
    %948 = vrot.lane.b32.xlu0 %v906, 64
    %v949 = vpop.permute.xlu0 %948
    %v951 = vmul.f32 %v890, %v949
    %953 = vrot.lane.b32.xlu0 %v951, 64
    %v954 = vpop.permute.xlu0 %953
    %v956 = vadd.f32 %v946, %v954
    %v957 = vmul.f32 %v929, %v786
    %959 = vrot.lane.b32.xlu0 %v945, 64
    %v960 = vpop.permute.xlu0 %959
    %v962 = vmul.f32 %v929, %v960
    %964 = vrot.lane.b32.xlu0 %v962, 64
    %v965 = vpop.permute.xlu0 %964
    %v967 = vadd.f32 %v957, %v965
    %v968 = vtanh.pop %v956
    %970 = vrot.lane.b32.xlu0 %v968, 64
    %v971 = vpop.permute.xlu0 %970
    %v973 = vmul.f32 %v905, %v971
    %v974 = vtanh.pop %v967
    %976 = vrot.lane.b32.xlu0 %v974, 64
    %v977 = vpop.permute.xlu0 %976
    %v979 = vmul.f32 %v944, %v977
    %980 = vst.msk [vmem:[#allocation4 + $0x8] sm:$0xff] %vm799, %v973
    %981 = vst.msk [vmem:[#allocation5 + $0x30] sm:$0xff] %vm799, %v979
    %983 = vrot.lane.b32.xlu0 %v979, 64
    %v984 = vpop.permute.xlu0 %983
    %v986 = vsel %vm799, %v973, %v984
    %v987 = vpack.c.bf16 %v986, %v986
    %988 = vmatpush.bf16.msra.mxu0 %v591
    %989 = vmatpush.bf16.msra.mxu0 %v587
    %990 = vmatpush.bf16.msra.mxu0 %v583
    %991 = vmatpush.bf16.msra.mxu0 %v579
    %992 = vmatpush.bf16.msra.mxu0 %v575
    %993 = vmatpush.bf16.msra.mxu0 %v571
    %994 = vmatpush.bf16.msra.mxu0 %v567
    %995 = vmatpush.bf16.msra.mxu0 %v563
    %996 = vmatmul.bf16.gmra.mxu0 %v987
    %v997 = vpop.f32.mrf.mxu0
    %v998 = vadd.f32 0.0, %v997
    %v999 = vpop.f32.mrf.mxu0
    %1000 = vdwg.mxu0
    %1001 = vmatpush.bf16.msra.mxu0 %v592
    %1002 = vmatpush.bf16.msra.mxu0 %v588
    %1003 = vmatpush.bf16.msra.mxu0 %v584
    %1004 = vmatpush.bf16.msra.mxu0 %v580
    %1005 = vmatpush.bf16.msra.mxu0 %v576
    %1006 = vmatpush.bf16.msra.mxu0 %v572
    %1007 = vmatpush.bf16.msra.mxu0 %v568
    %1008 = vmatpush.bf16.msra.mxu0 %v564
    %1009 = vmatmul.bf16.gmra.mxu0 %v987
    %v1010 = vpop.f32.mrf.mxu0
    %v1011 = vadd.f32 0.0, %v1010
    %v1012 = vpop.f32.mrf.mxu0
    %1013 = vdwg.mxu0
    %1014 = vmatpush.bf16.msra.mxu0 %v593
    %1015 = vmatpush.bf16.msra.mxu0 %v589
    %1016 = vmatpush.bf16.msra.mxu0 %v585
    %1017 = vmatpush.bf16.msra.mxu0 %v581
    %1018 = vmatpush.bf16.msra.mxu0 %v577
    %1019 = vmatpush.bf16.msra.mxu0 %v573
    %1020 = vmatpush.bf16.msra.mxu0 %v569
    %1021 = vmatpush.bf16.msra.mxu0 %v565
    %1022 = vmatmul.bf16.gmra.mxu0 %v987
    %v1023 = vpop.f32.mrf.mxu0
    %v1024 = vadd.f32 0.0, %v1023
    %v1025 = vpop.f32.mrf.mxu0
    %1026 = vdwg.mxu0
    %1027 = vmatpush.bf16.msra.mxu0 %v594
    %1028 = vmatpush.bf16.msra.mxu0 %v590
    %1029 = vmatpush.bf16.msra.mxu0 %v586
    %1030 = vmatpush.bf16.msra.mxu0 %v582
    %1031 = vmatpush.bf16.msra.mxu0 %v578
    %1032 = vmatpush.bf16.msra.mxu0 %v574
    %1033 = vmatpush.bf16.msra.mxu0 %v570
    %1034 = vmatpush.bf16.msra.mxu0 %v566
    %1035 = vmatmul.bf16.gmra.mxu0 %v987
    %v1036 = vpop.f32.mrf.mxu0
    %v1037 = vadd.f32 0.0, %v1036
    %v1038 = vpop.f32.mrf.mxu0
    %1039 = vdwg.mxu0
    %v1040 = vld [vmem:[#allocation2 + $0x20] sm:$0xff]
    %v1041 = vld [vmem:[#allocation2 + $0x28] sm:$0xff]
    %v1042 = vadd.f32 %v998, %v1040
    %v1043 = vadd.f32 %v1011, %v1041
    %v1044 = vld [vmem:[#allocation3 + $0x50] sm:$0xff]
    %v1045 = vld [vmem:[#allocation3 + $0x58] sm:$0xff]
    %v1046 = vadd.f32 %v1024, %v1044
    %v1047 = vadd.f32 %v1037, %v1045
    %v1048 = vxor.u32 %v1042, 2147483648
    %v1049 = vxor.u32 %v1043, 2147483648
    %v1050 = vmul.f32 %v1048, 1.442695
    %v1051 = vpow.pop %v1050
    %v1052 = vmul.f32 %v1049, 1.442695
    %v1053 = vpow.pop %v1052
    %v1054 = vadd.f32 %v1051, 1.0
    %v1055 = vadd.f32 %v1053, 1.0
    %v1056 = vrcp.pop %v1054
    %v1057 = vmul.f32 %v1054, %v1056
    %v1058 = vsub.f32 1.0, %v1057
    %v1059 = vmul.f32 %v1056, %v1058
    %v1060 = vadd.f32 %v1056, %v1059
    %vm1061 = vweird.f32 %v1054
    %vm1062 = vweird.f32 %v1056
    %vm1063 = vmor %vm1061, %vm1062
    %v1064 = vsel %vm1063, %v1056, %v1060
    %v1065 = vand.u32 2147483647, %v1054
    %vm1066 = vcmp.eq.f32.partialorder %v1065, 8.507059e+37
    %v1067 = vand.u32 %v1054, 2147483648
    %v1068 = vor.u32 1.1754944e-38, %v1067
    %v1069 = vsel %vm1066, %v1068, %v1064
    %v1070 = vmul.f32 1.0, %v1069
    %v1071 = vrcp.pop %v1055
    %v1072 = vmul.f32 %v1055, %v1071
    %v1073 = vsub.f32 1.0, %v1072
    %v1074 = vmul.f32 %v1071, %v1073
    %v1075 = vadd.f32 %v1071, %v1074
    %vm1076 = vweird.f32 %v1055
    %vm1077 = vweird.f32 %v1071
    %vm1078 = vmor %vm1076, %vm1077
    %v1079 = vsel %vm1078, %v1071, %v1075
    %v1080 = vand.u32 2147483647, %v1055
    %vm1081 = vcmp.eq.f32.partialorder %v1080, 8.507059e+37
    %v1082 = vand.u32 %v1055, 2147483648
    %v1083 = vor.u32 1.1754944e-38, %v1082
    %v1084 = vsel %vm1081, %v1083, %v1079
    %v1085 = vmul.f32 1.0, %v1084
    %v1086 = vtanh.pop %v1043
    %v1087 = vxor.u32 %v1046, 2147483648
    %v1088 = vxor.u32 %v1047, 2147483648
    %v1089 = vmul.f32 %v1087, 1.442695
    %v1090 = vpow.pop %v1089
    %v1091 = vmul.f32 %v1088, 1.442695
    %v1092 = vpow.pop %v1091
    %v1093 = vadd.f32 %v1090, 1.0
    %v1094 = vadd.f32 %v1092, 1.0
    %v1095 = vrcp.pop %v1093
    %v1096 = vmul.f32 %v1093, %v1095
    %v1097 = vsub.f32 1.0, %v1096
    %v1098 = vmul.f32 %v1095, %v1097
    %v1099 = vadd.f32 %v1095, %v1098
    %vm1100 = vweird.f32 %v1093
    %vm1101 = vweird.f32 %v1095
    %vm1102 = vmor %vm1100, %vm1101
    %v1103 = vsel %vm1102, %v1095, %v1099
    %v1104 = vand.u32 2147483647, %v1093
    %vm1105 = vcmp.eq.f32.partialorder %v1104, 8.507059e+37
    %v1106 = vand.u32 %v1093, 2147483648
    %v1107 = vor.u32 1.1754944e-38, %v1106
    %v1108 = vsel %vm1105, %v1107, %v1103
    %v1109 = vmul.f32 1.0, %v1108
    %v1110 = vrcp.pop %v1094
    %v1111 = vmul.f32 %v1094, %v1110
    %v1112 = vsub.f32 1.0, %v1111
    %v1113 = vmul.f32 %v1110, %v1112
    %v1114 = vadd.f32 %v1110, %v1113
    %vm1115 = vweird.f32 %v1094
    %vm1116 = vweird.f32 %v1110
    %vm1117 = vmor %vm1115, %vm1116
    %v1118 = vsel %vm1117, %v1110, %v1114
    %v1119 = vand.u32 2147483647, %v1094
    %vm1120 = vcmp.eq.f32.partialorder %v1119, 8.507059e+37
    %v1121 = vand.u32 %v1094, 2147483648
    %v1122 = vor.u32 1.1754944e-38, %v1121
    %v1123 = vsel %vm1120, %v1122, %v1118
    %v1124 = vmul.f32 1.0, %v1123
    %v1125 = vtanh.pop %v1047
    %v1126 = vmul.f32 %v1070, %v956
    %1128 = vrot.lane.b32.xlu0 %v1086, 64
    %v1129 = vpop.permute.xlu0 %1128
    %v1131 = vmul.f32 %v1070, %v1129
    %1133 = vrot.lane.b32.xlu0 %v1131, 64
    %v1134 = vpop.permute.xlu0 %1133
    %v1136 = vadd.f32 %v1126, %v1134
    %v1137 = vmul.f32 %v1109, %v967
    %1139 = vrot.lane.b32.xlu0 %v1125, 64
    %v1140 = vpop.permute.xlu0 %1139
    %v1142 = vmul.f32 %v1109, %v1140
    %1144 = vrot.lane.b32.xlu0 %v1142, 64
    %v1145 = vpop.permute.xlu0 %1144
    %v1147 = vadd.f32 %v1137, %v1145
    %v1148 = vtanh.pop %v1136
    %1150 = vrot.lane.b32.xlu0 %v1148, 64
    %v1151 = vpop.permute.xlu0 %1150
    %v1153 = vmul.f32 %v1085, %v1151
    %v1154 = vtanh.pop %v1147
    %1156 = vrot.lane.b32.xlu0 %v1154, 64
    %v1157 = vpop.permute.xlu0 %1156
    %v1159 = vmul.f32 %v1124, %v1157
    %1160 = vst.msk [vmem:[#allocation4 + $0x10] sm:$0xff] %vm799, %v1153
    %1161 = vst.msk [vmem:[#allocation5 + $0x28] sm:$0xff] %vm799, %v1159
    %1163 = vrot.lane.b32.xlu0 %v1159, 64
    %v1164 = vpop.permute.xlu0 %1163
    %v1166 = vsel %vm799, %v1153, %v1164
    %v1167 = vpack.c.bf16 %v1166, %v1166
    %1168 = vmatpush.bf16.msra.mxu0 %v591
    %1169 = vmatpush.bf16.msra.mxu0 %v587
    %1170 = vmatpush.bf16.msra.mxu0 %v583
    %1171 = vmatpush.bf16.msra.mxu0 %v579
    %1172 = vmatpush.bf16.msra.mxu0 %v575
    %1173 = vmatpush.bf16.msra.mxu0 %v571
    %1174 = vmatpush.bf16.msra.mxu0 %v567
    %1175 = vmatpush.bf16.msra.mxu0 %v563
    %1176 = vmatmul.bf16.gmra.mxu0 %v1167
    %v1177 = vpop.f32.mrf.mxu0
    %v1178 = vadd.f32 0.0, %v1177
    %v1179 = vpop.f32.mrf.mxu0
    %1180 = vdwg.mxu0
    %1181 = vmatpush.bf16.msra.mxu0 %v592
    %1182 = vmatpush.bf16.msra.mxu0 %v588
    %1183 = vmatpush.bf16.msra.mxu0 %v584
    %1184 = vmatpush.bf16.msra.mxu0 %v580
    %1185 = vmatpush.bf16.msra.mxu0 %v576
    %1186 = vmatpush.bf16.msra.mxu0 %v572
    %1187 = vmatpush.bf16.msra.mxu0 %v568
    %1188 = vmatpush.bf16.msra.mxu0 %v564
    %1189 = vmatmul.bf16.gmra.mxu0 %v1167
    %v1190 = vpop.f32.mrf.mxu0
    %v1191 = vadd.f32 0.0, %v1190
    %v1192 = vpop.f32.mrf.mxu0
    %1193 = vdwg.mxu0
    %1194 = vmatpush.bf16.msra.mxu0 %v593
    %1195 = vmatpush.bf16.msra.mxu0 %v589
    %1196 = vmatpush.bf16.msra.mxu0 %v585
    %1197 = vmatpush.bf16.msra.mxu0 %v581
    %1198 = vmatpush.bf16.msra.mxu0 %v577
    %1199 = vmatpush.bf16.msra.mxu0 %v573
    %1200 = vmatpush.bf16.msra.mxu0 %v569
    %1201 = vmatpush.bf16.msra.mxu0 %v565
    %1202 = vmatmul.bf16.gmra.mxu0 %v1167
    %v1203 = vpop.f32.mrf.mxu0
    %v1204 = vadd.f32 0.0, %v1203
    %v1205 = vpop.f32.mrf.mxu0
    %1206 = vdwg.mxu0
    %1207 = vmatpush.bf16.msra.mxu0 %v594
    %1208 = vmatpush.bf16.msra.mxu0 %v590
    %1209 = vmatpush.bf16.msra.mxu0 %v586
    %1210 = vmatpush.bf16.msra.mxu0 %v582
    %1211 = vmatpush.bf16.msra.mxu0 %v578
    %1212 = vmatpush.bf16.msra.mxu0 %v574
    %1213 = vmatpush.bf16.msra.mxu0 %v570
    %1214 = vmatpush.bf16.msra.mxu0 %v566
    %1215 = vmatmul.bf16.gmra.mxu0 %v1167
    %v1216 = vpop.f32.mrf.mxu0
    %v1217 = vadd.f32 0.0, %v1216
    %v1218 = vpop.f32.mrf.mxu0
    %1219 = vdwg.mxu0
    %v1220 = vld [vmem:[#allocation2 + $0x30] sm:$0xff]
    %v1221 = vld [vmem:[#allocation2 + $0x38] sm:$0xff]
    %v1222 = vadd.f32 %v1178, %v1220
    %v1223 = vadd.f32 %v1191, %v1221
    %v1224 = vld [vmem:[#allocation3 + $0x40] sm:$0xff]
    %v1225 = vld [vmem:[#allocation3 + $0x48] sm:$0xff]
    %v1226 = vadd.f32 %v1204, %v1224
    %v1227 = vadd.f32 %v1217, %v1225
    %v1228 = vxor.u32 %v1222, 2147483648
    %v1229 = vxor.u32 %v1223, 2147483648
    %v1230 = vmul.f32 %v1228, 1.442695
    %v1231 = vpow.pop %v1230
    %v1232 = vmul.f32 %v1229, 1.442695
    %v1233 = vpow.pop %v1232
    %v1234 = vadd.f32 %v1231, 1.0
    %v1235 = vadd.f32 %v1233, 1.0
    %v1236 = vrcp.pop %v1234
    %v1237 = vmul.f32 %v1234, %v1236
    %v1238 = vsub.f32 1.0, %v1237
    %v1239 = vmul.f32 %v1236, %v1238
    %v1240 = vadd.f32 %v1236, %v1239
    %vm1241 = vweird.f32 %v1234
    %vm1242 = vweird.f32 %v1236
    %vm1243 = vmor %vm1241, %vm1242
    %v1244 = vsel %vm1243, %v1236, %v1240
    %v1245 = vand.u32 2147483647, %v1234
    %vm1246 = vcmp.eq.f32.partialorder %v1245, 8.507059e+37
    %v1247 = vand.u32 %v1234, 2147483648
    %v1248 = vor.u32 1.1754944e-38, %v1247
    %v1249 = vsel %vm1246, %v1248, %v1244
    %v1250 = vmul.f32 1.0, %v1249
    %v1251 = vrcp.pop %v1235
    %v1252 = vmul.f32 %v1235, %v1251
    %v1253 = vsub.f32 1.0, %v1252
    %v1254 = vmul.f32 %v1251, %v1253
    %v1255 = vadd.f32 %v1251, %v1254
    %vm1256 = vweird.f32 %v1235
    %vm1257 = vweird.f32 %v1251
    %vm1258 = vmor %vm1256, %vm1257
    %v1259 = vsel %vm1258, %v1251, %v1255
    %v1260 = vand.u32 2147483647, %v1235
    %vm1261 = vcmp.eq.f32.partialorder %v1260, 8.507059e+37
    %v1262 = vand.u32 %v1235, 2147483648
    %v1263 = vor.u32 1.1754944e-38, %v1262
    %v1264 = vsel %vm1261, %v1263, %v1259
    %v1265 = vmul.f32 1.0, %v1264
    %v1266 = vtanh.pop %v1223
    %v1267 = vxor.u32 %v1226, 2147483648
    %v1268 = vxor.u32 %v1227, 2147483648
    %v1269 = vmul.f32 %v1267, 1.442695
    %v1270 = vpow.pop %v1269
    %v1271 = vmul.f32 %v1268, 1.442695
    %v1272 = vpow.pop %v1271
    %v1273 = vadd.f32 %v1270, 1.0
    %v1274 = vadd.f32 %v1272, 1.0
    %v1275 = vrcp.pop %v1273
    %v1276 = vmul.f32 %v1273, %v1275
    %v1277 = vsub.f32 1.0, %v1276
    %v1278 = vmul.f32 %v1275, %v1277
    %v1279 = vadd.f32 %v1275, %v1278
    %vm1280 = vweird.f32 %v1273
    %vm1281 = vweird.f32 %v1275
    %vm1282 = vmor %vm1280, %vm1281
    %v1283 = vsel %vm1282, %v1275, %v1279
    %v1284 = vand.u32 2147483647, %v1273
    %vm1285 = vcmp.eq.f32.partialorder %v1284, 8.507059e+37
    %v1286 = vand.u32 %v1273, 2147483648
    %v1287 = vor.u32 1.1754944e-38, %v1286
    %v1288 = vsel %vm1285, %v1287, %v1283
    %v1289 = vmul.f32 1.0, %v1288
    %v1290 = vrcp.pop %v1274
    %v1291 = vmul.f32 %v1274, %v1290
    %v1292 = vsub.f32 1.0, %v1291
    %v1293 = vmul.f32 %v1290, %v1292
    %v1294 = vadd.f32 %v1290, %v1293
    %vm1295 = vweird.f32 %v1274
    %vm1296 = vweird.f32 %v1290
    %vm1297 = vmor %vm1295, %vm1296
    %v1298 = vsel %vm1297, %v1290, %v1294
    %v1299 = vand.u32 2147483647, %v1274
    %vm1300 = vcmp.eq.f32.partialorder %v1299, 8.507059e+37
    %v1301 = vand.u32 %v1274, 2147483648
    %v1302 = vor.u32 1.1754944e-38, %v1301
    %v1303 = vsel %vm1300, %v1302, %v1298
    %v1304 = vmul.f32 1.0, %v1303
    %v1305 = vtanh.pop %v1227
    %v1306 = vmul.f32 %v1250, %v1136
    %1308 = vrot.lane.b32.xlu0 %v1266, 64
    %v1309 = vpop.permute.xlu0 %1308
    %v1311 = vmul.f32 %v1250, %v1309
    %1313 = vrot.lane.b32.xlu0 %v1311, 64
    %v1314 = vpop.permute.xlu0 %1313
    %v1316 = vadd.f32 %v1306, %v1314
    %v1317 = vmul.f32 %v1289, %v1147
    %1319 = vrot.lane.b32.xlu0 %v1305, 64
    %v1320 = vpop.permute.xlu0 %1319
    %v1322 = vmul.f32 %v1289, %v1320
    %1324 = vrot.lane.b32.xlu0 %v1322, 64
    %v1325 = vpop.permute.xlu0 %1324
    %v1327 = vadd.f32 %v1317, %v1325
    %v1328 = vtanh.pop %v1316
    %1330 = vrot.lane.b32.xlu0 %v1328, 64
    %v1331 = vpop.permute.xlu0 %1330
    %v1333 = vmul.f32 %v1265, %v1331
    %v1334 = vtanh.pop %v1327
    %1336 = vrot.lane.b32.xlu0 %v1334, 64
    %v1337 = vpop.permute.xlu0 %1336
    %v1339 = vmul.f32 %v1304, %v1337
    %1340 = vst.msk [vmem:[#allocation4 + $0x18] sm:$0xff] %vm799, %v1333
    %1341 = vst.msk [vmem:[#allocation5 + $0x20] sm:$0xff] %vm799, %v1339
    %1343 = vrot.lane.b32.xlu0 %v1339, 64
    %v1344 = vpop.permute.xlu0 %1343
    %v1346 = vsel %vm799, %v1333, %v1344
    %v1347 = vpack.c.bf16 %v1346, %v1346
    %1348 = vmatpush.bf16.msra.mxu0 %v591
    %1349 = vmatpush.bf16.msra.mxu0 %v587
    %1350 = vmatpush.bf16.msra.mxu0 %v583
    %1351 = vmatpush.bf16.msra.mxu0 %v579
    %1352 = vmatpush.bf16.msra.mxu0 %v575
    %1353 = vmatpush.bf16.msra.mxu0 %v571
    %1354 = vmatpush.bf16.msra.mxu0 %v567
    %1355 = vmatpush.bf16.msra.mxu0 %v563
    %1356 = vmatmul.bf16.gmra.mxu0 %v1347
    %v1357 = vpop.f32.mrf.mxu0
    %v1358 = vadd.f32 0.0, %v1357
    %v1359 = vpop.f32.mrf.mxu0
    %1360 = vdwg.mxu0
    %1361 = vmatpush.bf16.msra.mxu0 %v592
    %1362 = vmatpush.bf16.msra.mxu0 %v588
    %1363 = vmatpush.bf16.msra.mxu0 %v584
    %1364 = vmatpush.bf16.msra.mxu0 %v580
    %1365 = vmatpush.bf16.msra.mxu0 %v576
    %1366 = vmatpush.bf16.msra.mxu0 %v572
    %1367 = vmatpush.bf16.msra.mxu0 %v568
    %1368 = vmatpush.bf16.msra.mxu0 %v564
    %1369 = vmatmul.bf16.gmra.mxu0 %v1347
    %v1370 = vpop.f32.mrf.mxu0
    %v1371 = vadd.f32 0.0, %v1370
    %v1372 = vpop.f32.mrf.mxu0
    %1373 = vdwg.mxu0
    %1374 = vmatpush.bf16.msra.mxu0 %v593
    %1375 = vmatpush.bf16.msra.mxu0 %v589
    %1376 = vmatpush.bf16.msra.mxu0 %v585
    %1377 = vmatpush.bf16.msra.mxu0 %v581
    %1378 = vmatpush.bf16.msra.mxu0 %v577
    %1379 = vmatpush.bf16.msra.mxu0 %v573
    %1380 = vmatpush.bf16.msra.mxu0 %v569
    %1381 = vmatpush.bf16.msra.mxu0 %v565
    %1382 = vmatmul.bf16.gmra.mxu0 %v1347
    %v1383 = vpop.f32.mrf.mxu0
    %v1384 = vadd.f32 0.0, %v1383
    %v1385 = vpop.f32.mrf.mxu0
    %1386 = vdwg.mxu0
    %1387 = vmatpush.bf16.msra.mxu0 %v594
    %1388 = vmatpush.bf16.msra.mxu0 %v590
    %1389 = vmatpush.bf16.msra.mxu0 %v586
    %1390 = vmatpush.bf16.msra.mxu0 %v582
    %1391 = vmatpush.bf16.msra.mxu0 %v578
    %1392 = vmatpush.bf16.msra.mxu0 %v574
    %1393 = vmatpush.bf16.msra.mxu0 %v570
    %1394 = vmatpush.bf16.msra.mxu0 %v566
    %1395 = vmatmul.bf16.gmra.mxu0 %v1347
    %v1396 = vpop.f32.mrf.mxu0
    %v1397 = vadd.f32 0.0, %v1396
    %v1398 = vpop.f32.mrf.mxu0
    %1399 = vdwg.mxu0
    %v1400 = vld [vmem:[#allocation2 + $0x40] sm:$0xff]
    %v1401 = vld [vmem:[#allocation2 + $0x48] sm:$0xff]
    %v1402 = vadd.f32 %v1358, %v1400
    %v1403 = vadd.f32 %v1371, %v1401
    %v1404 = vld [vmem:[#allocation3 + $0x30] sm:$0xff]
    %v1405 = vld [vmem:[#allocation3 + $0x38] sm:$0xff]
    %v1406 = vadd.f32 %v1384, %v1404
    %v1407 = vadd.f32 %v1397, %v1405
    %v1408 = vxor.u32 %v1402, 2147483648
    %v1409 = vxor.u32 %v1403, 2147483648
    %v1410 = vmul.f32 %v1408, 1.442695
    %v1411 = vpow.pop %v1410
    %v1412 = vmul.f32 %v1409, 1.442695
    %v1413 = vpow.pop %v1412
    %v1414 = vadd.f32 %v1411, 1.0
    %v1415 = vadd.f32 %v1413, 1.0
    %v1416 = vrcp.pop %v1414
    %v1417 = vmul.f32 %v1414, %v1416
    %v1418 = vsub.f32 1.0, %v1417
    %v1419 = vmul.f32 %v1416, %v1418
    %v1420 = vadd.f32 %v1416, %v1419
    %vm1421 = vweird.f32 %v1414
    %vm1422 = vweird.f32 %v1416
    %vm1423 = vmor %vm1421, %vm1422
    %v1424 = vsel %vm1423, %v1416, %v1420
    %v1425 = vand.u32 2147483647, %v1414
    %vm1426 = vcmp.eq.f32.partialorder %v1425, 8.507059e+37
    %v1427 = vand.u32 %v1414, 2147483648
    %v1428 = vor.u32 1.1754944e-38, %v1427
    %v1429 = vsel %vm1426, %v1428, %v1424
    %v1430 = vmul.f32 1.0, %v1429
    %v1431 = vrcp.pop %v1415
    %v1432 = vmul.f32 %v1415, %v1431
    %v1433 = vsub.f32 1.0, %v1432
    %v1434 = vmul.f32 %v1431, %v1433
    %v1435 = vadd.f32 %v1431, %v1434
    %vm1436 = vweird.f32 %v1415
    %vm1437 = vweird.f32 %v1431
    %vm1438 = vmor %vm1436, %vm1437
    %v1439 = vsel %vm1438, %v1431, %v1435
    %v1440 = vand.u32 2147483647, %v1415
    %vm1441 = vcmp.eq.f32.partialorder %v1440, 8.507059e+37
    %v1442 = vand.u32 %v1415, 2147483648
    %v1443 = vor.u32 1.1754944e-38, %v1442
    %v1444 = vsel %vm1441, %v1443, %v1439
    %v1445 = vmul.f32 1.0, %v1444
    %v1446 = vtanh.pop %v1403
    %v1447 = vxor.u32 %v1406, 2147483648
    %v1448 = vxor.u32 %v1407, 2147483648
    %v1449 = vmul.f32 %v1447, 1.442695
    %v1450 = vpow.pop %v1449
    %v1451 = vmul.f32 %v1448, 1.442695
    %v1452 = vpow.pop %v1451
    %v1453 = vadd.f32 %v1450, 1.0
    %v1454 = vadd.f32 %v1452, 1.0
    %v1455 = vrcp.pop %v1453
    %v1456 = vmul.f32 %v1453, %v1455
    %v1457 = vsub.f32 1.0, %v1456
    %v1458 = vmul.f32 %v1455, %v1457
    %v1459 = vadd.f32 %v1455, %v1458
    %vm1460 = vweird.f32 %v1453
    %vm1461 = vweird.f32 %v1455
    %vm1462 = vmor %vm1460, %vm1461
    %v1463 = vsel %vm1462, %v1455, %v1459
    %v1464 = vand.u32 2147483647, %v1453
    %vm1465 = vcmp.eq.f32.partialorder %v1464, 8.507059e+37
    %v1466 = vand.u32 %v1453, 2147483648
    %v1467 = vor.u32 1.1754944e-38, %v1466
    %v1468 = vsel %vm1465, %v1467, %v1463
    %v1469 = vmul.f32 1.0, %v1468
    %v1470 = vrcp.pop %v1454
    %v1471 = vmul.f32 %v1454, %v1470
    %v1472 = vsub.f32 1.0, %v1471
    %v1473 = vmul.f32 %v1470, %v1472
    %v1474 = vadd.f32 %v1470, %v1473
    %vm1475 = vweird.f32 %v1454
    %vm1476 = vweird.f32 %v1470
    %vm1477 = vmor %vm1475, %vm1476
    %v1478 = vsel %vm1477, %v1470, %v1474
    %v1479 = vand.u32 2147483647, %v1454
    %vm1480 = vcmp.eq.f32.partialorder %v1479, 8.507059e+37
    %v1481 = vand.u32 %v1454, 2147483648
    %v1482 = vor.u32 1.1754944e-38, %v1481
    %v1483 = vsel %vm1480, %v1482, %v1478
    %v1484 = vmul.f32 1.0, %v1483
    %v1485 = vtanh.pop %v1407
    %v1486 = vmul.f32 %v1430, %v1316
    %1488 = vrot.lane.b32.xlu0 %v1446, 64
    %v1489 = vpop.permute.xlu0 %1488
    %v1491 = vmul.f32 %v1430, %v1489
    %1493 = vrot.lane.b32.xlu0 %v1491, 64
    %v1494 = vpop.permute.xlu0 %1493
    %v1496 = vadd.f32 %v1486, %v1494
    %v1497 = vmul.f32 %v1469, %v1327
    %1499 = vrot.lane.b32.xlu0 %v1485, 64
    %v1500 = vpop.permute.xlu0 %1499
    %v1502 = vmul.f32 %v1469, %v1500
    %1504 = vrot.lane.b32.xlu0 %v1502, 64
    %v1505 = vpop.permute.xlu0 %1504
    %v1507 = vadd.f32 %v1497, %v1505
    %v1508 = vtanh.pop %v1496
    %1510 = vrot.lane.b32.xlu0 %v1508, 64
    %v1511 = vpop.permute.xlu0 %1510
    %v1513 = vmul.f32 %v1445, %v1511
    %v1514 = vtanh.pop %v1507
    %1516 = vrot.lane.b32.xlu0 %v1514, 64
    %v1517 = vpop.permute.xlu0 %1516
    %v1519 = vmul.f32 %v1484, %v1517
    %1520 = vst.msk [vmem:[#allocation4 + $0x20] sm:$0xff] %vm799, %v1513
    %1521 = vst.msk [vmem:[#allocation5 + $0x18] sm:$0xff] %vm799, %v1519
    %1523 = vrot.lane.b32.xlu0 %v1519, 64
    %v1524 = vpop.permute.xlu0 %1523
    %v1526 = vsel %vm799, %v1513, %v1524
    %v1527 = vpack.c.bf16 %v1526, %v1526
    %1528 = vmatpush.bf16.msra.mxu0 %v591
    %1529 = vmatpush.bf16.msra.mxu0 %v587
    %1530 = vmatpush.bf16.msra.mxu0 %v583
    %1531 = vmatpush.bf16.msra.mxu0 %v579
    %1532 = vmatpush.bf16.msra.mxu0 %v575
    %1533 = vmatpush.bf16.msra.mxu0 %v571
    %1534 = vmatpush.bf16.msra.mxu0 %v567
    %1535 = vmatpush.bf16.msra.mxu0 %v563
    %1536 = vmatmul.bf16.gmra.mxu0 %v1527
    %v1537 = vpop.f32.mrf.mxu0
    %v1538 = vadd.f32 0.0, %v1537
    %v1539 = vpop.f32.mrf.mxu0
    %1540 = vdwg.mxu0
    %1541 = vmatpush.bf16.msra.mxu0 %v592
    %1542 = vmatpush.bf16.msra.mxu0 %v588
    %1543 = vmatpush.bf16.msra.mxu0 %v584
    %1544 = vmatpush.bf16.msra.mxu0 %v580
    %1545 = vmatpush.bf16.msra.mxu0 %v576
    %1546 = vmatpush.bf16.msra.mxu0 %v572
    %1547 = vmatpush.bf16.msra.mxu0 %v568
    %1548 = vmatpush.bf16.msra.mxu0 %v564
    %1549 = vmatmul.bf16.gmra.mxu0 %v1527
    %v1550 = vpop.f32.mrf.mxu0
    %v1551 = vadd.f32 0.0, %v1550
    %v1552 = vpop.f32.mrf.mxu0
    %1553 = vdwg.mxu0
    %1554 = vmatpush.bf16.msra.mxu0 %v593
    %1555 = vmatpush.bf16.msra.mxu0 %v589
    %1556 = vmatpush.bf16.msra.mxu0 %v585
    %1557 = vmatpush.bf16.msra.mxu0 %v581
    %1558 = vmatpush.bf16.msra.mxu0 %v577
    %1559 = vmatpush.bf16.msra.mxu0 %v573
    %1560 = vmatpush.bf16.msra.mxu0 %v569
    %1561 = vmatpush.bf16.msra.mxu0 %v565
    %1562 = vmatmul.bf16.gmra.mxu0 %v1527
    %v1563 = vpop.f32.mrf.mxu0
    %v1564 = vadd.f32 0.0, %v1563
    %v1565 = vpop.f32.mrf.mxu0
    %1566 = vdwg.mxu0
    %1567 = vmatpush.bf16.msra.mxu0 %v594
    %1568 = vmatpush.bf16.msra.mxu0 %v590
    %1569 = vmatpush.bf16.msra.mxu0 %v586
    %1570 = vmatpush.bf16.msra.mxu0 %v582
    %1571 = vmatpush.bf16.msra.mxu0 %v578
    %1572 = vmatpush.bf16.msra.mxu0 %v574
    %1573 = vmatpush.bf16.msra.mxu0 %v570
    %1574 = vmatpush.bf16.msra.mxu0 %v566
    %1575 = vmatmul.bf16.gmra.mxu0 %v1527
    %v1576 = vpop.f32.mrf.mxu0
    %v1577 = vadd.f32 0.0, %v1576
    %v1578 = vpop.f32.mrf.mxu0
    %1579 = vdwg.mxu0
    %v1580 = vld [vmem:[#allocation2 + $0x50] sm:$0xff]
    %v1581 = vld [vmem:[#allocation2 + $0x58] sm:$0xff]
    %v1582 = vadd.f32 %v1538, %v1580
    %v1583 = vadd.f32 %v1551, %v1581
    %v1584 = vld [vmem:[#allocation3 + $0x20] sm:$0xff]
    %v1585 = vld [vmem:[#allocation3 + $0x28] sm:$0xff]
    %v1586 = vadd.f32 %v1564, %v1584
    %v1587 = vadd.f32 %v1577, %v1585
    %v1588 = vxor.u32 %v1582, 2147483648
    %v1589 = vxor.u32 %v1583, 2147483648
    %v1590 = vmul.f32 %v1588, 1.442695
    %v1591 = vpow.pop %v1590
    %v1592 = vmul.f32 %v1589, 1.442695
    %v1593 = vpow.pop %v1592
    %v1594 = vadd.f32 %v1591, 1.0
    %v1595 = vadd.f32 %v1593, 1.0
    %v1596 = vrcp.pop %v1594
    %v1597 = vmul.f32 %v1594, %v1596
    %v1598 = vsub.f32 1.0, %v1597
    %v1599 = vmul.f32 %v1596, %v1598
    %v1600 = vadd.f32 %v1596, %v1599
    %vm1601 = vweird.f32 %v1594
    %vm1602 = vweird.f32 %v1596
    %vm1603 = vmor %vm1601, %vm1602
    %v1604 = vsel %vm1603, %v1596, %v1600
    %v1605 = vand.u32 2147483647, %v1594
    %vm1606 = vcmp.eq.f32.partialorder %v1605, 8.507059e+37
    %v1607 = vand.u32 %v1594, 2147483648
    %v1608 = vor.u32 1.1754944e-38, %v1607
    %v1609 = vsel %vm1606, %v1608, %v1604
    %v1610 = vmul.f32 1.0, %v1609
    %v1611 = vrcp.pop %v1595
    %v1612 = vmul.f32 %v1595, %v1611
    %v1613 = vsub.f32 1.0, %v1612
    %v1614 = vmul.f32 %v1611, %v1613
    %v1615 = vadd.f32 %v1611, %v1614
    %vm1616 = vweird.f32 %v1595
    %vm1617 = vweird.f32 %v1611
    %vm1618 = vmor %vm1616, %vm1617
    %v1619 = vsel %vm1618, %v1611, %v1615
    %v1620 = vand.u32 2147483647, %v1595
    %vm1621 = vcmp.eq.f32.partialorder %v1620, 8.507059e+37
    %v1622 = vand.u32 %v1595, 2147483648
    %v1623 = vor.u32 1.1754944e-38, %v1622
    %v1624 = vsel %vm1621, %v1623, %v1619
    %v1625 = vmul.f32 1.0, %v1624
    %v1626 = vtanh.pop %v1583
    %v1627 = vxor.u32 %v1586, 2147483648
    %v1628 = vxor.u32 %v1587, 2147483648
    %v1629 = vmul.f32 %v1627, 1.442695
    %v1630 = vpow.pop %v1629
    %v1631 = vmul.f32 %v1628, 1.442695
    %v1632 = vpow.pop %v1631
    %v1633 = vadd.f32 %v1630, 1.0
    %v1634 = vadd.f32 %v1632, 1.0
    %v1635 = vrcp.pop %v1633
    %v1636 = vmul.f32 %v1633, %v1635
    %v1637 = vsub.f32 1.0, %v1636
    %v1638 = vmul.f32 %v1635, %v1637
    %v1639 = vadd.f32 %v1635, %v1638
    %vm1640 = vweird.f32 %v1633
    %vm1641 = vweird.f32 %v1635
    %vm1642 = vmor %vm1640, %vm1641
    %v1643 = vsel %vm1642, %v1635, %v1639
    %v1644 = vand.u32 2147483647, %v1633
    %vm1645 = vcmp.eq.f32.partialorder %v1644, 8.507059e+37
    %v1646 = vand.u32 %v1633, 2147483648
    %v1647 = vor.u32 1.1754944e-38, %v1646
    %v1648 = vsel %vm1645, %v1647, %v1643
    %v1649 = vmul.f32 1.0, %v1648
    %v1650 = vrcp.pop %v1634
    %v1651 = vmul.f32 %v1634, %v1650
    %v1652 = vsub.f32 1.0, %v1651
    %v1653 = vmul.f32 %v1650, %v1652
    %v1654 = vadd.f32 %v1650, %v1653
    %vm1655 = vweird.f32 %v1634
    %vm1656 = vweird.f32 %v1650
    %vm1657 = vmor %vm1655, %vm1656
    %v1658 = vsel %vm1657, %v1650, %v1654
    %v1659 = vand.u32 2147483647, %v1634
    %vm1660 = vcmp.eq.f32.partialorder %v1659, 8.507059e+37
    %v1661 = vand.u32 %v1634, 2147483648
    %v1662 = vor.u32 1.1754944e-38, %v1661
    %v1663 = vsel %vm1660, %v1662, %v1658
    %v1664 = vmul.f32 1.0, %v1663
    %v1665 = vtanh.pop %v1587
    %v1666 = vmul.f32 %v1610, %v1496
    %1668 = vrot.lane.b32.xlu0 %v1626, 64
    %v1669 = vpop.permute.xlu0 %1668
    %v1671 = vmul.f32 %v1610, %v1669
    %1673 = vrot.lane.b32.xlu0 %v1671, 64
    %v1674 = vpop.permute.xlu0 %1673
    %v1676 = vadd.f32 %v1666, %v1674
    %v1677 = vmul.f32 %v1649, %v1507
    %1679 = vrot.lane.b32.xlu0 %v1665, 64
    %v1680 = vpop.permute.xlu0 %1679
    %v1682 = vmul.f32 %v1649, %v1680
    %1684 = vrot.lane.b32.xlu0 %v1682, 64
    %v1685 = vpop.permute.xlu0 %1684
    %v1687 = vadd.f32 %v1677, %v1685
    %v1688 = vtanh.pop %v1676
    %1690 = vrot.lane.b32.xlu0 %v1688, 64
    %v1691 = vpop.permute.xlu0 %1690
    %v1693 = vmul.f32 %v1625, %v1691
    %v1694 = vtanh.pop %v1687
    %1696 = vrot.lane.b32.xlu0 %v1694, 64
    %v1697 = vpop.permute.xlu0 %1696
    %v1699 = vmul.f32 %v1664, %v1697
    %1700 = vst.msk [vmem:[#allocation4 + $0x28] sm:$0xff] %vm799, %v1693
    %1701 = vst.msk [vmem:[#allocation5 + $0x10] sm:$0xff] %vm799, %v1699
    %1703 = vrot.lane.b32.xlu0 %v1699, 64
    %v1704 = vpop.permute.xlu0 %1703
    %v1706 = vsel %vm799, %v1693, %v1704
    %v1707 = vpack.c.bf16 %v1706, %v1706
    %1708 = vmatpush.bf16.msra.mxu0 %v591
    %1709 = vmatpush.bf16.msra.mxu0 %v587
    %1710 = vmatpush.bf16.msra.mxu0 %v583
    %1711 = vmatpush.bf16.msra.mxu0 %v579
    %1712 = vmatpush.bf16.msra.mxu0 %v575
    %1713 = vmatpush.bf16.msra.mxu0 %v571
    %1714 = vmatpush.bf16.msra.mxu0 %v567
    %1715 = vmatpush.bf16.msra.mxu0 %v563
    %1716 = vmatmul.bf16.gmra.mxu0 %v1707
    %v1717 = vpop.f32.mrf.mxu0
    %v1718 = vadd.f32 0.0, %v1717
    %v1719 = vpop.f32.mrf.mxu0
    %1720 = vdwg.mxu0
    %1721 = vmatpush.bf16.msra.mxu0 %v592
    %1722 = vmatpush.bf16.msra.mxu0 %v588
    %1723 = vmatpush.bf16.msra.mxu0 %v584
    %1724 = vmatpush.bf16.msra.mxu0 %v580
    %1725 = vmatpush.bf16.msra.mxu0 %v576
    %1726 = vmatpush.bf16.msra.mxu0 %v572
    %1727 = vmatpush.bf16.msra.mxu0 %v568
    %1728 = vmatpush.bf16.msra.mxu0 %v564
    %1729 = vmatmul.bf16.gmra.mxu0 %v1707
    %v1730 = vpop.f32.mrf.mxu0
    %v1731 = vadd.f32 0.0, %v1730
    %v1732 = vpop.f32.mrf.mxu0
    %1733 = vdwg.mxu0
    %1734 = vmatpush.bf16.msra.mxu0 %v593
    %1735 = vmatpush.bf16.msra.mxu0 %v589
    %1736 = vmatpush.bf16.msra.mxu0 %v585
    %1737 = vmatpush.bf16.msra.mxu0 %v581
    %1738 = vmatpush.bf16.msra.mxu0 %v577
    %1739 = vmatpush.bf16.msra.mxu0 %v573
    %1740 = vmatpush.bf16.msra.mxu0 %v569
    %1741 = vmatpush.bf16.msra.mxu0 %v565
    %1742 = vmatmul.bf16.gmra.mxu0 %v1707
    %v1743 = vpop.f32.mrf.mxu0
    %v1744 = vadd.f32 0.0, %v1743
    %v1745 = vpop.f32.mrf.mxu0
    %1746 = vdwg.mxu0
    %1747 = vmatpush.bf16.msra.mxu0 %v594
    %1748 = vmatpush.bf16.msra.mxu0 %v590
    %1749 = vmatpush.bf16.msra.mxu0 %v586
    %1750 = vmatpush.bf16.msra.mxu0 %v582
    %1751 = vmatpush.bf16.msra.mxu0 %v578
    %1752 = vmatpush.bf16.msra.mxu0 %v574
    %1753 = vmatpush.bf16.msra.mxu0 %v570
    %1754 = vmatpush.bf16.msra.mxu0 %v566
    %1755 = vmatmul.bf16.gmra.mxu0 %v1707
    %v1756 = vpop.f32.mrf.mxu0
    %v1757 = vadd.f32 0.0, %v1756
    %v1758 = vpop.f32.mrf.mxu0
    %1759 = vdwg.mxu0
    %v1760 = vld [vmem:[#allocation2 + $0x60] sm:$0xff]
    %v1761 = vld [vmem:[#allocation2 + $0x68] sm:$0xff]
    %v1762 = vadd.f32 %v1718, %v1760
    %v1763 = vadd.f32 %v1731, %v1761
    %v1764 = vld [vmem:[#allocation3 + $0x10] sm:$0xff]
    %v1765 = vld [vmem:[#allocation3 + $0x18] sm:$0xff]
    %v1766 = vadd.f32 %v1744, %v1764
    %v1767 = vadd.f32 %v1757, %v1765
    %v1768 = vxor.u32 %v1762, 2147483648
    %v1769 = vxor.u32 %v1763, 2147483648
    %v1770 = vmul.f32 %v1768, 1.442695
    %v1771 = vpow.pop %v1770
    %v1772 = vmul.f32 %v1769, 1.442695
    %v1773 = vpow.pop %v1772
    %v1774 = vadd.f32 %v1771, 1.0
    %v1775 = vadd.f32 %v1773, 1.0
    %v1776 = vrcp.pop %v1774
    %v1777 = vmul.f32 %v1774, %v1776
    %v1778 = vsub.f32 1.0, %v1777
    %v1779 = vmul.f32 %v1776, %v1778
    %v1780 = vadd.f32 %v1776, %v1779
    %vm1781 = vweird.f32 %v1774
    %vm1782 = vweird.f32 %v1776
    %vm1783 = vmor %vm1781, %vm1782
    %v1784 = vsel %vm1783, %v1776, %v1780
    %v1785 = vand.u32 2147483647, %v1774
    %vm1786 = vcmp.eq.f32.partialorder %v1785, 8.507059e+37
    %v1787 = vand.u32 %v1774, 2147483648
    %v1788 = vor.u32 1.1754944e-38, %v1787
    %v1789 = vsel %vm1786, %v1788, %v1784
    %v1790 = vmul.f32 1.0, %v1789
    %v1791 = vrcp.pop %v1775
    %v1792 = vmul.f32 %v1775, %v1791
    %v1793 = vsub.f32 1.0, %v1792
    %v1794 = vmul.f32 %v1791, %v1793
    %v1795 = vadd.f32 %v1791, %v1794
    %vm1796 = vweird.f32 %v1775
    %vm1797 = vweird.f32 %v1791
    %vm1798 = vmor %vm1796, %vm1797
    %v1799 = vsel %vm1798, %v1791, %v1795
    %v1800 = vand.u32 2147483647, %v1775
    %vm1801 = vcmp.eq.f32.partialorder %v1800, 8.507059e+37
    %v1802 = vand.u32 %v1775, 2147483648
    %v1803 = vor.u32 1.1754944e-38, %v1802
    %v1804 = vsel %vm1801, %v1803, %v1799
    %v1805 = vmul.f32 1.0, %v1804
    %v1806 = vtanh.pop %v1763
    %v1807 = vxor.u32 %v1766, 2147483648
    %v1808 = vxor.u32 %v1767, 2147483648
    %v1809 = vmul.f32 %v1807, 1.442695
    %v1810 = vpow.pop %v1809
    %v1811 = vmul.f32 %v1808, 1.442695
    %v1812 = vpow.pop %v1811
    %v1813 = vadd.f32 %v1810, 1.0
    %v1814 = vadd.f32 %v1812, 1.0
    %v1815 = vrcp.pop %v1813
    %v1816 = vmul.f32 %v1813, %v1815
    %v1817 = vsub.f32 1.0, %v1816
    %v1818 = vmul.f32 %v1815, %v1817
    %v1819 = vadd.f32 %v1815, %v1818
    %vm1820 = vweird.f32 %v1813
    %vm1821 = vweird.f32 %v1815
    %vm1822 = vmor %vm1820, %vm1821
    %v1823 = vsel %vm1822, %v1815, %v1819
    %v1824 = vand.u32 2147483647, %v1813
    %vm1825 = vcmp.eq.f32.partialorder %v1824, 8.507059e+37
    %v1826 = vand.u32 %v1813, 2147483648
    %v1827 = vor.u32 1.1754944e-38, %v1826
    %v1828 = vsel %vm1825, %v1827, %v1823
    %v1829 = vmul.f32 1.0, %v1828
    %v1830 = vrcp.pop %v1814
    %v1831 = vmul.f32 %v1814, %v1830
    %v1832 = vsub.f32 1.0, %v1831
    %v1833 = vmul.f32 %v1830, %v1832
    %v1834 = vadd.f32 %v1830, %v1833
    %vm1835 = vweird.f32 %v1814
    %vm1836 = vweird.f32 %v1830
    %vm1837 = vmor %vm1835, %vm1836
    %v1838 = vsel %vm1837, %v1830, %v1834
    %v1839 = vand.u32 2147483647, %v1814
    %vm1840 = vcmp.eq.f32.partialorder %v1839, 8.507059e+37
    %v1841 = vand.u32 %v1814, 2147483648
    %v1842 = vor.u32 1.1754944e-38, %v1841
    %v1843 = vsel %vm1840, %v1842, %v1838
    %v1844 = vmul.f32 1.0, %v1843
    %v1845 = vtanh.pop %v1767
    %v1846 = vmul.f32 %v1790, %v1676
    %1848 = vrot.lane.b32.xlu0 %v1806, 64
    %v1849 = vpop.permute.xlu0 %1848
    %v1851 = vmul.f32 %v1790, %v1849
    %1853 = vrot.lane.b32.xlu0 %v1851, 64
    %v1854 = vpop.permute.xlu0 %1853
    %v1856 = vadd.f32 %v1846, %v1854
    %v1857 = vmul.f32 %v1829, %v1687
    %1859 = vrot.lane.b32.xlu0 %v1845, 64
    %v1860 = vpop.permute.xlu0 %1859
    %v1862 = vmul.f32 %v1829, %v1860
    %1864 = vrot.lane.b32.xlu0 %v1862, 64
    %v1865 = vpop.permute.xlu0 %1864
    %v1867 = vadd.f32 %v1857, %v1865
    %v1868 = vtanh.pop %v1856
    %1870 = vrot.lane.b32.xlu0 %v1868, 64
    %v1871 = vpop.permute.xlu0 %1870
    %v1873 = vmul.f32 %v1805, %v1871
    %v1874 = vtanh.pop %v1867
    %1876 = vrot.lane.b32.xlu0 %v1874, 64
    %v1877 = vpop.permute.xlu0 %1876
    %v1879 = vmul.f32 %v1844, %v1877
    %1880 = vst.msk [vmem:[#allocation4 + $0x30] sm:$0xff] %vm799, %v1873
    %1881 = vst.msk [vmem:[#allocation5 + $0x8] sm:$0xff] %vm799, %v1879
    %1883 = vrot.lane.b32.xlu0 %v1879, 64
    %v1884 = vpop.permute.xlu0 %1883
    %v1886 = vsel %vm799, %v1873, %v1884
    %v1887 = vpack.c.bf16 %v1886, %v1886
    %1888 = vmatpush.bf16.msra.mxu0 %v591
    %1889 = vmatpush.bf16.msra.mxu0 %v587
    %1890 = vmatpush.bf16.msra.mxu0 %v583
    %1891 = vmatpush.bf16.msra.mxu0 %v579
    %1892 = vmatpush.bf16.msra.mxu0 %v575
    %1893 = vmatpush.bf16.msra.mxu0 %v571
    %1894 = vmatpush.bf16.msra.mxu0 %v567
    %1895 = vmatpush.bf16.msra.mxu0 %v563
    %1896 = vmatmul.bf16.gmra.mxu0 %v1887
    %v1897 = vpop.f32.mrf.mxu0
    %v1898 = vadd.f32 0.0, %v1897
    %v1899 = vpop.f32.mrf.mxu0
    %1900 = vdwg.mxu0
    %1901 = vmatpush.bf16.msra.mxu0 %v592
    %1902 = vmatpush.bf16.msra.mxu0 %v588
    %1903 = vmatpush.bf16.msra.mxu0 %v584
    %1904 = vmatpush.bf16.msra.mxu0 %v580
    %1905 = vmatpush.bf16.msra.mxu0 %v576
    %1906 = vmatpush.bf16.msra.mxu0 %v572
    %1907 = vmatpush.bf16.msra.mxu0 %v568
    %1908 = vmatpush.bf16.msra.mxu0 %v564
    %1909 = vmatmul.bf16.gmra.mxu0 %v1887
    %v1910 = vpop.f32.mrf.mxu0
    %v1911 = vadd.f32 0.0, %v1910
    %v1912 = vpop.f32.mrf.mxu0
    %1913 = vdwg.mxu0
    %1914 = vmatpush.bf16.msra.mxu0 %v593
    %1915 = vmatpush.bf16.msra.mxu0 %v589
    %1916 = vmatpush.bf16.msra.mxu0 %v585
    %1917 = vmatpush.bf16.msra.mxu0 %v581
    %1918 = vmatpush.bf16.msra.mxu0 %v577
    %1919 = vmatpush.bf16.msra.mxu0 %v573
    %1920 = vmatpush.bf16.msra.mxu0 %v569
    %1921 = vmatpush.bf16.msra.mxu0 %v565
    %1922 = vmatmul.bf16.gmra.mxu0 %v1887
    %v1923 = vpop.f32.mrf.mxu0
    %v1924 = vadd.f32 0.0, %v1923
    %v1925 = vpop.f32.mrf.mxu0
    %1926 = vdwg.mxu0
    %1927 = vmatpush.bf16.msra.mxu0 %v594
    %1928 = vmatpush.bf16.msra.mxu0 %v590
    %1929 = vmatpush.bf16.msra.mxu0 %v586
    %1930 = vmatpush.bf16.msra.mxu0 %v582
    %1931 = vmatpush.bf16.msra.mxu0 %v578
    %1932 = vmatpush.bf16.msra.mxu0 %v574
    %1933 = vmatpush.bf16.msra.mxu0 %v570
    %1934 = vmatpush.bf16.msra.mxu0 %v566
    %1935 = vmatmul.bf16.gmra.mxu0 %v1887
    %v1936 = vpop.f32.mrf.mxu0
    %v1937 = vadd.f32 0.0, %v1936
    %v1938 = vpop.f32.mrf.mxu0
    %1939 = vdwg.mxu0
    %v1940 = vld [vmem:[#allocation2 + $0x70] sm:$0xff]
    %v1941 = vld [vmem:[#allocation2 + $0x78] sm:$0xff]
    %v1942 = vadd.f32 %v1898, %v1940
    %v1943 = vadd.f32 %v1911, %v1941
    %v1944 = vld [vmem:[#allocation3] sm:$0xff]
    %v1945 = vld [vmem:[#allocation3 + $0x8] sm:$0xff]
    %v1946 = vadd.f32 %v1924, %v1944
    %v1947 = vadd.f32 %v1937, %v1945
    %v1948 = vxor.u32 %v1942, 2147483648
    %v1949 = vxor.u32 %v1943, 2147483648
    %v1950 = vmul.f32 %v1948, 1.442695
    %v1951 = vpow.pop %v1950
    %v1952 = vmul.f32 %v1949, 1.442695
    %v1953 = vpow.pop %v1952
    %v1954 = vadd.f32 %v1951, 1.0
    %v1955 = vadd.f32 %v1953, 1.0
    %v1956 = vrcp.pop %v1954
    %v1957 = vmul.f32 %v1954, %v1956
    %v1958 = vsub.f32 1.0, %v1957
    %v1959 = vmul.f32 %v1956, %v1958
    %v1960 = vadd.f32 %v1956, %v1959
    %vm1961 = vweird.f32 %v1954
    %vm1962 = vweird.f32 %v1956
    %vm1963 = vmor %vm1961, %vm1962
    %v1964 = vsel %vm1963, %v1956, %v1960
    %v1965 = vand.u32 2147483647, %v1954
    %vm1966 = vcmp.eq.f32.partialorder %v1965, 8.507059e+37
    %v1967 = vand.u32 %v1954, 2147483648
    %v1968 = vor.u32 1.1754944e-38, %v1967
    %v1969 = vsel %vm1966, %v1968, %v1964
    %v1970 = vmul.f32 1.0, %v1969
    %v1971 = vrcp.pop %v1955
    %v1972 = vmul.f32 %v1955, %v1971
    %v1973 = vsub.f32 1.0, %v1972
    %v1974 = vmul.f32 %v1971, %v1973
    %v1975 = vadd.f32 %v1971, %v1974
    %vm1976 = vweird.f32 %v1955
    %vm1977 = vweird.f32 %v1971
    %vm1978 = vmor %vm1976, %vm1977
    %v1979 = vsel %vm1978, %v1971, %v1975
    %v1980 = vand.u32 2147483647, %v1955
    %vm1981 = vcmp.eq.f32.partialorder %v1980, 8.507059e+37
    %v1982 = vand.u32 %v1955, 2147483648
    %v1983 = vor.u32 1.1754944e-38, %v1982
    %v1984 = vsel %vm1981, %v1983, %v1979
    %v1985 = vmul.f32 1.0, %v1984
    %v1986 = vtanh.pop %v1943
    %v1987 = vxor.u32 %v1946, 2147483648
    %v1988 = vxor.u32 %v1947, 2147483648
    %v1989 = vmul.f32 %v1987, 1.442695
    %v1990 = vpow.pop %v1989
    %v1991 = vmul.f32 %v1988, 1.442695
    %v1992 = vpow.pop %v1991
    %v1993 = vadd.f32 %v1990, 1.0
    %v1994 = vadd.f32 %v1992, 1.0
    %v1995 = vrcp.pop %v1993
    %v1996 = vmul.f32 %v1993, %v1995
    %v1997 = vsub.f32 1.0, %v1996
    %v1998 = vmul.f32 %v1995, %v1997
    %v1999 = vadd.f32 %v1995, %v1998
    %vm2000 = vweird.f32 %v1993
    %vm2001 = vweird.f32 %v1995
    %vm2002 = vmor %vm2000, %vm2001
    %v2003 = vsel %vm2002, %v1995, %v1999
    %v2004 = vand.u32 2147483647, %v1993
    %vm2005 = vcmp.eq.f32.partialorder %v2004, 8.507059e+37
    %v2006 = vand.u32 %v1993, 2147483648
    %v2007 = vor.u32 1.1754944e-38, %v2006
    %v2008 = vsel %vm2005, %v2007, %v2003
    %v2009 = vmul.f32 1.0, %v2008
    %v2010 = vrcp.pop %v1994
    %v2011 = vmul.f32 %v1994, %v2010
    %v2012 = vsub.f32 1.0, %v2011
    %v2013 = vmul.f32 %v2010, %v2012
    %v2014 = vadd.f32 %v2010, %v2013
    %vm2015 = vweird.f32 %v1994
    %vm2016 = vweird.f32 %v2010
    %vm2017 = vmor %vm2015, %vm2016
    %v2018 = vsel %vm2017, %v2010, %v2014
    %v2019 = vand.u32 2147483647, %v1994
    %vm2020 = vcmp.eq.f32.partialorder %v2019, 8.507059e+37
    %v2021 = vand.u32 %v1994, 2147483648
    %v2022 = vor.u32 1.1754944e-38, %v2021
    %v2023 = vsel %vm2020, %v2022, %v2018
    %v2024 = vmul.f32 1.0, %v2023
    %v2025 = vtanh.pop %v1947
    %v2026 = vmul.f32 %v1970, %v1856
    %2028 = vrot.lane.b32.xlu0 %v1986, 64
    %v2029 = vpop.permute.xlu0 %2028
    %v2031 = vmul.f32 %v1970, %v2029
    %2033 = vrot.lane.b32.xlu0 %v2031, 64
    %v2034 = vpop.permute.xlu0 %2033
    %v2036 = vadd.f32 %v2026, %v2034
    %v2037 = vmul.f32 %v2009, %v1867
    %2039 = vrot.lane.b32.xlu0 %v2025, 64
    %v2040 = vpop.permute.xlu0 %2039
    %v2042 = vmul.f32 %v2009, %v2040
    %2044 = vrot.lane.b32.xlu0 %v2042, 64
    %v2045 = vpop.permute.xlu0 %2044
    %v2047 = vadd.f32 %v2037, %v2045
    %v2048 = vtanh.pop %v2036
    %2050 = vrot.lane.b32.xlu0 %v2048, 64
    %v2051 = vpop.permute.xlu0 %2050
    %v2053 = vmul.f32 %v1985, %v2051
    %v2054 = vtanh.pop %v2047
    %2056 = vrot.lane.b32.xlu0 %v2054, 64
    %v2057 = vpop.permute.xlu0 %2056
    %v2059 = vmul.f32 %v2024, %v2057
    %2060 = vst.msk [vmem:[#allocation4 + $0x38] sm:$0xff] %vm799, %v2053
    %2061 = vst.msk [vmem:[#allocation5] sm:$0xff] %vm799, %v2059
    %v2062 = vld [vmem:[#allocation4] sm:$0xff]
    %v2063 = vld [vmem:[#allocation4 + $0x8] sm:$0xff]
    %v2064 = vld [vmem:[#allocation4 + $0x10] sm:$0xff]
    %v2065 = vld [vmem:[#allocation4 + $0x18] sm:$0xff]
    %v2066 = vld [vmem:[#allocation4 + $0x20] sm:$0xff]
    %v2067 = vld [vmem:[#allocation4 + $0x28] sm:$0xff]
    %v2068 = vld [vmem:[#allocation4 + $0x30] sm:$0xff]
    %v2069 = vld [vmem:[#allocation4 + $0x38] sm:$0xff]
    %v2070 = vld [vmem:[#allocation5] sm:$0xff]
    %v2071 = vld [vmem:[#allocation5 + $0x8] sm:$0xff]
    %v2072 = vld [vmem:[#allocation5 + $0x10] sm:$0xff]
    %v2073 = vld [vmem:[#allocation5 + $0x18] sm:$0xff]
    %v2074 = vld [vmem:[#allocation5 + $0x20] sm:$0xff]
    %v2075 = vld [vmem:[#allocation5 + $0x28] sm:$0xff]
    %v2076 = vld [vmem:[#allocation5 + $0x30] sm:$0xff]
    %v2077 = vld [vmem:[#allocation5 + $0x38] sm:$0xff]
    %v2078 = vpack.c.bf16 %v2063, %v2062
    %v2079 = vpack.c.bf16 %v2065, %v2064
    %v2080 = vpack.c.bf16 %v2067, %v2066
    %v2081 = vpack.c.bf16 %v2069, %v2068
    %v2082 = vld [vmem:[%s4] sm:$0xf]
    %v2083 = vld [vmem:[%s4 + $0x4] sm:$0xf]
    %v2084 = vld [vmem:[%s4 + $0x8] sm:$0xf]
    %v2085 = vld [vmem:[%s4 + $0xc] sm:$0xf]
    %v2086 = vld [vmem:[%s4 + $0x10] sm:$0xf]
    %v2087 = vld [vmem:[%s4 + $0x14] sm:$0xf]
    %v2088 = vld [vmem:[%s4 + $0x18] sm:$0xf]
    %v2089 = vld [vmem:[%s4 + $0x1c] sm:$0xf]
    %v2090 = vpack.c.bf16 %v2071, %v2070
    %v2091 = vpack.c.bf16 %v2073, %v2072
    %v2092 = vpack.c.bf16 %v2075, %v2074
    %v2093 = vpack.c.bf16 %v2077, %v2076
    %v2094 = vld [vmem:[%s5] sm:$0xf]
    %v2095 = vld [vmem:[%s5 + $0x4] sm:$0xf]
    %v2096 = vld [vmem:[%s5 + $0x8] sm:$0xf]
    %v2097 = vld [vmem:[%s5 + $0xc] sm:$0xf]
    %v2098 = vld [vmem:[%s5 + $0x10] sm:$0xf]
    %v2099 = vld [vmem:[%s5 + $0x14] sm:$0xf]
    %v2100 = vld [vmem:[%s5 + $0x18] sm:$0xf]
    %v2101 = vld [vmem:[%s5 + $0x1c] sm:$0xf]
    %v2110 = vunpack.c.l.b16 %v2094
    %v2111 = vunpack.c.l.b16 %v2095
    %v2112 = vunpack.c.l.b16 %v2096
    %v2113 = vunpack.c.l.b16 %v2097
    %v2114 = vunpack.c.l.b16 %v2098
    %v2115 = vunpack.c.l.b16 %v2099
    %v2116 = vunpack.c.l.b16 %v2100
    %v2117 = vunpack.c.l.b16 %v2101
    %v2118 = vpack.c.b16 %v2111, %v2110
    %v2119 = vpack.c.b16 %v2113, %v2112
    %v2120 = vpack.c.b16 %v2115, %v2114
    %v2121 = vpack.c.b16 %v2117, %v2116
    %v2127 = vsel %vm799, %v2090, 0
    %v2130 = vsel %vm799, %v2091, 0
    %v2133 = vsel %vm799, %v2092, 0
    %v2136 = vsel %vm799, %v2093, 0
    %2138 = vmatpush.bf16.msra.mxu0 0
    %2139 = vmatpush.bf16.msra.mxu0 0
    %2140 = vmatpush.bf16.msra.mxu0 0
    %2141 = vmatpush.bf16.msra.mxu0 0
    %2142 = vmatpush.bf16.msra.mxu0 %v2121
    %2143 = vmatpush.bf16.msra.mxu0 %v2120
    %2144 = vmatpush.bf16.msra.mxu0 %v2119
    %2145 = vmatpush.bf16.msra.mxu0 %v2118
    %2146 = vmatmul.bf16.gmra.mxu0 %v2127
    %v2147 = vpop.f32.mrf.mxu0
    %v2148 = vadd.f32 0.0, %v2147
    %v2149 = vpop.f32.mrf.mxu0
    %v2150 = vadd.f32 0.0, %v2149
    %2151 = vmatmul.bf16.gmra.mxu0 %v2130
    %v2152 = vpop.f32.mrf.mxu0
    %v2153 = vadd.f32 0.0, %v2152
    %v2154 = vpop.f32.mrf.mxu0
    %v2155 = vadd.f32 0.0, %v2154
    %2156 = vmatmul.bf16.gmra.mxu0 %v2133
    %v2157 = vpop.f32.mrf.mxu0
    %v2158 = vadd.f32 0.0, %v2157
    %v2159 = vpop.f32.mrf.mxu0
    %v2160 = vadd.f32 0.0, %v2159
    %2161 = vmatmul.bf16.gmra.mxu0 %v2136
    %v2162 = vpop.f32.mrf.mxu0
    %v2163 = vadd.f32 0.0, %v2162
    %v2164 = vpop.f32.mrf.mxu0
    %v2165 = vadd.f32 0.0, %v2164
    %2166 = vdwg.mxu0
    %v2175 = vunpack.c.l.b16 %v2082
    %v2176 = vunpack.c.l.b16 %v2083
    %v2177 = vunpack.c.l.b16 %v2084
    %v2178 = vunpack.c.l.b16 %v2085
    %v2179 = vunpack.c.l.b16 %v2086
    %v2180 = vunpack.c.l.b16 %v2087
    %v2181 = vunpack.c.l.b16 %v2088
    %v2182 = vunpack.c.l.b16 %v2089
    %v2183 = vpack.c.b16 %v2176, %v2175
    %v2184 = vpack.c.b16 %v2178, %v2177
    %v2185 = vpack.c.b16 %v2180, %v2179
    %v2186 = vpack.c.b16 %v2182, %v2181
    %v2192 = vsel %vm799, %v2078, 0
    %v2195 = vsel %vm799, %v2079, 0
    %v2198 = vsel %vm799, %v2080, 0
    %v2201 = vsel %vm799, %v2081, 0
    %2203 = vmatpush.bf16.msra.mxu0 0
    %2204 = vmatpush.bf16.msra.mxu0 0
    %2205 = vmatpush.bf16.msra.mxu0 0
    %2206 = vmatpush.bf16.msra.mxu0 0
    %2207 = vmatpush.bf16.msra.mxu0 %v2186
    %2208 = vmatpush.bf16.msra.mxu0 %v2185
    %2209 = vmatpush.bf16.msra.mxu0 %v2184
    %2210 = vmatpush.bf16.msra.mxu0 %v2183
    %2211 = vmatmul.bf16.gmra.mxu0 %v2192
    %v2212 = vpop.f32.mrf.mxu0
    %v2213 = vadd.f32 %v2148, %v2212
    %v2214 = vpop.f32.mrf.mxu0
    %v2215 = vadd.f32 %v2150, %v2214
    %2216 = vmatmul.bf16.gmra.mxu0 %v2195
    %v2217 = vpop.f32.mrf.mxu0
    %v2218 = vadd.f32 %v2153, %v2217
    %v2219 = vpop.f32.mrf.mxu0
    %v2220 = vadd.f32 %v2155, %v2219
    %2221 = vmatmul.bf16.gmra.mxu0 %v2198
    %v2222 = vpop.f32.mrf.mxu0
    %v2223 = vadd.f32 %v2158, %v2222
    %v2224 = vpop.f32.mrf.mxu0
    %v2225 = vadd.f32 %v2160, %v2224
    %2226 = vmatmul.bf16.gmra.mxu0 %v2201
    %v2227 = vpop.f32.mrf.mxu0
    %v2228 = vadd.f32 %v2163, %v2227
    %v2229 = vpop.f32.mrf.mxu0
    %v2230 = vadd.f32 %v2165, %v2229
    %2231 = vdwg.mxu0
    %v2232 = vld [vmem:[%s6] sm:$0x1]
    %v2234 = vperm.slane %v2232, 0
    %v2236 = vadd.f32 %v2213, %v2234
    %v2237 = vadd.f32 %v2215, %v2234
    %v2238 = vadd.f32 %v2218, %v2234
    %v2239 = vadd.f32 %v2220, %v2234
    %v2240 = vadd.f32 %v2223, %v2234
    %v2241 = vadd.f32 %v2225, %v2234
    %v2242 = vadd.f32 %v2228, %v2234
    %v2243 = vadd.f32 %v2230, %v2234
    %v2244 = vtanh.pop %v2236
    %v2245 = vtanh.pop %v2237
    %v2246 = vtanh.pop %v2238
    %v2247 = vtanh.pop %v2239
    %v2248 = vtanh.pop %v2240
    %v2249 = vtanh.pop %v2241
    %v2250 = vtanh.pop %v2242
    %v2251 = vtanh.pop %v2243
    %v2252 = vld [vmem:[%s7] sm:$0x1]
    %v2254 = vperm.slane %v2252, 0
    %v2256 = vmul.f32 %v2244, %v2254
    %v2257 = vmul.f32 %v2245, %v2254
    %v2258 = vmul.f32 %v2246, %v2254
    %v2259 = vmul.f32 %v2247, %v2254
    %v2260 = vmul.f32 %v2248, %v2254
    %v2261 = vmul.f32 %v2249, %v2254
    %v2262 = vmul.f32 %v2250, %v2254
    %v2263 = vmul.f32 %v2251, %v2254
    %v2264 = vsel %vm799, %v2256, 0.0
    %2265 = vadd.xlane.f32.xlu0 %v2264
    %v2266 = vpop.xlane.xlu0 %2265
    %v2267 = vsel %vm799, %v2257, 0.0
    %2268 = vadd.xlane.f32.xlu0 %v2267
    %v2269 = vpop.xlane.xlu0 %2268
    %v2270 = vsel %vm799, %v2258, 0.0
    %2271 = vadd.xlane.f32.xlu0 %v2270
    %v2272 = vpop.xlane.xlu0 %2271
    %v2273 = vsel %vm799, %v2259, 0.0
    %2274 = vadd.xlane.f32.xlu0 %v2273
    %v2275 = vpop.xlane.xlu0 %2274
    %v2276 = vsel %vm799, %v2260, 0.0
    %2277 = vadd.xlane.f32.xlu0 %v2276
    %v2278 = vpop.xlane.xlu0 %2277
    %v2279 = vsel %vm799, %v2261, 0.0
    %2280 = vadd.xlane.f32.xlu0 %v2279
    %v2281 = vpop.xlane.xlu0 %2280
    %v2282 = vsel %vm799, %v2262, 0.0
    %2283 = vadd.xlane.f32.xlu0 %v2282
    %v2284 = vpop.xlane.xlu0 %2283
    %v2285 = vsel %vm799, %v2263, 0.0
    %2286 = vadd.xlane.f32.xlu0 %v2285
    %v2287 = vpop.xlane.xlu0 %2286
    %v2288 = vmax.f32 %v2266, %v2269
    %v2289 = vmax.f32 %v2272, %v2275
    %v2290 = vmax.f32 %v2278, %v2281
    %v2291 = vmax.f32 %v2284, %v2287
    %v2292 = vmax.f32 %v2288, %v2289
    %v2293 = vmax.f32 %v2290, %v2291
    %v2294 = vmax.f32 %v2292, %v2293
    %v2295 = vsub.f32 %v2266, %v2294
    %v2296 = vmul.f32 %v2295, 1.442695
    %v2297 = vpow.pop %v2296
    %v2298 = vsub.f32 %v2269, %v2294
    %v2299 = vmul.f32 %v2298, 1.442695
    %v2300 = vpow.pop %v2299
    %v2301 = vsub.f32 %v2272, %v2294
    %v2302 = vmul.f32 %v2301, 1.442695
    %v2303 = vpow.pop %v2302
    %v2304 = vsub.f32 %v2275, %v2294
    %v2305 = vmul.f32 %v2304, 1.442695
    %v2306 = vpow.pop %v2305
    %v2307 = vsub.f32 %v2278, %v2294
    %v2308 = vmul.f32 %v2307, 1.442695
    %v2309 = vpow.pop %v2308
    %v2310 = vsub.f32 %v2281, %v2294
    %v2311 = vmul.f32 %v2310, 1.442695
    %v2312 = vpow.pop %v2311
    %v2313 = vsub.f32 %v2284, %v2294
    %v2314 = vmul.f32 %v2313, 1.442695
    %v2315 = vpow.pop %v2314
    %v2316 = vsub.f32 %v2287, %v2294
    %v2317 = vmul.f32 %v2316, 1.442695
    %v2318 = vpow.pop %v2317
    %v2319 = vadd.f32 %v2297, %v2300
    %v2320 = vadd.f32 %v2303, %v2306
    %v2321 = vadd.f32 %v2309, %v2312
    %v2322 = vadd.f32 %v2315, %v2318
    %v2323 = vadd.f32 %v2319, %v2320
    %v2324 = vadd.f32 %v2321, %v2322
    %v2325 = vadd.f32 %v2323, %v2324
    %v2326 = vrcp.pop %v2325
    %v2327 = vmul.f32 %v2297, %v2062
    %v2328 = vmul.f32 %v2300, %v2063
    %v2329 = vmul.f32 %v2303, %v2064
    %v2330 = vmul.f32 %v2306, %v2065
    %v2331 = vmul.f32 %v2309, %v2066
    %v2332 = vmul.f32 %v2312, %v2067
    %v2333 = vmul.f32 %v2315, %v2068
    %v2334 = vmul.f32 %v2318, %v2069
    %v2335 = vadd.f32 %v2327, %v2328
    %v2336 = vadd.f32 %v2329, %v2330
    %v2337 = vadd.f32 %v2331, %v2332
    %v2338 = vadd.f32 %v2333, %v2334
    %v2339 = vadd.f32 %v2335, %v2336
    %v2340 = vadd.f32 %v2337, %v2338
    %v2341 = vadd.f32 %v2339, %v2340
    %v2342 = vmul.f32 %v2341, %v2326
    %v2343 = vmul.f32 %v2297, %v2070
    %v2344 = vmul.f32 %v2300, %v2071
    %v2345 = vmul.f32 %v2303, %v2072
    %v2346 = vmul.f32 %v2306, %v2073
    %v2347 = vmul.f32 %v2309, %v2074
    %v2348 = vmul.f32 %v2312, %v2075
    %v2349 = vmul.f32 %v2315, %v2076
    %v2350 = vmul.f32 %v2318, %v2077
    %v2351 = vadd.f32 %v2343, %v2344
    %v2352 = vadd.f32 %v2345, %v2346
    %v2353 = vadd.f32 %v2347, %v2348
    %v2354 = vadd.f32 %v2349, %v2350
    %v2355 = vadd.f32 %v2351, %v2352
    %v2356 = vadd.f32 %v2353, %v2354
    %v2357 = vadd.f32 %v2355, %v2356
    %v2358 = vmul.f32 %v2357, %v2326
    %v2359 = vld [vmem:[%s8] sm:$0xff]
    %v2360 = vld [vmem:[%s8 + $0x8] sm:$0xff]
    %v2361 = vld [vmem:[%s8 + $0x10] sm:$0xff]
    %v2362 = vld [vmem:[%s8 + $0x18] sm:$0xff]
    %v2363 = vld [vmem:[%s8 + $0x20] sm:$0xff]
    %v2364 = vld [vmem:[%s8 + $0x28] sm:$0xff]
    %v2365 = vld [vmem:[%s8 + $0x30] sm:$0xff]
    %v2366 = vld [vmem:[%s8 + $0x38] sm:$0xff]
    %v2367 = vld [vmem:[%s9] sm:$0xff]
    %v2368 = vld [vmem:[%s9 + $0x8] sm:$0xff]
    %v2369 = vld [vmem:[%s9 + $0x10] sm:$0xff]
    %v2370 = vld [vmem:[%s9 + $0x18] sm:$0xff]
    %v2371 = vld [vmem:[%s9 + $0x20] sm:$0xff]
    %v2372 = vld [vmem:[%s9 + $0x28] sm:$0xff]
    %v2373 = vld [vmem:[%s9 + $0x30] sm:$0xff]
    %v2374 = vld [vmem:[%s9 + $0x38] sm:$0xff]
    %v2376 = vsel %vm799, %v2358, 0
    %2378 = vmatpush.msra.mxu0 0.0
    %2379 = vmatpush.msra.mxu0 0.0
    %2380 = vmatpush.msra.mxu0 0.0
    %2381 = vmatpush.msra.mxu0 0.0
    %2382 = vmatpush.msra.mxu0 0.0
    %2383 = vmatpush.msra.mxu0 0.0
    %2384 = vmatpush.msra.mxu0 0.0
    %2385 = vmatpush.msra.mxu0 0.0
    %2386 = vmatpush.msra.mxu0 %v2374
    %2387 = vmatpush.msra.mxu0 %v2373
    %2388 = vmatpush.msra.mxu0 %v2372
    %2389 = vmatpush.msra.mxu0 %v2371
    %2390 = vmatpush.msra.mxu0 %v2370
    %2391 = vmatpush.msra.mxu0 %v2369
    %2392 = vmatpush.msra.mxu0 %v2368
    %2393 = vmatpush.msra.mxu0 %v2367
    %2394 = vmatmul.f32.gmra.mxu0 %v2376
    %v2395 = vpop.f32.mrf.mxu0
    %v2396 = vadd.f32 0.0, %v2395
    %2397 = vdwg.mxu0
    %v2399 = vsel %vm799, %v2342, 0
    %2401 = vmatpush.msra.mxu0 0.0
    %2402 = vmatpush.msra.mxu0 0.0
    %2403 = vmatpush.msra.mxu0 0.0
    %2404 = vmatpush.msra.mxu0 0.0
    %2405 = vmatpush.msra.mxu0 0.0
    %2406 = vmatpush.msra.mxu0 0.0
    %2407 = vmatpush.msra.mxu0 0.0
    %2408 = vmatpush.msra.mxu0 0.0
    %2409 = vmatpush.msra.mxu0 %v2366
    %2410 = vmatpush.msra.mxu0 %v2365
    %2411 = vmatpush.msra.mxu0 %v2364
    %2412 = vmatpush.msra.mxu0 %v2363
    %2413 = vmatpush.msra.mxu0 %v2362
    %2414 = vmatpush.msra.mxu0 %v2361
    %2415 = vmatpush.msra.mxu0 %v2360
    %2416 = vmatpush.msra.mxu0 %v2359
    %2417 = vmatmul.f32.gmra.mxu0 %v2399
    %v2418 = vpop.f32.mrf.mxu0
    %v2419 = vadd.f32 %v2396, %v2418
    %2420 = vdwg.mxu0
    %v2421 = vld [vmem:[%s10] sm:$0x1]
    %v2423 = vperm.slane %v2421, 0
    %v2425 = vadd.f32 %v2419, %v2423
    %vm2426 = vcmask 39936
    %2427 = vst.msk [vmem:[#allocation11] sm:$0xff] %vm2426, %v2425
    // Predicated region
    $region54: #{tpu_custom_call.1} parent=1 // pred_check
      _
    $region55: #{tpu_custom_call.1} parent=1 // pred_check_branch
      %2429 = sbr.rel (0) target = $region57
    $region56: #{tpu_custom_call.1} parent=1 // pred_region
      %2431 = vsyncadd [#allocation8], 0
      %s2433 = sshll.u32 [#allocation11], 4
      %s2434 = int_to_ptr.vmem [resolvable:$true] %s2433
      %s2435 = sshll.u32 %s11, 4
      %s2436 = int_to_ptr.hbm [resolvable:$true] %s2435
      %2438 = dma.vmem_to_hbm [thread:$0]  %s2434, 128, %s2436, [#allocation8]
    $region57: #{tpu_custom_call.1} parent=1 // pred_fallthru
      _
    // Predicated region
    $region58: #{tpu_custom_call.1} parent=1 // pred_check
      _
    $region59: #{tpu_custom_call.1} parent=1 // pred_check_branch
      %2440 = sbr.rel (0) target = $region61
    $region60: #{tpu_custom_call.1} parent=1 // pred_region
      %2442 = dma.done [#allocation8], 128
    $region61: #{tpu_custom_call.1} parent=1 // pred_fallthru
      _
    %2443 = vsyncpa [#allocation7], 1
    %2444 = vsyncpa [#allocation10], 1
    %2445 = vsyncpa [#allocation8], 1

</llo_original>
